<compile_context>
chip_gen: v7x
topology: tpu7x:2x2x1
jax: 0.10.0
libtpu: 0.0.40
codegen_flags: <defaults>
</compile_context>

<pallas_src>
import functools
import math

import jax
import jax.numpy as jnp
from jax.experimental import pallas as pl
from jax.experimental.pallas import tpu as pltpu

# ---------------- model hyper-parameters (small, ViT-like) ----------------
IMG_SIZE = 32
IN_CHANS = 3
PATCH = 16
NUM_PATCHES = (IMG_SIZE // PATCH) ** 2          # 4
CPP = IN_CHANS * PATCH * PATCH                  # 768 (flattened patch, (C,P,P) order)
EMBED_DIM = 128                                 # "out_dim" of the backbone
NUM_HEADS = 4
HEAD_DIM = EMBED_DIM // NUM_HEADS               # 32
MLP_DIM = 4 * EMBED_DIM                         # 512
DEPTH = 2
SEQ_LEN = NUM_PATCHES + 1                       # 5 real tokens (cls + patches)
SEQ_PAD = 8                                     # sublane-aligned sequence length
NUM_CLASSES = 10
CLASS_PAD = 128                                 # lane-dense classifier output width
LN_EPS = 1e-6
NORM_EPS = 1e-12                                # F.normalize eps

# batch-chunk sizing (feedback: M = bc*SEQ_PAD >= 256 rows, f32 activations <= ~16 MiB)
MAX_BC = 256
MIN_BC_SPLIT = 32


# ---------------------------- Pallas kernel ------------------------------

def _layernorm(x, g, b, eps=LN_EPS):
    mu = jnp.mean(x, axis=-1, keepdims=True)
    var = jnp.mean((x - mu) ** 2, axis=-1, keepdims=True)
    return (x - mu) * jax.lax.rsqrt(var + eps) * g + b


def fused_vit_kernel(patches_ref, patch_w_ref, patch_b_ref, cls_ref, pos_ref,
                     ln1_g_ref, ln1_b_ref, qkv_w_ref, qkv_b_ref,
                     proj_w_ref, proj_b_ref, ln2_g_ref, ln2_b_ref,
                     fc1_w_ref, fc1_b_ref, fc2_w_ref, fc2_b_ref,
                     fln_g_ref, fln_b_ref, fc_w_ref,
                     o_ref, *, bc):
    """Whole SimpleVitNet forward for one batch chunk of `bc` images."""
    D, N, NP, H, HD = EMBED_DIM, SEQ_PAD, NUM_PATCHES, NUM_HEADS, HEAD_DIM
    T = bc * N
    bf16 = jnp.bfloat16

    # ---- patch embedding: one flattened (bc*NP, CPP) @ (CPP, D) bf16 matmul ----
    patches = patches_ref[...].reshape(bc * NP, CPP)                       # bf16
    ptok = jnp.dot(patches, patch_w_ref[...],
                   preferred_element_type=jnp.float32) + patch_b_ref[...]  # f32
    ptok = ptok.reshape(bc, NP, D)

    # ---- token assembly: [cls, 4 patch tokens, 3 zero pad tokens] + pos (padded) ----
    cls = jnp.broadcast_to(cls_ref[...][None], (bc, 1, D))                 # (bc,1,D)
    pad = jnp.zeros((bc, N - NP - 1, D), jnp.float32)
    tok = jnp.concatenate([cls, ptok, pad], axis=1) + pos_ref[...][None]   # (bc,8,D)
    x = tok.reshape(T, D)                                                  # f32, aligned

    # key-padding bias: pad key columns (>= SEQ_LEN) never receive attention
    key_ids = jax.lax.broadcasted_iota(jnp.int32, (1, 1, N), 2)
    key_bias = jnp.where(key_ids < SEQ_LEN, 0.0, -1e30).astype(jnp.float32)

    scale = HD ** -0.5
    for d in range(DEPTH):                                                 # static unroll
        # ---- attention branch (pre-norm), batched over the whole chunk ----
        xn = _layernorm(x, ln1_g_ref[d], ln1_b_ref[d])
        qkv = jnp.dot(xn.astype(bf16), qkv_w_ref[d],
                      preferred_element_type=jnp.float32) + qkv_b_ref[d]   # (T, 3D)
        q = qkv[:, 0 * D:1 * D].astype(bf16).reshape(bc, N, D)             # 128-aligned
        k = qkv[:, 1 * D:2 * D].astype(bf16).reshape(bc, N, D)
        v = qkv[:, 2 * D:3 * D].astype(bf16).reshape(bc, N, D)

        head_outs = []
        for h in range(H):                                                 # 4 heads, static
            c0 = h * HD
            qh = q[..., c0:c0 + HD]
            kh = k[..., c0:c0 + HD]
            vh = v[..., c0:c0 + HD]
            s = jnp.einsum('bqh,bkh->bqk', qh, kh,
                           preferred_element_type=jnp.float32) * scale     # (bc,N,N)
            s = s + key_bias
            s = s - jnp.max(s, axis=-1, keepdims=True)
            p = jnp.exp(s)
            p = p * pl.reciprocal(jnp.sum(p, axis=-1, keepdims=True), approx=True)
            hv = jnp.einsum('bqk,bkh->bqh', p.astype(bf16), vh,
                            preferred_element_type=jnp.float32)            # (bc,N,HD)
            head_outs.append(hv)

        # lane-axis assembly (32-lane aligned) -> single K=128 projection matmul
        attn = jnp.concatenate(head_outs, axis=-1).reshape(T, D)
        attn = jnp.dot(attn.astype(bf16), proj_w_ref[d],
                       preferred_element_type=jnp.float32) + proj_b_ref[d]
        x = x + attn

        # ---- MLP branch (pre-norm) ----
        xn2 = _layernorm(x, ln2_g_ref[d], ln2_b_ref[d])
        h1 = jnp.dot(xn2.astype(bf16), fc1_w_ref[d],
                     preferred_element_type=jnp.float32) + fc1_b_ref[d]
        # TODO(synk): timm ViT uses exact (erf) GELU; tanh approximation used here.
        h1 = jax.nn.gelu(h1, approximate=True)
        h2 = jnp.dot(h1.astype(bf16), fc2_w_ref[d],
                     preferred_element_type=jnp.float32) + fc2_b_ref[d]
        x = x + h2

    # ---- final LN (on cls token) + CosineLinear head ----
    cls_feat = x.reshape(bc, N, D)[:, 0, :]                                # (bc, D)
    f = _layernorm(cls_feat, fln_g_ref[...], fln_b_ref[...])
    # exact l2-normalize (F.normalize parity) — no approx reciprocal on the logits path
    norm = jnp.maximum(jnp.sqrt(jnp.sum(f * f, axis=-1, keepdims=True)), NORM_EPS)
    f_norm = f / norm
    # fc_w_ref is the pre-(l2-normalized, sigma-scaled, transposed, lane-padded) weight (D, 128)
    out = jnp.dot(f_norm, fc_w_ref[...], preferred_element_type=jnp.float32)
    o_ref[...] = out.astype(o_ref.dtype)


# ------------------------------ wrappers -----------------------------------

def _weight_spec(shape):
    """Grid-invariant BlockSpec: whole array, loaded once, single-buffered."""
    n = len(shape)
    index_map = lambda i, _n=n: (0,) * _n
    try:
        return pl.BlockSpec(shape, index_map, pipeline_mode=pl.Buffered(1))
    except (TypeError, AttributeError):          # older jax without pipeline_mode
        return pl.BlockSpec(shape, index_map)


def extract_patches(x):
    """NCHW image -> (B, num_patches, C*P*P), patch flattened (C, P, P)."""
    B, C, Hh, W = x.shape
    P = PATCH
    x = x.reshape(B, C, Hh // P, P, W // P, P)
    x = x.transpose(0, 2, 4, 1, 3, 5)                  # (B, Hp, Wp, C, P, P)
    return x.reshape(B, (Hh // P) * (W // P), C * P * P)


def prepare_params(params):
    """One-time host-side prep: stack per-block weights along DEPTH, cast matmul
    weights to bf16, pad pos-embed to SEQ_PAD rows, and pre-normalize + sigma-scale
    + lane-pad the CosineLinear weight."""
    bf16 = jnp.bfloat16
    blocks = params['blocks']
    st = lambda key: jnp.stack([blk[key] for blk in blocks], axis=0)

    fc_w = params['fc_weight']                                            # (C, D)
    w_norm = fc_w / jnp.maximum(
        jnp.sqrt(jnp.sum(fc_w * fc_w, axis=-1, keepdims=True)), NORM_EPS)
    fc_w_eff = (params['fc_sigma'][0, 0] * w_norm).T.astype(jnp.float32)  # (D, C)
    fc_w_pad = jnp.zeros((EMBED_DIM, CLASS_PAD), jnp.float32)
    fc_w_pad = fc_w_pad.at[:, :NUM_CLASSES].set(fc_w_eff)                 # (D, 128)

    pos = params['pos_embed'].reshape(SEQ_LEN, EMBED_DIM)
    pos_pad = jnp.zeros((SEQ_PAD, EMBED_DIM), jnp.float32).at[:SEQ_LEN].set(pos)

    return {
        'patch_w': params['patch_w'].astype(bf16),                        # (CPP, D)
        'patch_b': params['patch_b'],                                     # (1, D)
        'cls': params['cls_token'].reshape(1, EMBED_DIM),                 # (1, D)
        'pos': pos_pad,                                                   # (8, D)
        'ln1_g': st('ln1_g'), 'ln1_b': st('ln1_b'),                       # (DEPTH,1,D)
        'qkv_w': st('qkv_w').astype(bf16),                                # (DEPTH,D,3D)
        'qkv_b': st('qkv_b'),                                             # (DEPTH,1,3D)
        'proj_w': st('proj_w').astype(bf16),                              # (DEPTH,D,D)
        'proj_b': st('proj_b'),                                           # (DEPTH,1,D)
        'ln2_g': st('ln2_g'), 'ln2_b': st('ln2_b'),
        'fc1_w': st('fc1_w').astype(bf16), 'fc1_b': st('fc1_b'),
        'fc2_w': st('fc2_w').astype(bf16), 'fc2_b': st('fc2_b'),
        'fln_g': params['final_ln_g'], 'fln_b': params['final_ln_b'],
        'fc_w': fc_w_pad,                                                 # (D, 128)
    }


def _num_chunks(batch):
    """Smallest chunk count that divides `batch`, keeps bc <= MAX_BC, and uses
    >= 2 chunks only when each chunk still has bc >= MIN_BC_SPLIT (so the
    'parallel' grid axis lets v7x's two TensorCores split real work)."""
    min_chunks = 2 if batch >= 2 * MIN_BC_SPLIT else 1
    nc = min_chunks
    while batch % nc != 0 or batch // nc > MAX_BC:
        nc += 1
    return nc


@jax.jit
def simple_vit_net_forward(p, x):
    """SimpleVitNet.forward(x, targets=None) -> {'logits': ...} (single fused kernel)."""
    B = x.shape[0]
    num_chunks = _num_chunks(B)
    bc = B // num_chunks

    patches = extract_patches(x).astype(jnp.bfloat16)                     # (B, Np, CPP)

    weight_args = [p['patch_w'], p['patch_b'], p['cls'], p['pos'],
                   p['ln1_g'], p['ln1_b'], p['qkv_w'], p['qkv_b'],
                   p['proj_w'], p['proj_b'], p['ln2_g'], p['ln2_b'],
                   p['fc1_w'], p['fc1_b'], p['fc2_w'], p['fc2_b'],
                   p['fln_g'], p['fln_b'], p['fc_w']]

    in_specs = [pl.BlockSpec((bc, NUM_PATCHES, CPP), lambda i: (i, 0, 0))]
    in_specs += [_weight_spec(w.shape) for w in weight_args]

    logits_pad = pl.pallas_call(
        functools.partial(fused_vit_kernel, bc=bc),
        out_shape=jax.ShapeDtypeStruct((B, CLASS_PAD), jnp.float32),
        grid=(num_chunks,),
        in_specs=in_specs,
        out_specs=pl.BlockSpec((bc, CLASS_PAD), lambda i: (i, 0)),
        compiler_params=pltpu.CompilerParams(
            dimension_semantics=("parallel",),           # v7x: 2 TCs split chunks
            vmem_limit_bytes=48 * 1024 * 1024),          # > defaults, < v7x 64 MiB physical
    )(patches, *weight_args)
    return {'logits': logits_pad[:, :NUM_CLASSES]}


# ------------------------------ param init ---------------------------------

def init_params(key):
    D, C = EMBED_DIM, NUM_CLASSES
    keys = iter(jax.random.split(key, 8 + 4 * DEPTH))

    def nrm(shape, k):
        return (0.02 * jax.random.normal(k, shape)).astype(jnp.float32)

    params = {
        'patch_w': nrm((CPP, D), next(keys)),
        'patch_b': jnp.zeros((1, D), jnp.float32),
        'cls_token': nrm((1, 1, D), next(keys)),
        'pos_embed': nrm((1, SEQ_LEN, D), next(keys)),
        'final_ln_g': jnp.ones((1, D), jnp.float32),
        'final_ln_b': jnp.zeros((1, D), jnp.float32),
        'blocks': [],
    }
    for _ in range(DEPTH):
        params['blocks'].append({
            'ln1_g': jnp.ones((1, D), jnp.float32),
            'ln1_b': jnp.zeros((1, D), jnp.float32),
            'qkv_w': nrm((D, 3 * D), next(keys)),
            'qkv_b': jnp.zeros((1, 3 * D), jnp.float32),
            'proj_w': nrm((D, D), next(keys)),
            'proj_b': jnp.zeros((1, D), jnp.float32),
            'ln2_g': jnp.ones((1, D), jnp.float32),
            'ln2_b': jnp.zeros((1, D), jnp.float32),
            'fc1_w': nrm((D, MLP_DIM), next(keys)),
            'fc1_b': jnp.zeros((1, MLP_DIM), jnp.float32),
            'fc2_w': nrm((MLP_DIM, D), next(keys)),
            'fc2_b': jnp.zeros((1, D), jnp.float32),
        })
    # CosineLinear.reset_parameters: uniform(-stdv, stdv), stdv = 1/sqrt(in), sigma=1
    stdv = 1.0 / math.sqrt(D)
    params['fc_weight'] = jax.random.uniform(
        next(keys), (C, D), jnp.float32, minval=-stdv, maxval=stdv)
    params['fc_sigma'] = jnp.ones((1, 1), jnp.float32)
    return params


# --------------------------------- main -------------------------------------

if __name__ == "__main__":
    key = jax.random.PRNGKey(0)
    k_param, k_x = jax.random.split(key)
    params = init_params(k_param)
    prepared = prepare_params(params)
    x = jax.random.normal(k_x, (2, IN_CHANS, IMG_SIZE, IMG_SIZE), jnp.float32)

    out = simple_vit_net_forward(prepared, x)
    logits = jax.block_until_ready(out['logits'])

    assert logits.shape == (2, NUM_CLASSES), logits.shape
    assert bool(jnp.all(jnp.isfinite(logits)))
    print("KERNEL_OK")
</pallas_src>

<mosaic_0001>
module attributes {stable_mosaic.version = 11 : i64} {
  func.func @fused_vit_kernel(%arg0: i32, %arg1: memref<2x4x768xbf16, #tpu.memory_space<vmem>>, %arg2: memref<768x128xbf16, #tpu.memory_space<vmem>>, %arg3: memref<1x128xf32, #tpu.memory_space<vmem>>, %arg4: memref<1x128xf32, #tpu.memory_space<vmem>>, %arg5: memref<8x128xf32, #tpu.memory_space<vmem>>, %arg6: memref<2x1x128xf32, #tpu.memory_space<vmem>>, %arg7: memref<2x1x128xf32, #tpu.memory_space<vmem>>, %arg8: memref<2x128x384xbf16, #tpu.memory_space<vmem>>, %arg9: memref<2x1x384xf32, #tpu.memory_space<vmem>>, %arg10: memref<2x128x128xbf16, #tpu.memory_space<vmem>>, %arg11: memref<2x1x128xf32, #tpu.memory_space<vmem>>, %arg12: memref<2x1x128xf32, #tpu.memory_space<vmem>>, %arg13: memref<2x1x128xf32, #tpu.memory_space<vmem>>, %arg14: memref<2x128x512xbf16, #tpu.memory_space<vmem>>, %arg15: memref<2x1x512xf32, #tpu.memory_space<vmem>>, %arg16: memref<2x512x128xbf16, #tpu.memory_space<vmem>>, %arg17: memref<2x1x128xf32, #tpu.memory_space<vmem>>, %arg18: memref<1x128xf32, #tpu.memory_space<vmem>>, %arg19: memref<1x128xf32, #tpu.memory_space<vmem>>, %arg20: memref<128x128xf32, #tpu.memory_space<vmem>>, %arg21: memref<2x128xf32, #tpu.memory_space<vmem>>) attributes {dimension_semantics = [#tpu.dimension_semantics<parallel>], iteration_bounds = array<i64: 1>, scalar_prefetch = 0 : i64, scratch_operands = 0 : i64, tpu.core_type = #tpu.core_type<tc>, window_params = [{transform_indices = @transform_0, window_bounds = array<i64: 2, 4, 768>}, {pipeline_mode = #tpu.pipeline_mode<synchronous>, transform_indices = @transform_1, window_bounds = array<i64: 768, 128>}, {pipeline_mode = #tpu.pipeline_mode<synchronous>, transform_indices = @transform_2, window_bounds = array<i64: 1, 128>}, {pipeline_mode = #tpu.pipeline_mode<synchronous>, transform_indices = @transform_3, window_bounds = array<i64: 1, 128>}, {pipeline_mode = #tpu.pipeline_mode<synchronous>, transform_indices = @transform_4, window_bounds = array<i64: 8, 128>}, {pipeline_mode = #tpu.pipeline_mode<synchronous>, transform_indices = @transform_5, window_bounds = array<i64: 2, 1, 128>}, {pipeline_mode = #tpu.pipeline_mode<synchronous>, transform_indices = @transform_6, window_bounds = array<i64: 2, 1, 128>}, {pipeline_mode = #tpu.pipeline_mode<synchronous>, transform_indices = @transform_7, window_bounds = array<i64: 2, 128, 384>}, {pipeline_mode = #tpu.pipeline_mode<synchronous>, transform_indices = @transform_8, window_bounds = array<i64: 2, 1, 384>}, {pipeline_mode = #tpu.pipeline_mode<synchronous>, transform_indices = @transform_9, window_bounds = array<i64: 2, 128, 128>}, {pipeline_mode = #tpu.pipeline_mode<synchronous>, transform_indices = @transform_10, window_bounds = array<i64: 2, 1, 128>}, {pipeline_mode = #tpu.pipeline_mode<synchronous>, transform_indices = @transform_11, window_bounds = array<i64: 2, 1, 128>}, {pipeline_mode = #tpu.pipeline_mode<synchronous>, transform_indices = @transform_12, window_bounds = array<i64: 2, 1, 128>}, {pipeline_mode = #tpu.pipeline_mode<synchronous>, transform_indices = @transform_13, window_bounds = array<i64: 2, 128, 512>}, {pipeline_mode = #tpu.pipeline_mode<synchronous>, transform_indices = @transform_14, window_bounds = array<i64: 2, 1, 512>}, {pipeline_mode = #tpu.pipeline_mode<synchronous>, transform_indices = @transform_15, window_bounds = array<i64: 2, 512, 128>}, {pipeline_mode = #tpu.pipeline_mode<synchronous>, transform_indices = @transform_16, window_bounds = array<i64: 2, 1, 128>}, {pipeline_mode = #tpu.pipeline_mode<synchronous>, transform_indices = @transform_17, window_bounds = array<i64: 1, 128>}, {pipeline_mode = #tpu.pipeline_mode<synchronous>, transform_indices = @transform_18, window_bounds = array<i64: 1, 128>}, {pipeline_mode = #tpu.pipeline_mode<synchronous>, transform_indices = @transform_19, window_bounds = array<i64: 128, 128>}, {transform_indices = @transform_20, window_bounds = array<i64: 2, 128>}]} {
    %c0 = arith.constant 0 : index
    %c0_0 = arith.constant 0 : index
    %c0_1 = arith.constant 0 : index
    %0 = vector.load %arg1[%c0, %c0_0, %c0_1] : memref<2x4x768xbf16, #tpu.memory_space<vmem>>, vector<2x4x768xbf16>
    %1 = vector.shape_cast %0 : vector<2x4x768xbf16> to vector<8x768xbf16>
    %c0_2 = arith.constant 0 : index
    %c0_3 = arith.constant 0 : index
    %2 = vector.load %arg2[%c0_2, %c0_3] : memref<768x128xbf16, #tpu.memory_space<vmem>>, vector<768x128xbf16>
    %cst = arith.constant dense<0.000000e+00> : vector<8x128xf32>
    %3 = tpu.matmul %1, %2, %cst {dimension_numbers = #tpu.dot_dimension_numbers<[1], [0], [0], [1], [0, 0, 1, 1], [], []>} : vector<8x768xbf16>, vector<768x128xbf16>, vector<8x128xf32> -> vector<8x128xf32>
    %c0_4 = arith.constant 0 : index
    %c0_5 = arith.constant 0 : index
    %4 = vector.load %arg3[%c0_4, %c0_5] : memref<1x128xf32, #tpu.memory_space<vmem>>, vector<1x128xf32>
    %5 = vector.broadcast %4 : vector<1x128xf32> to vector<8x128xf32>
    %6 = arith.addf %3, %5 : vector<8x128xf32>
    %7 = vector.shape_cast %6 : vector<8x128xf32> to vector<2x4x128xf32>
    %c0_6 = arith.constant 0 : index
    %c0_7 = arith.constant 0 : index
    %8 = vector.load %arg4[%c0_6, %c0_7] : memref<1x128xf32, #tpu.memory_space<vmem>>, vector<1x128xf32>
    %9 = vector.shape_cast %8 : vector<1x128xf32> to vector<1x1x128xf32>
    %10 = vector.shape_cast %9 : vector<1x1x128xf32> to vector<1x1x128xf32>
    %11 = vector.broadcast %10 : vector<1x1x128xf32> to vector<2x1x128xf32>
    %cst_8 = arith.constant 0.000000e+00 : f32
    %12 = vector.broadcast %cst_8 : f32 to vector<2x3x128xf32>
    %13 = tpu.concatenate %11, %7, %12 in 1 : vector<2x1x128xf32>, vector<2x4x128xf32>, vector<2x3x128xf32> -> vector<2x8x128xf32>
    %c0_9 = arith.constant 0 : index
    %c0_10 = arith.constant 0 : index
    %14 = vector.load %arg5[%c0_9, %c0_10] : memref<8x128xf32, #tpu.memory_space<vmem>>, vector<8x128xf32>
    %15 = vector.shape_cast %14 : vector<8x128xf32> to vector<1x8x128xf32>
    %16 = vector.broadcast %15 : vector<1x8x128xf32> to vector<2x8x128xf32>
    %17 = arith.addf %13, %16 : vector<2x8x128xf32>
    %18 = vector.shape_cast %17 : vector<2x8x128xf32> to vector<16x128xf32>
    %19 = tpu.iota {dimensions = array<i32: 2>} : vector<1x1x8xi32>
    %c5_i32 = arith.constant 5 : i32
    %20 = vector.broadcast %c5_i32 : i32 to vector<1x1x8xi32>
    %21 = arith.cmpi slt, %19, %20 : vector<1x1x8xi32>
    %cst_11 = arith.constant 0.000000e+00 : f32
    %cst_12 = arith.constant -1.000000e+30 : f32
    %22 = vector.broadcast %cst_11 : f32 to vector<1x1x8xf32>
    %23 = vector.broadcast %cst_12 : f32 to vector<1x1x8xf32>
    %24 = arith.select %21, %22, %23 : vector<1x1x8xi1>, vector<1x1x8xf32>
    %c0_13 = arith.constant 0 : index
    %c0_14 = arith.constant 0 : index
    %c0_15 = arith.constant 0 : index
    %25 = vector.load %arg6[%c0_13, %c0_14, %c0_15] : memref<2x1x128xf32, #tpu.memory_space<vmem>>, vector<1x1x128xf32>
    %26 = vector.shape_cast %25 : vector<1x1x128xf32> to vector<1x128xf32>
    %c0_16 = arith.constant 0 : index
    %c0_17 = arith.constant 0 : index
    %c0_18 = arith.constant 0 : index
    %27 = vector.load %arg7[%c0_16, %c0_17, %c0_18] : memref<2x1x128xf32, #tpu.memory_space<vmem>>, vector<1x1x128xf32>
    %28 = vector.shape_cast %27 : vector<1x1x128xf32> to vector<1x128xf32>
    %cst_19 = arith.constant dense<0.000000e+00> : vector<16xf32>
    %29 = vector.multi_reduction <add>, %18, %cst_19 [1] : vector<16x128xf32> to vector<16xf32>
    %30 = vector.shape_cast %29 : vector<16xf32> to vector<16x1xf32>
    %cst_20 = arith.constant 1.280000e+02 : f32
    %31 = vector.broadcast %cst_20 : f32 to vector<16x1xf32>
    %32 = arith.divf %30, %31 : vector<16x1xf32>
    %33 = vector.broadcast %32 : vector<16x1xf32> to vector<16x128xf32>
    %34 = arith.subf %18, %33 : vector<16x128xf32>
    %35 = arith.mulf %34, %34 : vector<16x128xf32>
    %cst_21 = arith.constant dense<0.000000e+00> : vector<16xf32>
    %36 = vector.multi_reduction <add>, %35, %cst_21 [1] : vector<16x128xf32> to vector<16xf32>
    %37 = vector.shape_cast %36 : vector<16xf32> to vector<16x1xf32>
    %cst_22 = arith.constant 1.280000e+02 : f32
    %38 = vector.broadcast %cst_22 : f32 to vector<16x1xf32>
    %39 = arith.divf %37, %38 : vector<16x1xf32>
    %40 = vector.broadcast %32 : vector<16x1xf32> to vector<16x128xf32>
    %41 = arith.subf %18, %40 : vector<16x128xf32>
    %cst_23 = arith.constant 9.99999997E-7 : f32
    %42 = vector.broadcast %cst_23 : f32 to vector<16x1xf32>
    %43 = arith.addf %39, %42 : vector<16x1xf32>
    %44 = math.rsqrt %43 : vector<16x1xf32>
    %45 = vector.broadcast %44 : vector<16x1xf32> to vector<16x128xf32>
    %46 = arith.mulf %41, %45 : vector<16x128xf32>
    %47 = vector.broadcast %26 : vector<1x128xf32> to vector<16x128xf32>
    %48 = arith.mulf %46, %47 : vector<16x128xf32>
    %49 = vector.broadcast %28 : vector<1x128xf32> to vector<16x128xf32>
    %50 = arith.addf %48, %49 : vector<16x128xf32>
    %51 = arith.truncf %50 : vector<16x128xf32> to vector<16x128xbf16>
    %c0_24 = arith.constant 0 : index
    %c0_25 = arith.constant 0 : index
    %c0_26 = arith.constant 0 : index
    %52 = vector.load %arg8[%c0_24, %c0_25, %c0_26] : memref<2x128x384xbf16, #tpu.memory_space<vmem>>, vector<1x128x384xbf16>
    %53 = vector.shape_cast %52 : vector<1x128x384xbf16> to vector<128x384xbf16>
    %cst_27 = arith.constant dense<0.000000e+00> : vector<16x384xf32>
    %54 = tpu.matmul %51, %53, %cst_27 {dimension_numbers = #tpu.dot_dimension_numbers<[1], [0], [0], [1], [0, 0, 1, 1], [], []>} : vector<16x128xbf16>, vector<128x384xbf16>, vector<16x384xf32> -> vector<16x384xf32>
    %c0_28 = arith.constant 0 : index
    %c0_29 = arith.constant 0 : index
    %c0_30 = arith.constant 0 : index
    %55 = vector.load %arg9[%c0_28, %c0_29, %c0_30] : memref<2x1x384xf32, #tpu.memory_space<vmem>>, vector<1x1x384xf32>
    %56 = vector.shape_cast %55 : vector<1x1x384xf32> to vector<1x384xf32>
    %57 = vector.broadcast %56 : vector<1x384xf32> to vector<16x384xf32>
    %58 = arith.addf %54, %57 : vector<16x384xf32>
    %59 = vector.extract_strided_slice %58 {offsets = [0, 0], sizes = [16, 128], strides = [1, 1]} : vector<16x384xf32> to vector<16x128xf32>
    %60 = arith.truncf %59 : vector<16x128xf32> to vector<16x128xbf16>
    %61 = vector.shape_cast %60 : vector<16x128xbf16> to vector<2x8x128xbf16>
    %62 = vector.extract_strided_slice %58 {offsets = [0, 128], sizes = [16, 128], strides = [1, 1]} : vector<16x384xf32> to vector<16x128xf32>
    %63 = arith.truncf %62 : vector<16x128xf32> to vector<16x128xbf16>
    %64 = vector.shape_cast %63 : vector<16x128xbf16> to vector<2x8x128xbf16>
    %65 = vector.extract_strided_slice %58 {offsets = [0, 256], sizes = [16, 128], strides = [1, 1]} : vector<16x384xf32> to vector<16x128xf32>
    %66 = arith.truncf %65 : vector<16x128xf32> to vector<16x128xbf16>
    %67 = vector.shape_cast %66 : vector<16x128xbf16> to vector<2x8x128xbf16>
    %68 = vector.extract_strided_slice %61 {offsets = [0, 0, 0], sizes = [2, 8, 32], strides = [1, 1, 1]} : vector<2x8x128xbf16> to vector<2x8x32xbf16>
    %69 = vector.extract_strided_slice %64 {offsets = [0, 0, 0], sizes = [2, 8, 32], strides = [1, 1, 1]} : vector<2x8x128xbf16> to vector<2x8x32xbf16>
    %70 = vector.extract_strided_slice %67 {offsets = [0, 0, 0], sizes = [2, 8, 32], strides = [1, 1, 1]} : vector<2x8x128xbf16> to vector<2x8x32xbf16>
    "tpu.trace_start"() <{level = 10 : i32, message = "bqh,bkh->bqk"}> : () -> ()
    %cst_31 = arith.constant dense<0.000000e+00> : vector<2x8x8xf32>
    %71 = tpu.matmul %68, %69, %cst_31 {dimension_numbers = #tpu.dot_dimension_numbers<[2], [2], [1], [1], [0, 0, 0, 1, 1, 1], [0], [0]>} : vector<2x8x32xbf16>, vector<2x8x32xbf16>, vector<2x8x8xf32> -> vector<2x8x8xf32>
    "tpu.trace_stop"() : () -> ()
    %cst_32 = arith.constant 0.176776692 : f32
    %72 = vector.broadcast %cst_32 : f32 to vector<2x8x8xf32>
    %73 = arith.mulf %71, %72 : vector<2x8x8xf32>
    %74 = vector.broadcast %24 : vector<1x1x8xf32> to vector<2x8x8xf32>
    %75 = arith.addf %73, %74 : vector<2x8x8xf32>
    %cst_33 = arith.constant dense<0xFF800000> : vector<2x8xf32>
    %76 = vector.multi_reduction <maximumf>, %75, %cst_33 [2] : vector<2x8x8xf32> to vector<2x8xf32>
    %77 = vector.shape_cast %76 : vector<2x8xf32> to vector<2x8x1xf32>
    %78 = vector.broadcast %77 : vector<2x8x1xf32> to vector<2x8x8xf32>
    %79 = arith.subf %75, %78 : vector<2x8x8xf32>
    %80 = math.exp %79 : vector<2x8x8xf32>
    %cst_34 = arith.constant dense<0.000000e+00> : vector<2x8xf32>
    %81 = vector.multi_reduction <add>, %80, %cst_34 [2] : vector<2x8x8xf32> to vector<2x8xf32>
    %82 = vector.shape_cast %81 : vector<2x8xf32> to vector<2x8x1xf32>
    %83 = tpu.reciprocal %82 {approx = true} : vector<2x8x1xf32> -> vector<2x8x1xf32>
    %84 = vector.broadcast %83 : vector<2x8x1xf32> to vector<2x8x8xf32>
    %85 = arith.mulf %80, %84 : vector<2x8x8xf32>
    %86 = arith.truncf %85 : vector<2x8x8xf32> to vector<2x8x8xbf16>
    "tpu.trace_start"() <{level = 10 : i32, message = "bqk,bkh->bqh"}> : () -> ()
    %cst_35 = arith.constant dense<0.000000e+00> : vector<2x8x32xf32>
    %87 = tpu.matmul %86, %70, %cst_35 {dimension_numbers = #tpu.dot_dimension_numbers<[2], [1], [1], [2], [0, 0, 0, 1, 1, 2], [0], [0]>} : vector<2x8x8xbf16>, vector<2x8x32xbf16>, vector<2x8x32xf32> -> vector<2x8x32xf32>
    "tpu.trace_stop"() : () -> ()
    %88 = vector.extract_strided_slice %61 {offsets = [0, 0, 32], sizes = [2, 8, 32], strides = [1, 1, 1]} : vector<2x8x128xbf16> to vector<2x8x32xbf16>
    %89 = vector.extract_strided_slice %64 {offsets = [0, 0, 32], sizes = [2, 8, 32], strides = [1, 1, 1]} : vector<2x8x128xbf16> to vector<2x8x32xbf16>
    %90 = vector.extract_strided_slice %67 {offsets = [0, 0, 32], sizes = [2, 8, 32], strides = [1, 1, 1]} : vector<2x8x128xbf16> to vector<2x8x32xbf16>
    "tpu.trace_start"() <{level = 10 : i32, message = "bqh,bkh->bqk"}> : () -> ()
    %cst_36 = arith.constant dense<0.000000e+00> : vector<2x8x8xf32>
    %91 = tpu.matmul %88, %89, %cst_36 {dimension_numbers = #tpu.dot_dimension_numbers<[2], [2], [1], [1], [0, 0, 0, 1, 1, 1], [0], [0]>} : vector<2x8x32xbf16>, vector<2x8x32xbf16>, vector<2x8x8xf32> -> vector<2x8x8xf32>
    "tpu.trace_stop"() : () -> ()
    %cst_37 = arith.constant 0.176776692 : f32
    %92 = vector.broadcast %cst_37 : f32 to vector<2x8x8xf32>
    %93 = arith.mulf %91, %92 : vector<2x8x8xf32>
    %94 = vector.broadcast %24 : vector<1x1x8xf32> to vector<2x8x8xf32>
    %95 = arith.addf %93, %94 : vector<2x8x8xf32>
    %cst_38 = arith.constant dense<0xFF800000> : vector<2x8xf32>
    %96 = vector.multi_reduction <maximumf>, %95, %cst_38 [2] : vector<2x8x8xf32> to vector<2x8xf32>
    %97 = vector.shape_cast %96 : vector<2x8xf32> to vector<2x8x1xf32>
    %98 = vector.broadcast %97 : vector<2x8x1xf32> to vector<2x8x8xf32>
    %99 = arith.subf %95, %98 : vector<2x8x8xf32>
    %100 = math.exp %99 : vector<2x8x8xf32>
    %cst_39 = arith.constant dense<0.000000e+00> : vector<2x8xf32>
    %101 = vector.multi_reduction <add>, %100, %cst_39 [2] : vector<2x8x8xf32> to vector<2x8xf32>
    %102 = vector.shape_cast %101 : vector<2x8xf32> to vector<2x8x1xf32>
    %103 = tpu.reciprocal %102 {approx = true} : vector<2x8x1xf32> -> vector<2x8x1xf32>
    %104 = vector.broadcast %103 : vector<2x8x1xf32> to vector<2x8x8xf32>
    %105 = arith.mulf %100, %104 : vector<2x8x8xf32>
    %106 = arith.truncf %105 : vector<2x8x8xf32> to vector<2x8x8xbf16>
    "tpu.trace_start"() <{level = 10 : i32, message = "bqk,bkh->bqh"}> : () -> ()
    %cst_40 = arith.constant dense<0.000000e+00> : vector<2x8x32xf32>
    %107 = tpu.matmul %106, %90, %cst_40 {dimension_numbers = #tpu.dot_dimension_numbers<[2], [1], [1], [2], [0, 0, 0, 1, 1, 2], [0], [0]>} : vector<2x8x8xbf16>, vector<2x8x32xbf16>, vector<2x8x32xf32> -> vector<2x8x32xf32>
    "tpu.trace_stop"() : () -> ()
    %108 = vector.extract_strided_slice %61 {offsets = [0, 0, 64], sizes = [2, 8, 32], strides = [1, 1, 1]} : vector<2x8x128xbf16> to vector<2x8x32xbf16>
    %109 = vector.extract_strided_slice %64 {offsets = [0, 0, 64], sizes = [2, 8, 32], strides = [1, 1, 1]} : vector<2x8x128xbf16> to vector<2x8x32xbf16>
    %110 = vector.extract_strided_slice %67 {offsets = [0, 0, 64], sizes = [2, 8, 32], strides = [1, 1, 1]} : vector<2x8x128xbf16> to vector<2x8x32xbf16>
    "tpu.trace_start"() <{level = 10 : i32, message = "bqh,bkh->bqk"}> : () -> ()
    %cst_41 = arith.constant dense<0.000000e+00> : vector<2x8x8xf32>
    %111 = tpu.matmul %108, %109, %cst_41 {dimension_numbers = #tpu.dot_dimension_numbers<[2], [2], [1], [1], [0, 0, 0, 1, 1, 1], [0], [0]>} : vector<2x8x32xbf16>, vector<2x8x32xbf16>, vector<2x8x8xf32> -> vector<2x8x8xf32>
    "tpu.trace_stop"() : () -> ()
    %cst_42 = arith.constant 0.176776692 : f32
    %112 = vector.broadcast %cst_42 : f32 to vector<2x8x8xf32>
    %113 = arith.mulf %111, %112 : vector<2x8x8xf32>
    %114 = vector.broadcast %24 : vector<1x1x8xf32> to vector<2x8x8xf32>
    %115 = arith.addf %113, %114 : vector<2x8x8xf32>
    %cst_43 = arith.constant dense<0xFF800000> : vector<2x8xf32>
    %116 = vector.multi_reduction <maximumf>, %115, %cst_43 [2] : vector<2x8x8xf32> to vector<2x8xf32>
    %117 = vector.shape_cast %116 : vector<2x8xf32> to vector<2x8x1xf32>
    %118 = vector.broadcast %117 : vector<2x8x1xf32> to vector<2x8x8xf32>
    %119 = arith.subf %115, %118 : vector<2x8x8xf32>
    %120 = math.exp %119 : vector<2x8x8xf32>
    %cst_44 = arith.constant dense<0.000000e+00> : vector<2x8xf32>
    %121 = vector.multi_reduction <add>, %120, %cst_44 [2] : vector<2x8x8xf32> to vector<2x8xf32>
    %122 = vector.shape_cast %121 : vector<2x8xf32> to vector<2x8x1xf32>
    %123 = tpu.reciprocal %122 {approx = true} : vector<2x8x1xf32> -> vector<2x8x1xf32>
    %124 = vector.broadcast %123 : vector<2x8x1xf32> to vector<2x8x8xf32>
    %125 = arith.mulf %120, %124 : vector<2x8x8xf32>
    %126 = arith.truncf %125 : vector<2x8x8xf32> to vector<2x8x8xbf16>
    "tpu.trace_start"() <{level = 10 : i32, message = "bqk,bkh->bqh"}> : () -> ()
    %cst_45 = arith.constant dense<0.000000e+00> : vector<2x8x32xf32>
    %127 = tpu.matmul %126, %110, %cst_45 {dimension_numbers = #tpu.dot_dimension_numbers<[2], [1], [1], [2], [0, 0, 0, 1, 1, 2], [0], [0]>} : vector<2x8x8xbf16>, vector<2x8x32xbf16>, vector<2x8x32xf32> -> vector<2x8x32xf32>
    "tpu.trace_stop"() : () -> ()
    %128 = vector.extract_strided_slice %61 {offsets = [0, 0, 96], sizes = [2, 8, 32], strides = [1, 1, 1]} : vector<2x8x128xbf16> to vector<2x8x32xbf16>
    %129 = vector.extract_strided_slice %64 {offsets = [0, 0, 96], sizes = [2, 8, 32], strides = [1, 1, 1]} : vector<2x8x128xbf16> to vector<2x8x32xbf16>
    %130 = vector.extract_strided_slice %67 {offsets = [0, 0, 96], sizes = [2, 8, 32], strides = [1, 1, 1]} : vector<2x8x128xbf16> to vector<2x8x32xbf16>
    "tpu.trace_start"() <{level = 10 : i32, message = "bqh,bkh->bqk"}> : () -> ()
    %cst_46 = arith.constant dense<0.000000e+00> : vector<2x8x8xf32>
    %131 = tpu.matmul %128, %129, %cst_46 {dimension_numbers = #tpu.dot_dimension_numbers<[2], [2], [1], [1], [0, 0, 0, 1, 1, 1], [0], [0]>} : vector<2x8x32xbf16>, vector<2x8x32xbf16>, vector<2x8x8xf32> -> vector<2x8x8xf32>
    "tpu.trace_stop"() : () -> ()
    %cst_47 = arith.constant 0.176776692 : f32
    %132 = vector.broadcast %cst_47 : f32 to vector<2x8x8xf32>
    %133 = arith.mulf %131, %132 : vector<2x8x8xf32>
    %134 = vector.broadcast %24 : vector<1x1x8xf32> to vector<2x8x8xf32>
    %135 = arith.addf %133, %134 : vector<2x8x8xf32>
    %cst_48 = arith.constant dense<0xFF800000> : vector<2x8xf32>
    %136 = vector.multi_reduction <maximumf>, %135, %cst_48 [2] : vector<2x8x8xf32> to vector<2x8xf32>
    %137 = vector.shape_cast %136 : vector<2x8xf32> to vector<2x8x1xf32>
    %138 = vector.broadcast %137 : vector<2x8x1xf32> to vector<2x8x8xf32>
    %139 = arith.subf %135, %138 : vector<2x8x8xf32>
    %140 = math.exp %139 : vector<2x8x8xf32>
    %cst_49 = arith.constant dense<0.000000e+00> : vector<2x8xf32>
    %141 = vector.multi_reduction <add>, %140, %cst_49 [2] : vector<2x8x8xf32> to vector<2x8xf32>
    %142 = vector.shape_cast %141 : vector<2x8xf32> to vector<2x8x1xf32>
    %143 = tpu.reciprocal %142 {approx = true} : vector<2x8x1xf32> -> vector<2x8x1xf32>
    %144 = vector.broadcast %143 : vector<2x8x1xf32> to vector<2x8x8xf32>
    %145 = arith.mulf %140, %144 : vector<2x8x8xf32>
    %146 = arith.truncf %145 : vector<2x8x8xf32> to vector<2x8x8xbf16>
    "tpu.trace_start"() <{level = 10 : i32, message = "bqk,bkh->bqh"}> : () -> ()
    %cst_50 = arith.constant dense<0.000000e+00> : vector<2x8x32xf32>
    %147 = tpu.matmul %146, %130, %cst_50 {dimension_numbers = #tpu.dot_dimension_numbers<[2], [1], [1], [2], [0, 0, 0, 1, 1, 2], [0], [0]>} : vector<2x8x8xbf16>, vector<2x8x32xbf16>, vector<2x8x32xf32> -> vector<2x8x32xf32>
    "tpu.trace_stop"() : () -> ()
    %148 = tpu.concatenate %87, %107, %127, %147 in 2 : vector<2x8x32xf32>, vector<2x8x32xf32>, vector<2x8x32xf32>, vector<2x8x32xf32> -> vector<2x8x128xf32>
    %149 = vector.shape_cast %148 : vector<2x8x128xf32> to vector<16x128xf32>
    %150 = arith.truncf %149 : vector<16x128xf32> to vector<16x128xbf16>
    %c0_51 = arith.constant 0 : index
    %c0_52 = arith.constant 0 : index
    %c0_53 = arith.constant 0 : index
    %151 = vector.load %arg10[%c0_51, %c0_52, %c0_53] : memref<2x128x128xbf16, #tpu.memory_space<vmem>>, vector<1x128x128xbf16>
    %152 = vector.shape_cast %151 : vector<1x128x128xbf16> to vector<128x128xbf16>
    %cst_54 = arith.constant dense<0.000000e+00> : vector<16x128xf32>
    %153 = tpu.matmul %150, %152, %cst_54 {dimension_numbers = #tpu.dot_dimension_numbers<[1], [0], [0], [1], [0, 0, 1, 1], [], []>} : vector<16x128xbf16>, vector<128x128xbf16>, vector<16x128xf32> -> vector<16x128xf32>
    %c0_55 = arith.constant 0 : index
    %c0_56 = arith.constant 0 : index
    %c0_57 = arith.constant 0 : index
    %154 = vector.load %arg11[%c0_55, %c0_56, %c0_57] : memref<2x1x128xf32, #tpu.memory_space<vmem>>, vector<1x1x128xf32>
    %155 = vector.shape_cast %154 : vector<1x1x128xf32> to vector<1x128xf32>
    %156 = vector.broadcast %155 : vector<1x128xf32> to vector<16x128xf32>
    %157 = arith.addf %153, %156 : vector<16x128xf32>
    %158 = arith.addf %18, %157 : vector<16x128xf32>
    %c0_58 = arith.constant 0 : index
    %c0_59 = arith.constant 0 : index
    %c0_60 = arith.constant 0 : index
    %159 = vector.load %arg12[%c0_58, %c0_59, %c0_60] : memref<2x1x128xf32, #tpu.memory_space<vmem>>, vector<1x1x128xf32>
    %160 = vector.shape_cast %159 : vector<1x1x128xf32> to vector<1x128xf32>
    %c0_61 = arith.constant 0 : index
    %c0_62 = arith.constant 0 : index
    %c0_63 = arith.constant 0 : index
    %161 = vector.load %arg13[%c0_61, %c0_62, %c0_63] : memref<2x1x128xf32, #tpu.memory_space<vmem>>, vector<1x1x128xf32>
    %162 = vector.shape_cast %161 : vector<1x1x128xf32> to vector<1x128xf32>
    %cst_64 = arith.constant dense<0.000000e+00> : vector<16xf32>
    %163 = vector.multi_reduction <add>, %158, %cst_64 [1] : vector<16x128xf32> to vector<16xf32>
    %164 = vector.shape_cast %163 : vector<16xf32> to vector<16x1xf32>
    %cst_65 = arith.constant 1.280000e+02 : f32
    %165 = vector.broadcast %cst_65 : f32 to vector<16x1xf32>
    %166 = arith.divf %164, %165 : vector<16x1xf32>
    %167 = vector.broadcast %166 : vector<16x1xf32> to vector<16x128xf32>
    %168 = arith.subf %158, %167 : vector<16x128xf32>
    %169 = arith.mulf %168, %168 : vector<16x128xf32>
    %cst_66 = arith.constant dense<0.000000e+00> : vector<16xf32>
    %170 = vector.multi_reduction <add>, %169, %cst_66 [1] : vector<16x128xf32> to vector<16xf32>
    %171 = vector.shape_cast %170 : vector<16xf32> to vector<16x1xf32>
    %cst_67 = arith.constant 1.280000e+02 : f32
    %172 = vector.broadcast %cst_67 : f32 to vector<16x1xf32>
    %173 = arith.divf %171, %172 : vector<16x1xf32>
    %174 = vector.broadcast %166 : vector<16x1xf32> to vector<16x128xf32>
    %175 = arith.subf %158, %174 : vector<16x128xf32>
    %cst_68 = arith.constant 9.99999997E-7 : f32
    %176 = vector.broadcast %cst_68 : f32 to vector<16x1xf32>
    %177 = arith.addf %173, %176 : vector<16x1xf32>
    %178 = math.rsqrt %177 : vector<16x1xf32>
    %179 = vector.broadcast %178 : vector<16x1xf32> to vector<16x128xf32>
    %180 = arith.mulf %175, %179 : vector<16x128xf32>
    %181 = vector.broadcast %160 : vector<1x128xf32> to vector<16x128xf32>
    %182 = arith.mulf %180, %181 : vector<16x128xf32>
    %183 = vector.broadcast %162 : vector<1x128xf32> to vector<16x128xf32>
    %184 = arith.addf %182, %183 : vector<16x128xf32>
    %185 = arith.truncf %184 : vector<16x128xf32> to vector<16x128xbf16>
    %c0_69 = arith.constant 0 : index
    %c0_70 = arith.constant 0 : index
    %c0_71 = arith.constant 0 : index
    %186 = vector.load %arg14[%c0_69, %c0_70, %c0_71] : memref<2x128x512xbf16, #tpu.memory_space<vmem>>, vector<1x128x512xbf16>
    %187 = vector.shape_cast %186 : vector<1x128x512xbf16> to vector<128x512xbf16>
    %cst_72 = arith.constant dense<0.000000e+00> : vector<16x512xf32>
    %188 = tpu.matmul %185, %187, %cst_72 {dimension_numbers = #tpu.dot_dimension_numbers<[1], [0], [0], [1], [0, 0, 1, 1], [], []>} : vector<16x128xbf16>, vector<128x512xbf16>, vector<16x512xf32> -> vector<16x512xf32>
    %c0_73 = arith.constant 0 : index
    %c0_74 = arith.constant 0 : index
    %c0_75 = arith.constant 0 : index
    %189 = vector.load %arg15[%c0_73, %c0_74, %c0_75] : memref<2x1x512xf32, #tpu.memory_space<vmem>>, vector<1x1x512xf32>
    %190 = vector.shape_cast %189 : vector<1x1x512xf32> to vector<1x512xf32>
    %191 = vector.broadcast %190 : vector<1x512xf32> to vector<16x512xf32>
    %192 = arith.addf %188, %191 : vector<16x512xf32>
    %193 = arith.mulf %192, %192 : vector<16x512xf32>
    %194 = arith.mulf %192, %193 : vector<16x512xf32>
    %cst_76 = arith.constant 4.471500e-02 : f32
    %195 = vector.broadcast %cst_76 : f32 to vector<16x512xf32>
    %196 = arith.mulf %195, %194 : vector<16x512xf32>
    %197 = arith.addf %192, %196 : vector<16x512xf32>
    %cst_77 = arith.constant 0.797884583 : f32
    %198 = vector.broadcast %cst_77 : f32 to vector<16x512xf32>
    %199 = arith.mulf %198, %197 : vector<16x512xf32>
    %200 = math.tanh %199 : vector<16x512xf32>
    %cst_78 = arith.constant 1.000000e+00 : f32
    %201 = vector.broadcast %cst_78 : f32 to vector<16x512xf32>
    %202 = arith.addf %201, %200 : vector<16x512xf32>
    %cst_79 = arith.constant 5.000000e-01 : f32
    %203 = vector.broadcast %cst_79 : f32 to vector<16x512xf32>
    %204 = arith.mulf %203, %202 : vector<16x512xf32>
    %205 = arith.mulf %192, %204 : vector<16x512xf32>
    %206 = arith.truncf %205 : vector<16x512xf32> to vector<16x512xbf16>
    %c0_80 = arith.constant 0 : index
    %c0_81 = arith.constant 0 : index
    %c0_82 = arith.constant 0 : index
    %207 = vector.load %arg16[%c0_80, %c0_81, %c0_82] : memref<2x512x128xbf16, #tpu.memory_space<vmem>>, vector<1x512x128xbf16>
    %208 = vector.shape_cast %207 : vector<1x512x128xbf16> to vector<512x128xbf16>
    %cst_83 = arith.constant dense<0.000000e+00> : vector<16x128xf32>
    %209 = tpu.matmul %206, %208, %cst_83 {dimension_numbers = #tpu.dot_dimension_numbers<[1], [0], [0], [1], [0, 0, 1, 1], [], []>} : vector<16x512xbf16>, vector<512x128xbf16>, vector<16x128xf32> -> vector<16x128xf32>
    %c0_84 = arith.constant 0 : index
    %c0_85 = arith.constant 0 : index
    %c0_86 = arith.constant 0 : index
    %210 = vector.load %arg17[%c0_84, %c0_85, %c0_86] : memref<2x1x128xf32, #tpu.memory_space<vmem>>, vector<1x1x128xf32>
    %211 = vector.shape_cast %210 : vector<1x1x128xf32> to vector<1x128xf32>
    %212 = vector.broadcast %211 : vector<1x128xf32> to vector<16x128xf32>
    %213 = arith.addf %209, %212 : vector<16x128xf32>
    %214 = arith.addf %158, %213 : vector<16x128xf32>
    %c1 = arith.constant 1 : index
    %c0_87 = arith.constant 0 : index
    %c0_88 = arith.constant 0 : index
    %215 = vector.load %arg6[%c1, %c0_87, %c0_88] : memref<2x1x128xf32, #tpu.memory_space<vmem>>, vector<1x1x128xf32>
    %216 = vector.shape_cast %215 : vector<1x1x128xf32> to vector<1x128xf32>
    %c1_89 = arith.constant 1 : index
    %c0_90 = arith.constant 0 : index
    %c0_91 = arith.constant 0 : index
    %217 = vector.load %arg7[%c1_89, %c0_90, %c0_91] : memref<2x1x128xf32, #tpu.memory_space<vmem>>, vector<1x1x128xf32>
    %218 = vector.shape_cast %217 : vector<1x1x128xf32> to vector<1x128xf32>
    %cst_92 = arith.constant dense<0.000000e+00> : vector<16xf32>
    %219 = vector.multi_reduction <add>, %214, %cst_92 [1] : vector<16x128xf32> to vector<16xf32>
    %220 = vector.shape_cast %219 : vector<16xf32> to vector<16x1xf32>
    %cst_93 = arith.constant 1.280000e+02 : f32
    %221 = vector.broadcast %cst_93 : f32 to vector<16x1xf32>
    %222 = arith.divf %220, %221 : vector<16x1xf32>
    %223 = vector.broadcast %222 : vector<16x1xf32> to vector<16x128xf32>
    %224 = arith.subf %214, %223 : vector<16x128xf32>
    %225 = arith.mulf %224, %224 : vector<16x128xf32>
    %cst_94 = arith.constant dense<0.000000e+00> : vector<16xf32>
    %226 = vector.multi_reduction <add>, %225, %cst_94 [1] : vector<16x128xf32> to vector<16xf32>
    %227 = vector.shape_cast %226 : vector<16xf32> to vector<16x1xf32>
    %cst_95 = arith.constant 1.280000e+02 : f32
    %228 = vector.broadcast %cst_95 : f32 to vector<16x1xf32>
    %229 = arith.divf %227, %228 : vector<16x1xf32>
    %230 = vector.broadcast %222 : vector<16x1xf32> to vector<16x128xf32>
    %231 = arith.subf %214, %230 : vector<16x128xf32>
    %cst_96 = arith.constant 9.99999997E-7 : f32
    %232 = vector.broadcast %cst_96 : f32 to vector<16x1xf32>
    %233 = arith.addf %229, %232 : vector<16x1xf32>
    %234 = math.rsqrt %233 : vector<16x1xf32>
    %235 = vector.broadcast %234 : vector<16x1xf32> to vector<16x128xf32>
    %236 = arith.mulf %231, %235 : vector<16x128xf32>
    %237 = vector.broadcast %216 : vector<1x128xf32> to vector<16x128xf32>
    %238 = arith.mulf %236, %237 : vector<16x128xf32>
    %239 = vector.broadcast %218 : vector<1x128xf32> to vector<16x128xf32>
    %240 = arith.addf %238, %239 : vector<16x128xf32>
    %241 = arith.truncf %240 : vector<16x128xf32> to vector<16x128xbf16>
    %c1_97 = arith.constant 1 : index
    %c0_98 = arith.constant 0 : index
    %c0_99 = arith.constant 0 : index
    %242 = vector.load %arg8[%c1_97, %c0_98, %c0_99] : memref<2x128x384xbf16, #tpu.memory_space<vmem>>, vector<1x128x384xbf16>
    %243 = vector.shape_cast %242 : vector<1x128x384xbf16> to vector<128x384xbf16>
    %cst_100 = arith.constant dense<0.000000e+00> : vector<16x384xf32>
    %244 = tpu.matmul %241, %243, %cst_100 {dimension_numbers = #tpu.dot_dimension_numbers<[1], [0], [0], [1], [0, 0, 1, 1], [], []>} : vector<16x128xbf16>, vector<128x384xbf16>, vector<16x384xf32> -> vector<16x384xf32>
    %c1_101 = arith.constant 1 : index
    %c0_102 = arith.constant 0 : index
    %c0_103 = arith.constant 0 : index
    %245 = vector.load %arg9[%c1_101, %c0_102, %c0_103] : memref<2x1x384xf32, #tpu.memory_space<vmem>>, vector<1x1x384xf32>
    %246 = vector.shape_cast %245 : vector<1x1x384xf32> to vector<1x384xf32>
    %247 = vector.broadcast %246 : vector<1x384xf32> to vector<16x384xf32>
    %248 = arith.addf %244, %247 : vector<16x384xf32>
    %249 = vector.extract_strided_slice %248 {offsets = [0, 0], sizes = [16, 128], strides = [1, 1]} : vector<16x384xf32> to vector<16x128xf32>
    %250 = arith.truncf %249 : vector<16x128xf32> to vector<16x128xbf16>
    %251 = vector.shape_cast %250 : vector<16x128xbf16> to vector<2x8x128xbf16>
    %252 = vector.extract_strided_slice %248 {offsets = [0, 128], sizes = [16, 128], strides = [1, 1]} : vector<16x384xf32> to vector<16x128xf32>
    %253 = arith.truncf %252 : vector<16x128xf32> to vector<16x128xbf16>
    %254 = vector.shape_cast %253 : vector<16x128xbf16> to vector<2x8x128xbf16>
    %255 = vector.extract_strided_slice %248 {offsets = [0, 256], sizes = [16, 128], strides = [1, 1]} : vector<16x384xf32> to vector<16x128xf32>
    %256 = arith.truncf %255 : vector<16x128xf32> to vector<16x128xbf16>
    %257 = vector.shape_cast %256 : vector<16x128xbf16> to vector<2x8x128xbf16>
    %258 = vector.extract_strided_slice %251 {offsets = [0, 0, 0], sizes = [2, 8, 32], strides = [1, 1, 1]} : vector<2x8x128xbf16> to vector<2x8x32xbf16>
    %259 = vector.extract_strided_slice %254 {offsets = [0, 0, 0], sizes = [2, 8, 32], strides = [1, 1, 1]} : vector<2x8x128xbf16> to vector<2x8x32xbf16>
    %260 = vector.extract_strided_slice %257 {offsets = [0, 0, 0], sizes = [2, 8, 32], strides = [1, 1, 1]} : vector<2x8x128xbf16> to vector<2x8x32xbf16>
    "tpu.trace_start"() <{level = 10 : i32, message = "bqh,bkh->bqk"}> : () -> ()
    %cst_104 = arith.constant dense<0.000000e+00> : vector<2x8x8xf32>
    %261 = tpu.matmul %258, %259, %cst_104 {dimension_numbers = #tpu.dot_dimension_numbers<[2], [2], [1], [1], [0, 0, 0, 1, 1, 1], [0], [0]>} : vector<2x8x32xbf16>, vector<2x8x32xbf16>, vector<2x8x8xf32> -> vector<2x8x8xf32>
    "tpu.trace_stop"() : () -> ()
    %cst_105 = arith.constant 0.176776692 : f32
    %262 = vector.broadcast %cst_105 : f32 to vector<2x8x8xf32>
    %263 = arith.mulf %261, %262 : vector<2x8x8xf32>
    %264 = vector.broadcast %24 : vector<1x1x8xf32> to vector<2x8x8xf32>
    %265 = arith.addf %263, %264 : vector<2x8x8xf32>
    %cst_106 = arith.constant dense<0xFF800000> : vector<2x8xf32>
    %266 = vector.multi_reduction <maximumf>, %265, %cst_106 [2] : vector<2x8x8xf32> to vector<2x8xf32>
    %267 = vector.shape_cast %266 : vector<2x8xf32> to vector<2x8x1xf32>
    %268 = vector.broadcast %267 : vector<2x8x1xf32> to vector<2x8x8xf32>
    %269 = arith.subf %265, %268 : vector<2x8x8xf32>
    %270 = math.exp %269 : vector<2x8x8xf32>
    %cst_107 = arith.constant dense<0.000000e+00> : vector<2x8xf32>
    %271 = vector.multi_reduction <add>, %270, %cst_107 [2] : vector<2x8x8xf32> to vector<2x8xf32>
    %272 = vector.shape_cast %271 : vector<2x8xf32> to vector<2x8x1xf32>
    %273 = tpu.reciprocal %272 {approx = true} : vector<2x8x1xf32> -> vector<2x8x1xf32>
    %274 = vector.broadcast %273 : vector<2x8x1xf32> to vector<2x8x8xf32>
    %275 = arith.mulf %270, %274 : vector<2x8x8xf32>
    %276 = arith.truncf %275 : vector<2x8x8xf32> to vector<2x8x8xbf16>
    "tpu.trace_start"() <{level = 10 : i32, message = "bqk,bkh->bqh"}> : () -> ()
    %cst_108 = arith.constant dense<0.000000e+00> : vector<2x8x32xf32>
    %277 = tpu.matmul %276, %260, %cst_108 {dimension_numbers = #tpu.dot_dimension_numbers<[2], [1], [1], [2], [0, 0, 0, 1, 1, 2], [0], [0]>} : vector<2x8x8xbf16>, vector<2x8x32xbf16>, vector<2x8x32xf32> -> vector<2x8x32xf32>
    "tpu.trace_stop"() : () -> ()
    %278 = vector.extract_strided_slice %251 {offsets = [0, 0, 32], sizes = [2, 8, 32], strides = [1, 1, 1]} : vector<2x8x128xbf16> to vector<2x8x32xbf16>
    %279 = vector.extract_strided_slice %254 {offsets = [0, 0, 32], sizes = [2, 8, 32], strides = [1, 1, 1]} : vector<2x8x128xbf16> to vector<2x8x32xbf16>
    %280 = vector.extract_strided_slice %257 {offsets = [0, 0, 32], sizes = [2, 8, 32], strides = [1, 1, 1]} : vector<2x8x128xbf16> to vector<2x8x32xbf16>
    "tpu.trace_start"() <{level = 10 : i32, message = "bqh,bkh->bqk"}> : () -> ()
    %cst_109 = arith.constant dense<0.000000e+00> : vector<2x8x8xf32>
    %281 = tpu.matmul %278, %279, %cst_109 {dimension_numbers = #tpu.dot_dimension_numbers<[2], [2], [1], [1], [0, 0, 0, 1, 1, 1], [0], [0]>} : vector<2x8x32xbf16>, vector<2x8x32xbf16>, vector<2x8x8xf32> -> vector<2x8x8xf32>
    "tpu.trace_stop"() : () -> ()
    %cst_110 = arith.constant 0.176776692 : f32
    %282 = vector.broadcast %cst_110 : f32 to vector<2x8x8xf32>
    %283 = arith.mulf %281, %282 : vector<2x8x8xf32>
    %284 = vector.broadcast %24 : vector<1x1x8xf32> to vector<2x8x8xf32>
    %285 = arith.addf %283, %284 : vector<2x8x8xf32>
    %cst_111 = arith.constant dense<0xFF800000> : vector<2x8xf32>
    %286 = vector.multi_reduction <maximumf>, %285, %cst_111 [2] : vector<2x8x8xf32> to vector<2x8xf32>
    %287 = vector.shape_cast %286 : vector<2x8xf32> to vector<2x8x1xf32>
    %288 = vector.broadcast %287 : vector<2x8x1xf32> to vector<2x8x8xf32>
    %289 = arith.subf %285, %288 : vector<2x8x8xf32>
    %290 = math.exp %289 : vector<2x8x8xf32>
    %cst_112 = arith.constant dense<0.000000e+00> : vector<2x8xf32>
    %291 = vector.multi_reduction <add>, %290, %cst_112 [2] : vector<2x8x8xf32> to vector<2x8xf32>
    %292 = vector.shape_cast %291 : vector<2x8xf32> to vector<2x8x1xf32>
    %293 = tpu.reciprocal %292 {approx = true} : vector<2x8x1xf32> -> vector<2x8x1xf32>
    %294 = vector.broadcast %293 : vector<2x8x1xf32> to vector<2x8x8xf32>
    %295 = arith.mulf %290, %294 : vector<2x8x8xf32>
    %296 = arith.truncf %295 : vector<2x8x8xf32> to vector<2x8x8xbf16>
    "tpu.trace_start"() <{level = 10 : i32, message = "bqk,bkh->bqh"}> : () -> ()
    %cst_113 = arith.constant dense<0.000000e+00> : vector<2x8x32xf32>
    %297 = tpu.matmul %296, %280, %cst_113 {dimension_numbers = #tpu.dot_dimension_numbers<[2], [1], [1], [2], [0, 0, 0, 1, 1, 2], [0], [0]>} : vector<2x8x8xbf16>, vector<2x8x32xbf16>, vector<2x8x32xf32> -> vector<2x8x32xf32>
    "tpu.trace_stop"() : () -> ()
    %298 = vector.extract_strided_slice %251 {offsets = [0, 0, 64], sizes = [2, 8, 32], strides = [1, 1, 1]} : vector<2x8x128xbf16> to vector<2x8x32xbf16>
    %299 = vector.extract_strided_slice %254 {offsets = [0, 0, 64], sizes = [2, 8, 32], strides = [1, 1, 1]} : vector<2x8x128xbf16> to vector<2x8x32xbf16>
    %300 = vector.extract_strided_slice %257 {offsets = [0, 0, 64], sizes = [2, 8, 32], strides = [1, 1, 1]} : vector<2x8x128xbf16> to vector<2x8x32xbf16>
    "tpu.trace_start"() <{level = 10 : i32, message = "bqh,bkh->bqk"}> : () -> ()
    %cst_114 = arith.constant dense<0.000000e+00> : vector<2x8x8xf32>
    %301 = tpu.matmul %298, %299, %cst_114 {dimension_numbers = #tpu.dot_dimension_numbers<[2], [2], [1], [1], [0, 0, 0, 1, 1, 1], [0], [0]>} : vector<2x8x32xbf16>, vector<2x8x32xbf16>, vector<2x8x8xf32> -> vector<2x8x8xf32>
    "tpu.trace_stop"() : () -> ()
    %cst_115 = arith.constant 0.176776692 : f32
    %302 = vector.broadcast %cst_115 : f32 to vector<2x8x8xf32>
    %303 = arith.mulf %301, %302 : vector<2x8x8xf32>
    %304 = vector.broadcast %24 : vector<1x1x8xf32> to vector<2x8x8xf32>
    %305 = arith.addf %303, %304 : vector<2x8x8xf32>
    %cst_116 = arith.constant dense<0xFF800000> : vector<2x8xf32>
    %306 = vector.multi_reduction <maximumf>, %305, %cst_116 [2] : vector<2x8x8xf32> to vector<2x8xf32>
    %307 = vector.shape_cast %306 : vector<2x8xf32> to vector<2x8x1xf32>
    %308 = vector.broadcast %307 : vector<2x8x1xf32> to vector<2x8x8xf32>
    %309 = arith.subf %305, %308 : vector<2x8x8xf32>
    %310 = math.exp %309 : vector<2x8x8xf32>
    %cst_117 = arith.constant dense<0.000000e+00> : vector<2x8xf32>
    %311 = vector.multi_reduction <add>, %310, %cst_117 [2] : vector<2x8x8xf32> to vector<2x8xf32>
    %312 = vector.shape_cast %311 : vector<2x8xf32> to vector<2x8x1xf32>
    %313 = tpu.reciprocal %312 {approx = true} : vector<2x8x1xf32> -> vector<2x8x1xf32>
    %314 = vector.broadcast %313 : vector<2x8x1xf32> to vector<2x8x8xf32>
    %315 = arith.mulf %310, %314 : vector<2x8x8xf32>
    %316 = arith.truncf %315 : vector<2x8x8xf32> to vector<2x8x8xbf16>
    "tpu.trace_start"() <{level = 10 : i32, message = "bqk,bkh->bqh"}> : () -> ()
    %cst_118 = arith.constant dense<0.000000e+00> : vector<2x8x32xf32>
    %317 = tpu.matmul %316, %300, %cst_118 {dimension_numbers = #tpu.dot_dimension_numbers<[2], [1], [1], [2], [0, 0, 0, 1, 1, 2], [0], [0]>} : vector<2x8x8xbf16>, vector<2x8x32xbf16>, vector<2x8x32xf32> -> vector<2x8x32xf32>
    "tpu.trace_stop"() : () -> ()
    %318 = vector.extract_strided_slice %251 {offsets = [0, 0, 96], sizes = [2, 8, 32], strides = [1, 1, 1]} : vector<2x8x128xbf16> to vector<2x8x32xbf16>
    %319 = vector.extract_strided_slice %254 {offsets = [0, 0, 96], sizes = [2, 8, 32], strides = [1, 1, 1]} : vector<2x8x128xbf16> to vector<2x8x32xbf16>
    %320 = vector.extract_strided_slice %257 {offsets = [0, 0, 96], sizes = [2, 8, 32], strides = [1, 1, 1]} : vector<2x8x128xbf16> to vector<2x8x32xbf16>
    "tpu.trace_start"() <{level = 10 : i32, message = "bqh,bkh->bqk"}> : () -> ()
    %cst_119 = arith.constant dense<0.000000e+00> : vector<2x8x8xf32>
    %321 = tpu.matmul %318, %319, %cst_119 {dimension_numbers = #tpu.dot_dimension_numbers<[2], [2], [1], [1], [0, 0, 0, 1, 1, 1], [0], [0]>} : vector<2x8x32xbf16>, vector<2x8x32xbf16>, vector<2x8x8xf32> -> vector<2x8x8xf32>
    "tpu.trace_stop"() : () -> ()
    %cst_120 = arith.constant 0.176776692 : f32
    %322 = vector.broadcast %cst_120 : f32 to vector<2x8x8xf32>
    %323 = arith.mulf %321, %322 : vector<2x8x8xf32>
    %324 = vector.broadcast %24 : vector<1x1x8xf32> to vector<2x8x8xf32>
    %325 = arith.addf %323, %324 : vector<2x8x8xf32>
    %cst_121 = arith.constant dense<0xFF800000> : vector<2x8xf32>
    %326 = vector.multi_reduction <maximumf>, %325, %cst_121 [2] : vector<2x8x8xf32> to vector<2x8xf32>
    %327 = vector.shape_cast %326 : vector<2x8xf32> to vector<2x8x1xf32>
    %328 = vector.broadcast %327 : vector<2x8x1xf32> to vector<2x8x8xf32>
    %329 = arith.subf %325, %328 : vector<2x8x8xf32>
    %330 = math.exp %329 : vector<2x8x8xf32>
    %cst_122 = arith.constant dense<0.000000e+00> : vector<2x8xf32>
    %331 = vector.multi_reduction <add>, %330, %cst_122 [2] : vector<2x8x8xf32> to vector<2x8xf32>
    %332 = vector.shape_cast %331 : vector<2x8xf32> to vector<2x8x1xf32>
    %333 = tpu.reciprocal %332 {approx = true} : vector<2x8x1xf32> -> vector<2x8x1xf32>
    %334 = vector.broadcast %333 : vector<2x8x1xf32> to vector<2x8x8xf32>
    %335 = arith.mulf %330, %334 : vector<2x8x8xf32>
    %336 = arith.truncf %335 : vector<2x8x8xf32> to vector<2x8x8xbf16>
    "tpu.trace_start"() <{level = 10 : i32, message = "bqk,bkh->bqh"}> : () -> ()
    %cst_123 = arith.constant dense<0.000000e+00> : vector<2x8x32xf32>
    %337 = tpu.matmul %336, %320, %cst_123 {dimension_numbers = #tpu.dot_dimension_numbers<[2], [1], [1], [2], [0, 0, 0, 1, 1, 2], [0], [0]>} : vector<2x8x8xbf16>, vector<2x8x32xbf16>, vector<2x8x32xf32> -> vector<2x8x32xf32>
    "tpu.trace_stop"() : () -> ()
    %338 = tpu.concatenate %277, %297, %317, %337 in 2 : vector<2x8x32xf32>, vector<2x8x32xf32>, vector<2x8x32xf32>, vector<2x8x32xf32> -> vector<2x8x128xf32>
    %339 = vector.shape_cast %338 : vector<2x8x128xf32> to vector<16x128xf32>
    %340 = arith.truncf %339 : vector<16x128xf32> to vector<16x128xbf16>
    %c1_124 = arith.constant 1 : index
    %c0_125 = arith.constant 0 : index
    %c0_126 = arith.constant 0 : index
    %341 = vector.load %arg10[%c1_124, %c0_125, %c0_126] : memref<2x128x128xbf16, #tpu.memory_space<vmem>>, vector<1x128x128xbf16>
    %342 = vector.shape_cast %341 : vector<1x128x128xbf16> to vector<128x128xbf16>
    %cst_127 = arith.constant dense<0.000000e+00> : vector<16x128xf32>
    %343 = tpu.matmul %340, %342, %cst_127 {dimension_numbers = #tpu.dot_dimension_numbers<[1], [0], [0], [1], [0, 0, 1, 1], [], []>} : vector<16x128xbf16>, vector<128x128xbf16>, vector<16x128xf32> -> vector<16x128xf32>
    %c1_128 = arith.constant 1 : index
    %c0_129 = arith.constant 0 : index
    %c0_130 = arith.constant 0 : index
    %344 = vector.load %arg11[%c1_128, %c0_129, %c0_130] : memref<2x1x128xf32, #tpu.memory_space<vmem>>, vector<1x1x128xf32>
    %345 = vector.shape_cast %344 : vector<1x1x128xf32> to vector<1x128xf32>
    %346 = vector.broadcast %345 : vector<1x128xf32> to vector<16x128xf32>
    %347 = arith.addf %343, %346 : vector<16x128xf32>
    %348 = arith.addf %214, %347 : vector<16x128xf32>
    %c1_131 = arith.constant 1 : index
    %c0_132 = arith.constant 0 : index
    %c0_133 = arith.constant 0 : index
    %349 = vector.load %arg12[%c1_131, %c0_132, %c0_133] : memref<2x1x128xf32, #tpu.memory_space<vmem>>, vector<1x1x128xf32>
    %350 = vector.shape_cast %349 : vector<1x1x128xf32> to vector<1x128xf32>
    %c1_134 = arith.constant 1 : index
    %c0_135 = arith.constant 0 : index
    %c0_136 = arith.constant 0 : index
    %351 = vector.load %arg13[%c1_134, %c0_135, %c0_136] : memref<2x1x128xf32, #tpu.memory_space<vmem>>, vector<1x1x128xf32>
    %352 = vector.shape_cast %351 : vector<1x1x128xf32> to vector<1x128xf32>
    %cst_137 = arith.constant dense<0.000000e+00> : vector<16xf32>
    %353 = vector.multi_reduction <add>, %348, %cst_137 [1] : vector<16x128xf32> to vector<16xf32>
    %354 = vector.shape_cast %353 : vector<16xf32> to vector<16x1xf32>
    %cst_138 = arith.constant 1.280000e+02 : f32
    %355 = vector.broadcast %cst_138 : f32 to vector<16x1xf32>
    %356 = arith.divf %354, %355 : vector<16x1xf32>
    %357 = vector.broadcast %356 : vector<16x1xf32> to vector<16x128xf32>
    %358 = arith.subf %348, %357 : vector<16x128xf32>
    %359 = arith.mulf %358, %358 : vector<16x128xf32>
    %cst_139 = arith.constant dense<0.000000e+00> : vector<16xf32>
    %360 = vector.multi_reduction <add>, %359, %cst_139 [1] : vector<16x128xf32> to vector<16xf32>
    %361 = vector.shape_cast %360 : vector<16xf32> to vector<16x1xf32>
    %cst_140 = arith.constant 1.280000e+02 : f32
    %362 = vector.broadcast %cst_140 : f32 to vector<16x1xf32>
    %363 = arith.divf %361, %362 : vector<16x1xf32>
    %364 = vector.broadcast %356 : vector<16x1xf32> to vector<16x128xf32>
    %365 = arith.subf %348, %364 : vector<16x128xf32>
    %cst_141 = arith.constant 9.99999997E-7 : f32
    %366 = vector.broadcast %cst_141 : f32 to vector<16x1xf32>
    %367 = arith.addf %363, %366 : vector<16x1xf32>
    %368 = math.rsqrt %367 : vector<16x1xf32>
    %369 = vector.broadcast %368 : vector<16x1xf32> to vector<16x128xf32>
    %370 = arith.mulf %365, %369 : vector<16x128xf32>
    %371 = vector.broadcast %350 : vector<1x128xf32> to vector<16x128xf32>
    %372 = arith.mulf %370, %371 : vector<16x128xf32>
    %373 = vector.broadcast %352 : vector<1x128xf32> to vector<16x128xf32>
    %374 = arith.addf %372, %373 : vector<16x128xf32>
    %375 = arith.truncf %374 : vector<16x128xf32> to vector<16x128xbf16>
    %c1_142 = arith.constant 1 : index
    %c0_143 = arith.constant 0 : index
    %c0_144 = arith.constant 0 : index
    %376 = vector.load %arg14[%c1_142, %c0_143, %c0_144] : memref<2x128x512xbf16, #tpu.memory_space<vmem>>, vector<1x128x512xbf16>
    %377 = vector.shape_cast %376 : vector<1x128x512xbf16> to vector<128x512xbf16>
    %cst_145 = arith.constant dense<0.000000e+00> : vector<16x512xf32>
    %378 = tpu.matmul %375, %377, %cst_145 {dimension_numbers = #tpu.dot_dimension_numbers<[1], [0], [0], [1], [0, 0, 1, 1], [], []>} : vector<16x128xbf16>, vector<128x512xbf16>, vector<16x512xf32> -> vector<16x512xf32>
    %c1_146 = arith.constant 1 : index
    %c0_147 = arith.constant 0 : index
    %c0_148 = arith.constant 0 : index
    %379 = vector.load %arg15[%c1_146, %c0_147, %c0_148] : memref<2x1x512xf32, #tpu.memory_space<vmem>>, vector<1x1x512xf32>
    %380 = vector.shape_cast %379 : vector<1x1x512xf32> to vector<1x512xf32>
    %381 = vector.broadcast %380 : vector<1x512xf32> to vector<16x512xf32>
    %382 = arith.addf %378, %381 : vector<16x512xf32>
    %383 = arith.mulf %382, %382 : vector<16x512xf32>
    %384 = arith.mulf %382, %383 : vector<16x512xf32>
    %cst_149 = arith.constant 4.471500e-02 : f32
    %385 = vector.broadcast %cst_149 : f32 to vector<16x512xf32>
    %386 = arith.mulf %385, %384 : vector<16x512xf32>
    %387 = arith.addf %382, %386 : vector<16x512xf32>
    %cst_150 = arith.constant 0.797884583 : f32
    %388 = vector.broadcast %cst_150 : f32 to vector<16x512xf32>
    %389 = arith.mulf %388, %387 : vector<16x512xf32>
    %390 = math.tanh %389 : vector<16x512xf32>
    %cst_151 = arith.constant 1.000000e+00 : f32
    %391 = vector.broadcast %cst_151 : f32 to vector<16x512xf32>
    %392 = arith.addf %391, %390 : vector<16x512xf32>
    %cst_152 = arith.constant 5.000000e-01 : f32
    %393 = vector.broadcast %cst_152 : f32 to vector<16x512xf32>
    %394 = arith.mulf %393, %392 : vector<16x512xf32>
    %395 = arith.mulf %382, %394 : vector<16x512xf32>
    %396 = arith.truncf %395 : vector<16x512xf32> to vector<16x512xbf16>
    %c1_153 = arith.constant 1 : index
    %c0_154 = arith.constant 0 : index
    %c0_155 = arith.constant 0 : index
    %397 = vector.load %arg16[%c1_153, %c0_154, %c0_155] : memref<2x512x128xbf16, #tpu.memory_space<vmem>>, vector<1x512x128xbf16>
    %398 = vector.shape_cast %397 : vector<1x512x128xbf16> to vector<512x128xbf16>
    %cst_156 = arith.constant dense<0.000000e+00> : vector<16x128xf32>
    %399 = tpu.matmul %396, %398, %cst_156 {dimension_numbers = #tpu.dot_dimension_numbers<[1], [0], [0], [1], [0, 0, 1, 1], [], []>} : vector<16x512xbf16>, vector<512x128xbf16>, vector<16x128xf32> -> vector<16x128xf32>
    %c1_157 = arith.constant 1 : index
    %c0_158 = arith.constant 0 : index
    %c0_159 = arith.constant 0 : index
    %400 = vector.load %arg17[%c1_157, %c0_158, %c0_159] : memref<2x1x128xf32, #tpu.memory_space<vmem>>, vector<1x1x128xf32>
    %401 = vector.shape_cast %400 : vector<1x1x128xf32> to vector<1x128xf32>
    %402 = vector.broadcast %401 : vector<1x128xf32> to vector<16x128xf32>
    %403 = arith.addf %399, %402 : vector<16x128xf32>
    %404 = arith.addf %348, %403 : vector<16x128xf32>
    %405 = vector.shape_cast %404 : vector<16x128xf32> to vector<2x8x128xf32>
    %406 = vector.extract_strided_slice %405 {offsets = [0, 0, 0], sizes = [2, 1, 128], strides = [1, 1, 1]} : vector<2x8x128xf32> to vector<2x1x128xf32>
    %407 = vector.shape_cast %406 : vector<2x1x128xf32> to vector<2x128xf32>
    %c0_160 = arith.constant 0 : index
    %c0_161 = arith.constant 0 : index
    %408 = vector.load %arg18[%c0_160, %c0_161] : memref<1x128xf32, #tpu.memory_space<vmem>>, vector<1x128xf32>
    %c0_162 = arith.constant 0 : index
    %c0_163 = arith.constant 0 : index
    %409 = vector.load %arg19[%c0_162, %c0_163] : memref<1x128xf32, #tpu.memory_space<vmem>>, vector<1x128xf32>
    %cst_164 = arith.constant dense<0.000000e+00> : vector<2xf32>
    %410 = vector.multi_reduction <add>, %407, %cst_164 [1] : vector<2x128xf32> to vector<2xf32>
    %411 = vector.shape_cast %410 : vector<2xf32> to vector<2x1xf32>
    %cst_165 = arith.constant 1.280000e+02 : f32
    %412 = vector.broadcast %cst_165 : f32 to vector<2x1xf32>
    %413 = arith.divf %411, %412 : vector<2x1xf32>
    %414 = vector.broadcast %413 : vector<2x1xf32> to vector<2x128xf32>
    %415 = arith.subf %407, %414 : vector<2x128xf32>
    %416 = arith.mulf %415, %415 : vector<2x128xf32>
    %cst_166 = arith.constant dense<0.000000e+00> : vector<2xf32>
    %417 = vector.multi_reduction <add>, %416, %cst_166 [1] : vector<2x128xf32> to vector<2xf32>
    %418 = vector.shape_cast %417 : vector<2xf32> to vector<2x1xf32>
    %cst_167 = arith.constant 1.280000e+02 : f32
    %419 = vector.broadcast %cst_167 : f32 to vector<2x1xf32>
    %420 = arith.divf %418, %419 : vector<2x1xf32>
    %421 = vector.broadcast %413 : vector<2x1xf32> to vector<2x128xf32>
    %422 = arith.subf %407, %421 : vector<2x128xf32>
    %cst_168 = arith.constant 9.99999997E-7 : f32
    %423 = vector.broadcast %cst_168 : f32 to vector<2x1xf32>
    %424 = arith.addf %420, %423 : vector<2x1xf32>
    %425 = math.rsqrt %424 : vector<2x1xf32>
    %426 = vector.broadcast %425 : vector<2x1xf32> to vector<2x128xf32>
    %427 = arith.mulf %422, %426 : vector<2x128xf32>
    %428 = vector.broadcast %408 : vector<1x128xf32> to vector<2x128xf32>
    %429 = arith.mulf %427, %428 : vector<2x128xf32>
    %430 = vector.broadcast %409 : vector<1x128xf32> to vector<2x128xf32>
    %431 = arith.addf %429, %430 : vector<2x128xf32>
    %432 = arith.mulf %431, %431 : vector<2x128xf32>
    %cst_169 = arith.constant dense<0.000000e+00> : vector<2xf32>
    %433 = vector.multi_reduction <add>, %432, %cst_169 [1] : vector<2x128xf32> to vector<2xf32>
    %434 = vector.shape_cast %433 : vector<2xf32> to vector<2x1xf32>
    %435 = math.sqrt %434 : vector<2x1xf32>
    %cst_170 = arith.constant 9.99999996E-13 : f32
    %436 = vector.broadcast %cst_170 : f32 to vector<2x1xf32>
    %437 = arith.maximumf %435, %436 : vector<2x1xf32>
    %438 = vector.broadcast %437 : vector<2x1xf32> to vector<2x128xf32>
    %439 = arith.divf %431, %438 : vector<2x128xf32>
    %c0_171 = arith.constant 0 : index
    %c0_172 = arith.constant 0 : index
    %440 = vector.load %arg20[%c0_171, %c0_172] : memref<128x128xf32, #tpu.memory_space<vmem>>, vector<128x128xf32>
    %cst_173 = arith.constant dense<0.000000e+00> : vector<2x128xf32>
    %441 = tpu.matmul %439, %440, %cst_173 {dimension_numbers = #tpu.dot_dimension_numbers<[1], [0], [0], [1], [0, 0, 1, 1], [], []>} : vector<2x128xf32>, vector<128x128xf32>, vector<2x128xf32> -> vector<2x128xf32>
    %c0_174 = arith.constant 0 : index
    %c0_175 = arith.constant 0 : index
    %442 = vector.load %arg21[%c0_174, %c0_175] : memref<2x128xf32, #tpu.memory_space<vmem>>, vector<2x128xf32>
    tpu.vector_store %arg21[%c0_174, %c0_175], %441 {strides = array<i32>} : memref<2x128xf32, #tpu.memory_space<vmem>>, vector<2x128xf32>,
    return
  }
  func.func @transform_0(%arg0: i32) -> (i32, i32, i32) {
    %c0_i32 = arith.constant 0 : i32
    %c0_i32_0 = arith.constant 0 : i32
    %c0_i32_1 = arith.constant 0 : i32
    return %arg0, %c0_i32, %c0_i32_0 : i32, i32, i32
  }
  func.func @transform_1(%arg0: i32) -> (i32, i32) {
    %c0_i32 = arith.constant 0 : i32
    %c0_i32_0 = arith.constant 0 : i32
    %c0_i32_1 = arith.constant 0 : i32
    return %c0_i32, %c0_i32_0 : i32, i32
  }
  func.func @transform_2(%arg0: i32) -> (i32, i32) {
    %c0_i32 = arith.constant 0 : i32
    %c0_i32_0 = arith.constant 0 : i32
    %c0_i32_1 = arith.constant 0 : i32
    return %c0_i32, %c0_i32_0 : i32, i32
  }
  func.func @transform_3(%arg0: i32) -> (i32, i32) {
    %c0_i32 = arith.constant 0 : i32
    %c0_i32_0 = arith.constant 0 : i32
    %c0_i32_1 = arith.constant 0 : i32
    return %c0_i32, %c0_i32_0 : i32, i32
  }
  func.func @transform_4(%arg0: i32) -> (i32, i32) {
    %c0_i32 = arith.constant 0 : i32
    %c0_i32_0 = arith.constant 0 : i32
    %c0_i32_1 = arith.constant 0 : i32
    return %c0_i32, %c0_i32_0 : i32, i32
  }
  func.func @transform_5(%arg0: i32) -> (i32, i32, i32) {
    %c0_i32 = arith.constant 0 : i32
    %c0_i32_0 = arith.constant 0 : i32
    %c0_i32_1 = arith.constant 0 : i32
    %c0_i32_2 = arith.constant 0 : i32
    return %c0_i32, %c0_i32_0, %c0_i32_1 : i32, i32, i32
  }
  func.func @transform_6(%arg0: i32) -> (i32, i32, i32) {
    %c0_i32 = arith.constant 0 : i32
    %c0_i32_0 = arith.constant 0 : i32
    %c0_i32_1 = arith.constant 0 : i32
    %c0_i32_2 = arith.constant 0 : i32
    return %c0_i32, %c0_i32_0, %c0_i32_1 : i32, i32, i32
  }
  func.func @transform_7(%arg0: i32) -> (i32, i32, i32) {
    %c0_i32 = arith.constant 0 : i32
    %c0_i32_0 = arith.constant 0 : i32
    %c0_i32_1 = arith.constant 0 : i32
    %c0_i32_2 = arith.constant 0 : i32
    return %c0_i32, %c0_i32_0, %c0_i32_1 : i32, i32, i32
  }
  func.func @transform_8(%arg0: i32) -> (i32, i32, i32) {
    %c0_i32 = arith.constant 0 : i32
    %c0_i32_0 = arith.constant 0 : i32
    %c0_i32_1 = arith.constant 0 : i32
    %c0_i32_2 = arith.constant 0 : i32
    return %c0_i32, %c0_i32_0, %c0_i32_1 : i32, i32, i32
  }
  func.func @transform_9(%arg0: i32) -> (i32, i32, i32) {
    %c0_i32 = arith.constant 0 : i32
    %c0_i32_0 = arith.constant 0 : i32
    %c0_i32_1 = arith.constant 0 : i32
    %c0_i32_2 = arith.constant 0 : i32
    return %c0_i32, %c0_i32_0, %c0_i32_1 : i32, i32, i32
  }
  func.func @transform_10(%arg0: i32) -> (i32, i32, i32) {
    %c0_i32 = arith.constant 0 : i32
    %c0_i32_0 = arith.constant 0 : i32
    %c0_i32_1 = arith.constant 0 : i32
    %c0_i32_2 = arith.constant 0 : i32
    return %c0_i32, %c0_i32_0, %c0_i32_1 : i32, i32, i32
  }
  func.func @transform_11(%arg0: i32) -> (i32, i32, i32) {
    %c0_i32 = arith.constant 0 : i32
    %c0_i32_0 = arith.constant 0 : i32
    %c0_i32_1 = arith.constant 0 : i32
    %c0_i32_2 = arith.constant 0 : i32
    return %c0_i32, %c0_i32_0, %c0_i32_1 : i32, i32, i32
  }
  func.func @transform_12(%arg0: i32) -> (i32, i32, i32) {
    %c0_i32 = arith.constant 0 : i32
    %c0_i32_0 = arith.constant 0 : i32
    %c0_i32_1 = arith.constant 0 : i32
    %c0_i32_2 = arith.constant 0 : i32
    return %c0_i32, %c0_i32_0, %c0_i32_1 : i32, i32, i32
  }
  func.func @transform_13(%arg0: i32) -> (i32, i32, i32) {
    %c0_i32 = arith.constant 0 : i32
    %c0_i32_0 = arith.constant 0 : i32
    %c0_i32_1 = arith.constant 0 : i32
    %c0_i32_2 = arith.constant 0 : i32
    return %c0_i32, %c0_i32_0, %c0_i32_1 : i32, i32, i32
  }
  func.func @transform_14(%arg0: i32) -> (i32, i32, i32) {
    %c0_i32 = arith.constant 0 : i32
    %c0_i32_0 = arith.constant 0 : i32
    %c0_i32_1 = arith.constant 0 : i32
    %c0_i32_2 = arith.constant 0 : i32
    return %c0_i32, %c0_i32_0, %c0_i32_1 : i32, i32, i32
  }
  func.func @transform_15(%arg0: i32) -> (i32, i32, i32) {
    %c0_i32 = arith.constant 0 : i32
    %c0_i32_0 = arith.constant 0 : i32
    %c0_i32_1 = arith.constant 0 : i32
    %c0_i32_2 = arith.constant 0 : i32
    return %c0_i32, %c0_i32_0, %c0_i32_1 : i32, i32, i32
  }
  func.func @transform_16(%arg0: i32) -> (i32, i32, i32) {
    %c0_i32 = arith.constant 0 : i32
    %c0_i32_0 = arith.constant 0 : i32
    %c0_i32_1 = arith.constant 0 : i32
    %c0_i32_2 = arith.constant 0 : i32
    return %c0_i32, %c0_i32_0, %c0_i32_1 : i32, i32, i32
  }
  func.func @transform_17(%arg0: i32) -> (i32, i32) {
    %c0_i32 = arith.constant 0 : i32
    %c0_i32_0 = arith.constant 0 : i32
    %c0_i32_1 = arith.constant 0 : i32
    return %c0_i32, %c0_i32_0 : i32, i32
  }
  func.func @transform_18(%arg0: i32) -> (i32, i32) {
    %c0_i32 = arith.constant 0 : i32
    %c0_i32_0 = arith.constant 0 : i32
    %c0_i32_1 = arith.constant 0 : i32
    return %c0_i32, %c0_i32_0 : i32, i32
  }
  func.func @transform_19(%arg0: i32) -> (i32, i32) {
    %c0_i32 = arith.constant 0 : i32
    %c0_i32_0 = arith.constant 0 : i32
    %c0_i32_1 = arith.constant 0 : i32
    return %c0_i32, %c0_i32_0 : i32, i32
  }
  func.func @transform_20(%arg0: i32) -> (i32, i32) {
    %c0_i32 = arith.constant 0 : i32
    %c0_i32_0 = arith.constant 0 : i32
    return %arg0, %c0_i32 : i32, i32
  }
}

</mosaic_0001>

<llo_original>
// kernel: simple_vit_net_forward.1
$region0: #{simple_vit_net_forward.1}
  #allocation0 [shape = 'u32[]', space=smem, size = 0x4, offset = 0x4, fixed_abs, tag = 'smem constant byte address 0x4 - core index']
  #allocation1 [shape = 'u32[144,128]{1,0:T(1,128)}', space=vmem, size = 0x12000, scoped, tag = 'internal scratch']
  %s0 = inlined_call_operand.vmem [shape: bf16[2,4,768], index: 0, kind: input, shape index: {}]
  %s1 = inlined_call_operand.hbm [shape: bf16[768,128], index: 1, kind: input, shape index: {}]
  %s2 = inlined_call_operand.vmem [shape: f32[1,128], index: 2, kind: input, shape index: {}]
  %s3 = inlined_call_operand.hbm [shape: f32[1,128], index: 3, kind: input, shape index: {}]
  %s4 = inlined_call_operand.vmem [shape: f32[8,128], index: 4, kind: input, shape index: {}]
  %s5 = inlined_call_operand.vmem [shape: f32[2,1,128], index: 5, kind: input, shape index: {}]
  %s6 = inlined_call_operand.vmem [shape: f32[2,1,128], index: 6, kind: input, shape index: {}]
  %s7 = inlined_call_operand.hbm [shape: bf16[2,128,384], index: 7, kind: input, shape index: {}]
  %s8 = inlined_call_operand.vmem [shape: f32[2,1,384], index: 8, kind: input, shape index: {}]
  %s9 = inlined_call_operand.vmem [shape: bf16[2,128,128], index: 9, kind: input, shape index: {}]
  %s10 = inlined_call_operand.vmem [shape: f32[2,1,128], index: 10, kind: input, shape index: {}]
  %s11 = inlined_call_operand.vmem [shape: f32[2,1,128], index: 11, kind: input, shape index: {}]
  %s12 = inlined_call_operand.vmem [shape: f32[2,1,128], index: 12, kind: input, shape index: {}]
  %s13 = inlined_call_operand.vmem [shape: bf16[2,128,512], index: 13, kind: input, shape index: {}]
  %s14 = inlined_call_operand.vmem [shape: f32[2,1,512], index: 14, kind: input, shape index: {}]
  %s15 = inlined_call_operand.vmem [shape: bf16[2,512,128], index: 15, kind: input, shape index: {}]
  %s16 = inlined_call_operand.hbm [shape: f32[2,1,128], index: 16, kind: input, shape index: {}]
  %s17 = inlined_call_operand.vmem [shape: f32[1,128], index: 17, kind: input, shape index: {}]
  %s18 = inlined_call_operand.vmem [shape: f32[1,128], index: 18, kind: input, shape index: {}]
  %s19 = inlined_call_operand.hbm [shape: f32[128,128], index: 19, kind: input, shape index: {}]
  %s20 = inlined_call_operand.hbm [shape: f32[2,128], index: 20, kind: output, shape index: {}]
  %s21 = sld [smem:[#allocation0]]
  $region110: #{simple_vit_net_forward.1} parent=0
    _
  %s23 = ssub.s32 1, %s21
  %s24 = scalar_select 0, %s23, %s21
  $region1: #{simple_vit_net_forward.1} parent=0
    #allocation2 [shape = 'u8[196608]{0}', space=vmem, size = 0x30000, scoped, tag = 'input window, operand 1, single buffered']
    #allocation3 [shape = 's32[1]{0}', space=sflag, size = 0x4, scoped, tag = 'scoped memory for simple_vit_net_forward.1']
    #allocation4 [shape = 's32[1]{0}', space=sflag, size = 0x4, scoped, tag = 'scoped memory for simple_vit_net_forward.1']
    #allocation5 [shape = 'u8[512]{0}', space=vmem, size = 0x400, scoped, tag = 'input window, operand 3, single buffered']
    #allocation6 [shape = 's32[1]{0}', space=sflag, size = 0x4, scoped, tag = 'scoped memory for simple_vit_net_forward.1']
    #allocation7 [shape = 'u8[196608]{0}', space=vmem, size = 0x30000, scoped, tag = 'input window, operand 7, single buffered']
    #allocation8 [shape = 'u8[1024]{0}', space=vmem, size = 0x400, scoped, tag = 'input window, operand 16, single buffered']
    #allocation9 [shape = 's32[1]{0}', space=sflag, size = 0x4, scoped, tag = 'scoped memory for simple_vit_net_forward.1']
    #allocation10 [shape = 'u8[65536]{0}', space=vmem, size = 0x10000, scoped, tag = 'input window, operand 19, single buffered']
    #allocation11 [shape = 'u8[1024]{0}', space=vmem, size = 0x400, scoped, tag = 'output window, operand 0, single buffered']
    %25 = vsyncpa [#allocation3], 0
    %26 = vsyncpa [#allocation6], 0
    %27 = vsyncpa [#allocation9], 0
    %28 = vsyncpa [#allocation4], 0
    // Predicated region
    $region2: #{simple_vit_net_forward.1} parent=1 // pred_check
      _
    $region3: #{simple_vit_net_forward.1} parent=1 // pred_check_branch
      %30 = sbr.rel (0) target = $region5
    $region4: #{simple_vit_net_forward.1} parent=1 // pred_region
      _
    $region5: #{simple_vit_net_forward.1} parent=1 // pred_fallthru
      _
    // Predicated region
    $region6: #{simple_vit_net_forward.1} parent=1 // pred_check
      _
    $region7: #{simple_vit_net_forward.1} parent=1 // pred_check_branch
      %32 = sbr.rel (0) target = $region9
    $region8: #{simple_vit_net_forward.1} parent=1 // pred_region
      %s34 = ssub.s32 6144, 6144
      %35 = vsyncadd [#allocation3], %s34
      %s36 = sshll.u32 [#allocation2], 4
      %s37 = int_to_ptr.vmem [resolvable:$true] %s36
      %42 = dma.hbm_to_vmem [thread:$0]  %s1, 6144, %s37, [#allocation3], 64, 64, 4
    $region9: #{simple_vit_net_forward.1} parent=1 // pred_fallthru
      _
    // Predicated region
    $region10: #{simple_vit_net_forward.1} parent=1 // pred_check
      _
    $region11: #{simple_vit_net_forward.1} parent=1 // pred_check_branch
      %44 = sbr.rel (0) target = $region13
    $region12: #{simple_vit_net_forward.1} parent=1 // pred_region
      _
    $region13: #{simple_vit_net_forward.1} parent=1 // pred_fallthru
      _
    // Predicated region
    $region14: #{simple_vit_net_forward.1} parent=1 // pred_check
      _
    $region15: #{simple_vit_net_forward.1} parent=1 // pred_check_branch
      %46 = sbr.rel (0) target = $region17
    $region16: #{simple_vit_net_forward.1} parent=1 // pred_region
      %s48 = ssub.s32 16, 16
      %49 = vsyncadd [#allocation6], %s48
      %s51 = sshll.u32 [#allocation5], 4
      %s52 = int_to_ptr.vmem [resolvable:$true] %s51
      %54 = dma.hbm_to_vmem [thread:$0]  %s3, 16, %s52, [#allocation6]
    $region17: #{simple_vit_net_forward.1} parent=1 // pred_fallthru
      _
    // Predicated region
    $region18: #{simple_vit_net_forward.1} parent=1 // pred_check
      _
    $region19: #{simple_vit_net_forward.1} parent=1 // pred_check_branch
      %56 = sbr.rel (0) target = $region21
    $region20: #{simple_vit_net_forward.1} parent=1 // pred_region
      _
    $region21: #{simple_vit_net_forward.1} parent=1 // pred_fallthru
      _
    // Predicated region
    $region22: #{simple_vit_net_forward.1} parent=1 // pred_check
      _
    $region23: #{simple_vit_net_forward.1} parent=1 // pred_check_branch
      %58 = sbr.rel (0) target = $region25
    $region24: #{simple_vit_net_forward.1} parent=1 // pred_region
      _
    $region25: #{simple_vit_net_forward.1} parent=1 // pred_fallthru
      _
    // Predicated region
    $region26: #{simple_vit_net_forward.1} parent=1 // pred_check
      _
    $region27: #{simple_vit_net_forward.1} parent=1 // pred_check_branch
      %60 = sbr.rel (0) target = $region29
    $region28: #{simple_vit_net_forward.1} parent=1 // pred_region
      _
    $region29: #{simple_vit_net_forward.1} parent=1 // pred_fallthru
      _
    // Predicated region
    $region30: #{simple_vit_net_forward.1} parent=1 // pred_check
      _
    $region31: #{simple_vit_net_forward.1} parent=1 // pred_check_branch
      %62 = sbr.rel (0) target = $region33
    $region32: #{simple_vit_net_forward.1} parent=1 // pred_region
      %s64 = ssub.s32 6144, 6144
      %65 = vsyncadd [#allocation6], %s64
      %s66 = sshll.u32 [#allocation7], 4
      %s67 = int_to_ptr.vmem [resolvable:$true] %s66
      %72 = dma.hbm_to_vmem [thread:$0]  %s7, 6144, %s67, [#allocation6], 192, 192, 12
    $region33: #{simple_vit_net_forward.1} parent=1 // pred_fallthru
      _
    // Predicated region
    $region34: #{simple_vit_net_forward.1} parent=1 // pred_check
      _
    $region35: #{simple_vit_net_forward.1} parent=1 // pred_check_branch
      %74 = sbr.rel (0) target = $region37
    $region36: #{simple_vit_net_forward.1} parent=1 // pred_region
      _
    $region37: #{simple_vit_net_forward.1} parent=1 // pred_fallthru
      _
    // Predicated region
    $region38: #{simple_vit_net_forward.1} parent=1 // pred_check
      _
    $region39: #{simple_vit_net_forward.1} parent=1 // pred_check_branch
      %76 = sbr.rel (0) target = $region41
    $region40: #{simple_vit_net_forward.1} parent=1 // pred_region
      _
    $region41: #{simple_vit_net_forward.1} parent=1 // pred_fallthru
      _
    // Predicated region
    $region42: #{simple_vit_net_forward.1} parent=1 // pred_check
      _
    $region43: #{simple_vit_net_forward.1} parent=1 // pred_check_branch
      %78 = sbr.rel (0) target = $region45
    $region44: #{simple_vit_net_forward.1} parent=1 // pred_region
      _
    $region45: #{simple_vit_net_forward.1} parent=1 // pred_fallthru
      _
    // Predicated region
    $region46: #{simple_vit_net_forward.1} parent=1 // pred_check
      _
    $region47: #{simple_vit_net_forward.1} parent=1 // pred_check_branch
      %80 = sbr.rel (0) target = $region49
    $region48: #{simple_vit_net_forward.1} parent=1 // pred_region
      _
    $region49: #{simple_vit_net_forward.1} parent=1 // pred_fallthru
      _
    // Predicated region
    $region50: #{simple_vit_net_forward.1} parent=1 // pred_check
      _
    $region51: #{simple_vit_net_forward.1} parent=1 // pred_check_branch
      %82 = sbr.rel (0) target = $region53
    $region52: #{simple_vit_net_forward.1} parent=1 // pred_region
      _
    $region53: #{simple_vit_net_forward.1} parent=1 // pred_fallthru
      _
    // Predicated region
    $region54: #{simple_vit_net_forward.1} parent=1 // pred_check
      _
    $region55: #{simple_vit_net_forward.1} parent=1 // pred_check_branch
      %84 = sbr.rel (0) target = $region57
    $region56: #{simple_vit_net_forward.1} parent=1 // pred_region
      _
    $region57: #{simple_vit_net_forward.1} parent=1 // pred_fallthru
      _
    // Predicated region
    $region58: #{simple_vit_net_forward.1} parent=1 // pred_check
      _
    $region59: #{simple_vit_net_forward.1} parent=1 // pred_check_branch
      %86 = sbr.rel (0) target = $region61
    $region60: #{simple_vit_net_forward.1} parent=1 // pred_region
      _
    $region61: #{simple_vit_net_forward.1} parent=1 // pred_fallthru
      _
    // Predicated region
    $region62: #{simple_vit_net_forward.1} parent=1 // pred_check
      _
    $region63: #{simple_vit_net_forward.1} parent=1 // pred_check_branch
      %88 = sbr.rel (0) target = $region65
    $region64: #{simple_vit_net_forward.1} parent=1 // pred_region
      _
    $region65: #{simple_vit_net_forward.1} parent=1 // pred_fallthru
      _
    // Predicated region
    $region66: #{simple_vit_net_forward.1} parent=1 // pred_check
      _
    $region67: #{simple_vit_net_forward.1} parent=1 // pred_check_branch
      %90 = sbr.rel (0) target = $region69
    $region68: #{simple_vit_net_forward.1} parent=1 // pred_region
      %s92 = ssub.s32 32, 32
      %93 = vsyncadd [#allocation9], %s92
      %s94 = sshll.u32 [#allocation8], 4
      %s95 = int_to_ptr.vmem [resolvable:$true] %s94
      %100 = dma.hbm_to_vmem [thread:$0]  %s16, 32, %s95, [#allocation9], 16, 16, 1
    $region69: #{simple_vit_net_forward.1} parent=1 // pred_fallthru
      _
    // Predicated region
    $region70: #{simple_vit_net_forward.1} parent=1 // pred_check
      _
    $region71: #{simple_vit_net_forward.1} parent=1 // pred_check_branch
      %102 = sbr.rel (0) target = $region73
    $region72: #{simple_vit_net_forward.1} parent=1 // pred_region
      _
    $region73: #{simple_vit_net_forward.1} parent=1 // pred_fallthru
      _
    // Predicated region
    $region74: #{simple_vit_net_forward.1} parent=1 // pred_check
      _
    $region75: #{simple_vit_net_forward.1} parent=1 // pred_check_branch
      %104 = sbr.rel (0) target = $region77
    $region76: #{simple_vit_net_forward.1} parent=1 // pred_region
      _
    $region77: #{simple_vit_net_forward.1} parent=1 // pred_fallthru
      _
    // Predicated region
    $region78: #{simple_vit_net_forward.1} parent=1 // pred_check
      _
    $region79: #{simple_vit_net_forward.1} parent=1 // pred_check_branch
      %106 = sbr.rel (0) target = $region81
    $region80: #{simple_vit_net_forward.1} parent=1 // pred_region
      %s108 = ssub.s32 2048, 2048
      %109 = vsyncadd [#allocation9], %s108
      %s110 = sshll.u32 [#allocation10], 4
      %s111 = int_to_ptr.vmem [resolvable:$true] %s110
      %116 = dma.hbm_to_vmem [thread:$0]  %s19, 2048, %s111, [#allocation9], 128, 128, 8
    $region81: #{simple_vit_net_forward.1} parent=1 // pred_fallthru
      _
    // Predicated region
    $region82: #{simple_vit_net_forward.1} parent=1 // pred_check
      _
    $region83: #{simple_vit_net_forward.1} parent=1 // pred_check_branch
      %118 = sbr.rel (0) target = $region85
    $region84: #{simple_vit_net_forward.1} parent=1 // pred_region
      %119 = dma.done [#allocation3], 6144
    $region85: #{simple_vit_net_forward.1} parent=1 // pred_fallthru
      _
    // Predicated region
    $region86: #{simple_vit_net_forward.1} parent=1 // pred_check
      _
    $region87: #{simple_vit_net_forward.1} parent=1 // pred_check_branch
      %121 = sbr.rel (0) target = $region89
    $region88: #{simple_vit_net_forward.1} parent=1 // pred_region
      %122 = dma.done [#allocation6], 16
    $region89: #{simple_vit_net_forward.1} parent=1 // pred_fallthru
      _
    // Predicated region
    $region90: #{simple_vit_net_forward.1} parent=1 // pred_check
      _
    $region91: #{simple_vit_net_forward.1} parent=1 // pred_check_branch
      %124 = sbr.rel (0) target = $region93
    $region92: #{simple_vit_net_forward.1} parent=1 // pred_region
      %125 = dma.done [#allocation6], 6144
    $region93: #{simple_vit_net_forward.1} parent=1 // pred_fallthru
      _
    // Predicated region
    $region94: #{simple_vit_net_forward.1} parent=1 // pred_check
      _
    $region95: #{simple_vit_net_forward.1} parent=1 // pred_check_branch
      %127 = sbr.rel (0) target = $region97
    $region96: #{simple_vit_net_forward.1} parent=1 // pred_region
      %128 = dma.done [#allocation9], 32
    $region97: #{simple_vit_net_forward.1} parent=1 // pred_fallthru
      _
    // Predicated region
    $region98: #{simple_vit_net_forward.1} parent=1 // pred_check
      _
    $region99: #{simple_vit_net_forward.1} parent=1 // pred_check_branch
      %130 = sbr.rel (0) target = $region101
    $region100: #{simple_vit_net_forward.1} parent=1 // pred_region
      %131 = dma.done [#allocation9], 2048
    $region101: #{simple_vit_net_forward.1} parent=1 // pred_fallthru
      _
    %v133 = vld [vmem:[%s0] sm:$0xff]
    %v134 = vld [vmem:[%s0 + $0x8] sm:$0xf]
    %v135 = vld [vmem:[%s0 + $0xc] sm:$0xff]
    %v136 = vld [vmem:[%s0 + $0x14] sm:$0xf]
    %v137 = vld [vmem:[#allocation2] sm:$0xf]
    %v138 = vld [vmem:[#allocation2 + $0x4] sm:$0xf]
    %v139 = vld [vmem:[#allocation2 + $0x8] sm:$0xf]
    %v140 = vld [vmem:[#allocation2 + $0xc] sm:$0xf]
    %v141 = vld [vmem:[#allocation2 + $0x10] sm:$0xf]
    %v142 = vld [vmem:[#allocation2 + $0x14] sm:$0xf]
    %v143 = vld [vmem:[#allocation2 + $0x18] sm:$0xf]
    %v144 = vld [vmem:[#allocation2 + $0x1c] sm:$0xf]
    %v145 = vld [vmem:[#allocation2 + $0x20] sm:$0xf]
    %v146 = vld [vmem:[#allocation2 + $0x24] sm:$0xf]
    %v147 = vld [vmem:[#allocation2 + $0x28] sm:$0xf]
    %v148 = vld [vmem:[#allocation2 + $0x2c] sm:$0xf]
    %v149 = vld [vmem:[#allocation2 + $0x30] sm:$0xf]
    %v150 = vld [vmem:[#allocation2 + $0x34] sm:$0xf]
    %v151 = vld [vmem:[#allocation2 + $0x38] sm:$0xf]
    %v152 = vld [vmem:[#allocation2 + $0x3c] sm:$0xf]
    %v153 = vld [vmem:[#allocation2 + $0x40] sm:$0xf]
    %v154 = vld [vmem:[#allocation2 + $0x44] sm:$0xf]
    %v155 = vld [vmem:[#allocation2 + $0x48] sm:$0xf]
    %v156 = vld [vmem:[#allocation2 + $0x4c] sm:$0xf]
    %v157 = vld [vmem:[#allocation2 + $0x50] sm:$0xf]
    %v158 = vld [vmem:[#allocation2 + $0x54] sm:$0xf]
    %v159 = vld [vmem:[#allocation2 + $0x58] sm:$0xf]
    %v160 = vld [vmem:[#allocation2 + $0x5c] sm:$0xf]
    %v161 = vld [vmem:[#allocation2 + $0x60] sm:$0xf]
    %v162 = vld [vmem:[#allocation2 + $0x64] sm:$0xf]
    %v163 = vld [vmem:[#allocation2 + $0x68] sm:$0xf]
    %v164 = vld [vmem:[#allocation2 + $0x6c] sm:$0xf]
    %v165 = vld [vmem:[#allocation2 + $0x70] sm:$0xf]
    %v166 = vld [vmem:[#allocation2 + $0x74] sm:$0xf]
    %v167 = vld [vmem:[#allocation2 + $0x78] sm:$0xf]
    %v168 = vld [vmem:[#allocation2 + $0x7c] sm:$0xf]
    %v169 = vld [vmem:[#allocation2 + $0x80] sm:$0xf]
    %v170 = vld [vmem:[#allocation2 + $0x84] sm:$0xf]
    %v171 = vld [vmem:[#allocation2 + $0x88] sm:$0xf]
    %v172 = vld [vmem:[#allocation2 + $0x8c] sm:$0xf]
    %v173 = vld [vmem:[#allocation2 + $0x90] sm:$0xf]
    %v174 = vld [vmem:[#allocation2 + $0x94] sm:$0xf]
    %v175 = vld [vmem:[#allocation2 + $0x98] sm:$0xf]
    %v176 = vld [vmem:[#allocation2 + $0x9c] sm:$0xf]
    %v177 = vld [vmem:[#allocation2 + $0xa0] sm:$0xf]
    %v178 = vld [vmem:[#allocation2 + $0xa4] sm:$0xf]
    %v179 = vld [vmem:[#allocation2 + $0xa8] sm:$0xf]
    %v180 = vld [vmem:[#allocation2 + $0xac] sm:$0xf]
    %v181 = vld [vmem:[#allocation2 + $0xb0] sm:$0xf]
    %v182 = vld [vmem:[#allocation2 + $0xb4] sm:$0xf]
    %v183 = vld [vmem:[#allocation2 + $0xb8] sm:$0xf]
    %v184 = vld [vmem:[#allocation2 + $0xbc] sm:$0xf]
    %v185 = vld [vmem:[#allocation2 + $0xc0] sm:$0xf]
    %v186 = vld [vmem:[#allocation2 + $0xc4] sm:$0xf]
    %v187 = vld [vmem:[#allocation2 + $0xc8] sm:$0xf]
    %v188 = vld [vmem:[#allocation2 + $0xcc] sm:$0xf]
    %v189 = vld [vmem:[#allocation2 + $0xd0] sm:$0xf]
    %v190 = vld [vmem:[#allocation2 + $0xd4] sm:$0xf]
    %v191 = vld [vmem:[#allocation2 + $0xd8] sm:$0xf]
    %v192 = vld [vmem:[#allocation2 + $0xdc] sm:$0xf]
    %v193 = vld [vmem:[#allocation2 + $0xe0] sm:$0xf]
    %v194 = vld [vmem:[#allocation2 + $0xe4] sm:$0xf]
    %v195 = vld [vmem:[#allocation2 + $0xe8] sm:$0xf]
    %v196 = vld [vmem:[#allocation2 + $0xec] sm:$0xf]
    %v197 = vld [vmem:[#allocation2 + $0xf0] sm:$0xf]
    %v198 = vld [vmem:[#allocation2 + $0xf4] sm:$0xf]
    %v199 = vld [vmem:[#allocation2 + $0xf8] sm:$0xf]
    %v200 = vld [vmem:[#allocation2 + $0xfc] sm:$0xf]
    %v201 = vld [vmem:[#allocation2 + $0x100] sm:$0xf]
    %v202 = vld [vmem:[#allocation2 + $0x104] sm:$0xf]
    %v203 = vld [vmem:[#allocation2 + $0x108] sm:$0xf]
    %v204 = vld [vmem:[#allocation2 + $0x10c] sm:$0xf]
    %v205 = vld [vmem:[#allocation2 + $0x110] sm:$0xf]
    %v206 = vld [vmem:[#allocation2 + $0x114] sm:$0xf]
    %v207 = vld [vmem:[#allocation2 + $0x118] sm:$0xf]
    %v208 = vld [vmem:[#allocation2 + $0x11c] sm:$0xf]
    %v209 = vld [vmem:[#allocation2 + $0x120] sm:$0xf]
    %v210 = vld [vmem:[#allocation2 + $0x124] sm:$0xf]
    %v211 = vld [vmem:[#allocation2 + $0x128] sm:$0xf]
    %v212 = vld [vmem:[#allocation2 + $0x12c] sm:$0xf]
    %v213 = vld [vmem:[#allocation2 + $0x130] sm:$0xf]
    %v214 = vld [vmem:[#allocation2 + $0x134] sm:$0xf]
    %v215 = vld [vmem:[#allocation2 + $0x138] sm:$0xf]
    %v216 = vld [vmem:[#allocation2 + $0x13c] sm:$0xf]
    %v217 = vld [vmem:[#allocation2 + $0x140] sm:$0xf]
    %v218 = vld [vmem:[#allocation2 + $0x144] sm:$0xf]
    %v219 = vld [vmem:[#allocation2 + $0x148] sm:$0xf]
    %v220 = vld [vmem:[#allocation2 + $0x14c] sm:$0xf]
    %v221 = vld [vmem:[#allocation2 + $0x150] sm:$0xf]
    %v222 = vld [vmem:[#allocation2 + $0x154] sm:$0xf]
    %v223 = vld [vmem:[#allocation2 + $0x158] sm:$0xf]
    %v224 = vld [vmem:[#allocation2 + $0x15c] sm:$0xf]
    %v225 = vld [vmem:[#allocation2 + $0x160] sm:$0xf]
    %v226 = vld [vmem:[#allocation2 + $0x164] sm:$0xf]
    %v227 = vld [vmem:[#allocation2 + $0x168] sm:$0xf]
    %v228 = vld [vmem:[#allocation2 + $0x16c] sm:$0xf]
    %v229 = vld [vmem:[#allocation2 + $0x170] sm:$0xf]
    %v230 = vld [vmem:[#allocation2 + $0x174] sm:$0xf]
    %v231 = vld [vmem:[#allocation2 + $0x178] sm:$0xf]
    %v232 = vld [vmem:[#allocation2 + $0x17c] sm:$0xf]
    %v233 = vld [vmem:[%s2] sm:$0x1]
    %v235 = vlaneseq
    %v236 = vshrl.u32 %v235, 7
    %v237 = vsub.s32 0, %v236
    %v238 = vrot.slane %v233, %v237
    %v244 = vcombine.low %v133, %v135
    %v245 = vcombine.high %v133, %v135
    %v247 = vunpack.c.l.s4 1983009808
    %v248 = vunpack.c.0.s8 %v247
    %v249 = vlaneseq
    %v250 = vshrl.u32 %v249, 7
    %v251 = vsub.s32 %v248, %v250
    %v252 = vrot.slane %v244, %v251
    %v254 = vunpack.c.l.s4 1983009808
    %v255 = vunpack.c.0.s8 %v254
    %v256 = vlaneseq
    %v257 = vshrl.u32 %v256, 7
    %v258 = vsub.s32 %v255, %v257
    %v259 = vrot.slane %v245, %v258
    %v260 = vcombine.high %v252, %v252
    %v261 = vcombine.high %v259, %v259
    %v262 = vcombine.low %v134, %v136
    %v264 = vunpack.c.l.s4 1983009808
    %v265 = vunpack.c.0.s8 %v264
    %v266 = vlaneseq
    %v267 = vshrl.u32 %v266, 7
    %v268 = vsub.s32 %v265, %v267
    %v269 = vrot.slane %v262, %v268
    %v270 = vcombine.high %v269, %v269
    %v373 = vunpack.c.l.b16 %v137
    %v374 = vunpack.c.l.b16 %v138
    %v375 = vunpack.c.l.b16 %v139
    %v376 = vunpack.c.l.b16 %v140
    %v377 = vunpack.c.l.b16 %v141
    %v378 = vunpack.c.l.b16 %v142
    %v379 = vunpack.c.l.b16 %v143
    %v380 = vunpack.c.l.b16 %v144
    %v381 = vunpack.c.l.b16 %v145
    %v382 = vunpack.c.l.b16 %v146
    %v383 = vunpack.c.l.b16 %v147
    %v384 = vunpack.c.l.b16 %v148
    %v385 = vunpack.c.l.b16 %v149
    %v386 = vunpack.c.l.b16 %v150
    %v387 = vunpack.c.l.b16 %v151
    %v388 = vunpack.c.l.b16 %v152
    %v389 = vunpack.c.l.b16 %v153
    %v390 = vunpack.c.l.b16 %v154
    %v391 = vunpack.c.l.b16 %v155
    %v392 = vunpack.c.l.b16 %v156
    %v393 = vunpack.c.l.b16 %v157
    %v394 = vunpack.c.l.b16 %v158
    %v395 = vunpack.c.l.b16 %v159
    %v396 = vunpack.c.l.b16 %v160
    %v397 = vunpack.c.l.b16 %v161
    %v398 = vunpack.c.l.b16 %v162
    %v399 = vunpack.c.l.b16 %v163
    %v400 = vunpack.c.l.b16 %v164
    %v401 = vunpack.c.l.b16 %v165
    %v402 = vunpack.c.l.b16 %v166
    %v403 = vunpack.c.l.b16 %v167
    %v404 = vunpack.c.l.b16 %v168
    %v405 = vunpack.c.l.b16 %v169
    %v406 = vunpack.c.l.b16 %v170
    %v407 = vunpack.c.l.b16 %v171
    %v408 = vunpack.c.l.b16 %v172
    %v409 = vunpack.c.l.b16 %v173
    %v410 = vunpack.c.l.b16 %v174
    %v411 = vunpack.c.l.b16 %v175
    %v412 = vunpack.c.l.b16 %v176
    %v413 = vunpack.c.l.b16 %v177
    %v414 = vunpack.c.l.b16 %v178
    %v415 = vunpack.c.l.b16 %v179
    %v416 = vunpack.c.l.b16 %v180
    %v417 = vunpack.c.l.b16 %v181
    %v418 = vunpack.c.l.b16 %v182
    %v419 = vunpack.c.l.b16 %v183
    %v420 = vunpack.c.l.b16 %v184
    %v421 = vunpack.c.l.b16 %v185
    %v422 = vunpack.c.l.b16 %v186
    %v423 = vunpack.c.l.b16 %v187
    %v424 = vunpack.c.l.b16 %v188
    %v425 = vunpack.c.l.b16 %v189
    %v426 = vunpack.c.l.b16 %v190
    %v427 = vunpack.c.l.b16 %v191
    %v428 = vunpack.c.l.b16 %v192
    %v429 = vunpack.c.l.b16 %v193
    %v430 = vunpack.c.l.b16 %v194
    %v431 = vunpack.c.l.b16 %v195
    %v432 = vunpack.c.l.b16 %v196
    %v433 = vunpack.c.l.b16 %v197
    %v434 = vunpack.c.l.b16 %v198
    %v435 = vunpack.c.l.b16 %v199
    %v436 = vunpack.c.l.b16 %v200
    %v437 = vunpack.c.l.b16 %v201
    %v438 = vunpack.c.l.b16 %v202
    %v439 = vunpack.c.l.b16 %v203
    %v440 = vunpack.c.l.b16 %v204
    %v441 = vunpack.c.l.b16 %v205
    %v442 = vunpack.c.l.b16 %v206
    %v443 = vunpack.c.l.b16 %v207
    %v444 = vunpack.c.l.b16 %v208
    %v445 = vunpack.c.l.b16 %v209
    %v446 = vunpack.c.l.b16 %v210
    %v447 = vunpack.c.l.b16 %v211
    %v448 = vunpack.c.l.b16 %v212
    %v449 = vunpack.c.l.b16 %v213
    %v450 = vunpack.c.l.b16 %v214
    %v451 = vunpack.c.l.b16 %v215
    %v452 = vunpack.c.l.b16 %v216
    %v453 = vunpack.c.l.b16 %v217
    %v454 = vunpack.c.l.b16 %v218
    %v455 = vunpack.c.l.b16 %v219
    %v456 = vunpack.c.l.b16 %v220
    %v457 = vunpack.c.l.b16 %v221
    %v458 = vunpack.c.l.b16 %v222
    %v459 = vunpack.c.l.b16 %v223
    %v460 = vunpack.c.l.b16 %v224
    %v461 = vunpack.c.l.b16 %v225
    %v462 = vunpack.c.l.b16 %v226
    %v463 = vunpack.c.l.b16 %v227
    %v464 = vunpack.c.l.b16 %v228
    %v465 = vunpack.c.l.b16 %v229
    %v466 = vunpack.c.l.b16 %v230
    %v467 = vunpack.c.l.b16 %v231
    %v468 = vunpack.c.l.b16 %v232
    %v469 = vpack.c.b16 %v374, %v373
    %v470 = vpack.c.b16 %v376, %v375
    %v471 = vpack.c.b16 %v378, %v377
    %v472 = vpack.c.b16 %v380, %v379
    %v473 = vpack.c.b16 %v382, %v381
    %v474 = vpack.c.b16 %v384, %v383
    %v475 = vpack.c.b16 %v386, %v385
    %v476 = vpack.c.b16 %v388, %v387
    %v477 = vpack.c.b16 %v390, %v389
    %v478 = vpack.c.b16 %v392, %v391
    %v479 = vpack.c.b16 %v394, %v393
    %v480 = vpack.c.b16 %v396, %v395
    %v481 = vpack.c.b16 %v398, %v397
    %v482 = vpack.c.b16 %v400, %v399
    %v483 = vpack.c.b16 %v402, %v401
    %v484 = vpack.c.b16 %v404, %v403
    %v485 = vpack.c.b16 %v406, %v405
    %v486 = vpack.c.b16 %v408, %v407
    %v487 = vpack.c.b16 %v410, %v409
    %v488 = vpack.c.b16 %v412, %v411
    %v489 = vpack.c.b16 %v414, %v413
    %v490 = vpack.c.b16 %v416, %v415
    %v491 = vpack.c.b16 %v418, %v417
    %v492 = vpack.c.b16 %v420, %v419
    %v493 = vpack.c.b16 %v422, %v421
    %v494 = vpack.c.b16 %v424, %v423
    %v495 = vpack.c.b16 %v426, %v425
    %v496 = vpack.c.b16 %v428, %v427
    %v497 = vpack.c.b16 %v430, %v429
    %v498 = vpack.c.b16 %v432, %v431
    %v499 = vpack.c.b16 %v434, %v433
    %v500 = vpack.c.b16 %v436, %v435
    %v501 = vpack.c.b16 %v438, %v437
    %v502 = vpack.c.b16 %v440, %v439
    %v503 = vpack.c.b16 %v442, %v441
    %v504 = vpack.c.b16 %v444, %v443
    %v505 = vpack.c.b16 %v446, %v445
    %v506 = vpack.c.b16 %v448, %v447
    %v507 = vpack.c.b16 %v450, %v449
    %v508 = vpack.c.b16 %v452, %v451
    %v509 = vpack.c.b16 %v454, %v453
    %v510 = vpack.c.b16 %v456, %v455
    %v511 = vpack.c.b16 %v458, %v457
    %v512 = vpack.c.b16 %v460, %v459
    %v513 = vpack.c.b16 %v462, %v461
    %v514 = vpack.c.b16 %v464, %v463
    %v515 = vpack.c.b16 %v466, %v465
    %v516 = vpack.c.b16 %v468, %v467
    %565 = vmatprep.subr.bf16.mxu0 0
    %566 = vmatpush1.bf16.msra.mxu0 %v469
    %567 = vmatprep.subr.bf16.mxu0 0
    %568 = vmatpush1.bf16.msra.mxu0 %v470
    %569 = vmatprep.subr.bf16.mxu0 0
    %570 = vmatpush1.bf16.msra.mxu0 %v471
    %571 = vmatprep.subr.bf16.mxu0 0
    %572 = vmatpush1.bf16.msra.mxu0 %v472
    %573 = vmatprep.subr.bf16.mxu0 0
    %574 = vmatpush1.bf16.msra.mxu0 %v473
    %575 = vmatprep.subr.bf16.mxu0 0
    %576 = vmatpush1.bf16.msra.mxu0 %v474
    %577 = vmatprep.subr.bf16.mxu0 0
    %578 = vmatpush1.bf16.msra.mxu0 %v475
    %579 = vmatprep.subr.bf16.mxu0 0
    %580 = vmatpush1.bf16.msra.mxu0 %v476
    %581 = vmatprep.subr.bf16.mxu0 0
    %582 = vmatpush1.bf16.msra.mxu0 %v477
    %583 = vmatprep.subr.bf16.mxu0 0
    %584 = vmatpush1.bf16.msra.mxu0 %v478
    %585 = vmatprep.subr.bf16.mxu0 0
    %586 = vmatpush1.bf16.msra.mxu0 %v479
    %587 = vmatprep.subr.bf16.mxu0 0
    %588 = vmatpush1.bf16.msra.mxu0 %v480
    %589 = vmatprep.subr.bf16.mxu0 0
    %590 = vmatpush1.bf16.msra.mxu0 %v481
    %591 = vmatprep.subr.bf16.mxu0 0
    %592 = vmatpush1.bf16.msra.mxu0 %v482
    %593 = vmatprep.subr.bf16.mxu0 0
    %594 = vmatpush1.bf16.msra.mxu0 %v483
    %595 = vmatprep.subr.bf16.mxu0 0
    %596 = vmatpush1.bf16.msra.mxu0 %v484
    %597 = vmatprep.mubr.bf16.mxu0 %v260
    %598 = vmatmul.mubr.bf16.gmra.mrb[0].mxu0 %v252
    %v599 = vpop.f32.mrb[0].mxu0
    %v600 = vadd.f32 %v238, %v599
    %v601 = vpop.f32.mrb[0].mxu0
    %v602 = vpop.f32.mrb[0].mxu0
    %v603 = vpop.f32.mrb[0].mxu0
    %604 = vdwg.mxu0
    %605 = vmatprep.subr.bf16.mxu0 0
    %606 = vmatpush1.bf16.msra.mxu0 %v485
    %607 = vmatprep.subr.bf16.mxu0 0
    %608 = vmatpush1.bf16.msra.mxu0 %v486
    %609 = vmatprep.subr.bf16.mxu0 0
    %610 = vmatpush1.bf16.msra.mxu0 %v487
    %611 = vmatprep.subr.bf16.mxu0 0
    %612 = vmatpush1.bf16.msra.mxu0 %v488
    %613 = vmatprep.subr.bf16.mxu0 0
    %614 = vmatpush1.bf16.msra.mxu0 %v489
    %615 = vmatprep.subr.bf16.mxu0 0
    %616 = vmatpush1.bf16.msra.mxu0 %v490
    %617 = vmatprep.subr.bf16.mxu0 0
    %618 = vmatpush1.bf16.msra.mxu0 %v491
    %619 = vmatprep.subr.bf16.mxu0 0
    %620 = vmatpush1.bf16.msra.mxu0 %v492
    %621 = vmatprep.subr.bf16.mxu0 0
    %622 = vmatpush1.bf16.msra.mxu0 %v493
    %623 = vmatprep.subr.bf16.mxu0 0
    %624 = vmatpush1.bf16.msra.mxu0 %v494
    %625 = vmatprep.subr.bf16.mxu0 0
    %626 = vmatpush1.bf16.msra.mxu0 %v495
    %627 = vmatprep.subr.bf16.mxu0 0
    %628 = vmatpush1.bf16.msra.mxu0 %v496
    %629 = vmatprep.subr.bf16.mxu0 0
    %630 = vmatpush1.bf16.msra.mxu0 %v497
    %631 = vmatprep.subr.bf16.mxu0 0
    %632 = vmatpush1.bf16.msra.mxu0 %v498
    %633 = vmatprep.subr.bf16.mxu0 0
    %634 = vmatpush1.bf16.msra.mxu0 %v499
    %635 = vmatprep.subr.bf16.mxu0 0
    %636 = vmatpush1.bf16.msra.mxu0 %v500
    %637 = vmatprep.mubr.bf16.mxu0 %v261
    %638 = vmatmul.mubr.bf16.gmra.mrb[0].mxu0 %v259
    %v639 = vpop.f32.mrb[0].mxu0
    %v640 = vadd.f32 %v600, %v639
    %v641 = vpop.f32.mrb[0].mxu0
    %v642 = vpop.f32.mrb[0].mxu0
    %v643 = vpop.f32.mrb[0].mxu0
    %644 = vdwg.mxu0
    %645 = vmatprep.subr.bf16.mxu0 0
    %646 = vmatpush1.bf16.msra.mxu0 %v501
    %647 = vmatprep.subr.bf16.mxu0 0
    %648 = vmatpush1.bf16.msra.mxu0 %v502
    %649 = vmatprep.subr.bf16.mxu0 0
    %650 = vmatpush1.bf16.msra.mxu0 %v503
    %651 = vmatprep.subr.bf16.mxu0 0
    %652 = vmatpush1.bf16.msra.mxu0 %v504
    %653 = vmatprep.subr.bf16.mxu0 0
    %654 = vmatpush1.bf16.msra.mxu0 %v505
    %655 = vmatprep.subr.bf16.mxu0 0
    %656 = vmatpush1.bf16.msra.mxu0 %v506
    %657 = vmatprep.subr.bf16.mxu0 0
    %658 = vmatpush1.bf16.msra.mxu0 %v507
    %659 = vmatprep.subr.bf16.mxu0 0
    %660 = vmatpush1.bf16.msra.mxu0 %v508
    %661 = vmatprep.subr.bf16.mxu0 0
    %662 = vmatpush1.bf16.msra.mxu0 %v509
    %663 = vmatprep.subr.bf16.mxu0 0
    %664 = vmatpush1.bf16.msra.mxu0 %v510
    %665 = vmatprep.subr.bf16.mxu0 0
    %666 = vmatpush1.bf16.msra.mxu0 %v511
    %667 = vmatprep.subr.bf16.mxu0 0
    %668 = vmatpush1.bf16.msra.mxu0 %v512
    %669 = vmatprep.subr.bf16.mxu0 0
    %670 = vmatpush1.bf16.msra.mxu0 %v513
    %671 = vmatprep.subr.bf16.mxu0 0
    %672 = vmatpush1.bf16.msra.mxu0 %v514
    %673 = vmatprep.subr.bf16.mxu0 0
    %674 = vmatpush1.bf16.msra.mxu0 %v515
    %675 = vmatprep.subr.bf16.mxu0 0
    %676 = vmatpush1.bf16.msra.mxu0 %v516
    %677 = vmatprep.mubr.bf16.mxu0 %v270
    %678 = vmatmul.mubr.bf16.gmra.mrb[0].mxu0 %v269
    %v679 = vpop.f32.mrb[0].mxu0
    %v680 = vadd.f32 %v640, %v679
    %v681 = vpop.f32.mrb[0].mxu0
    %v682 = vpop.f32.mrb[0].mxu0
    %v683 = vpop.f32.mrb[0].mxu0
    %684 = vdwg.mxu0
    %v686 = vcombine.high %v680, %v680
    %v687 = vld [vmem:[#allocation5] sm:$0x1]
    %v688 = vrot.slane %v680, 7
    %v689 = vrot.slane %v686, 7
    %vm692 = vcmask 1040384
    %v693 = vsel %vm692, %v687, %v688
    %v694 = vsel %vm692, %v687, %v689
    %vm695 = vcmask 1044480
    %v696 = vsel %vm695, %v693, 0.0
    %v697 = vsel %vm695, %v694, 0.0
    %v698 = vld [vmem:[%s4] sm:$0xff]
    %v699 = vadd.f32 %v696, %v698
    %v700 = vadd.f32 %v697, %v698
    %v701 = vlaneseq
    %v702 = vand.u32 %v701, 127
    %vm703 = vcmp.lt.s32.totalorder %v702, 5
    %v704 = vsel %vm703, 0.0, -1e+30
    %v705 = vld [vmem:[%s5] sm:$0x1]
    %v706 = vld [vmem:[%s6] sm:$0x1]
    %707 = vadd.xlane.f32.xlu0 %v699
    %v708 = vpop.xlane.xlu0 %707
    %709 = vadd.xlane.f32.xlu0 %v700
    %v710 = vpop.xlane.xlu0 %709
    %v711 = vrcp.pop 128.0
    %v712 = vmul.f32 %v708, %v711
    %v713 = vmul.f32 %v710, %v711
    %v714 = vsub.f32 %v699, %v712
    %v715 = vsub.f32 %v700, %v713
    %v716 = vmul.f32 %v714, %v714
    %v717 = vmul.f32 %v715, %v715
    %718 = vadd.xlane.f32.xlu0 %v716
    %v719 = vpop.xlane.xlu0 %718
    %720 = vadd.xlane.f32.xlu0 %v717
    %v721 = vpop.xlane.xlu0 %720
    %v722 = vmul.f32 %v719, %v711
    %v723 = vmul.f32 %v721, %v711
    %v724 = vadd.f32 %v722, 1e-06
    %v725 = vadd.f32 %v723, 1e-06
    %v726 = vrsqrt.pop %v724
    %v727 = vrsqrt.pop %v725
    %v728 = vmul.f32 %v714, %v726
    %v729 = vmul.f32 %v715, %v727
    %v731 = vlaneseq
    %v732 = vshrl.u32 %v731, 7
    %v733 = vsub.s32 0, %v732
    %v734 = vrot.slane %v705, %v733
    %v736 = vmul.f32 %v728, %v734
    %v737 = vmul.f32 %v729, %v734
    %v739 = vlaneseq
    %v740 = vshrl.u32 %v739, 7
    %v741 = vsub.s32 0, %v740
    %v742 = vrot.slane %v706, %v741
    %v744 = vadd.f32 %v736, %v742
    %v745 = vadd.f32 %v737, %v742
    %v746 = vpack.c.bf16 %v745, %v744
    %v747 = vld [vmem:[#allocation7] sm:$0xff]
    %v748 = vld [vmem:[#allocation7 + $0x8] sm:$0xf]
    %v749 = vld [vmem:[#allocation7 + $0xc] sm:$0xff]
    %v750 = vld [vmem:[#allocation7 + $0x14] sm:$0xf]
    %v751 = vld [vmem:[#allocation7 + $0x18] sm:$0xff]
    %v752 = vld [vmem:[#allocation7 + $0x20] sm:$0xf]
    %v753 = vld [vmem:[#allocation7 + $0x24] sm:$0xff]
    %v754 = vld [vmem:[#allocation7 + $0x2c] sm:$0xf]
    %v755 = vld [vmem:[#allocation7 + $0x30] sm:$0xff]
    %v756 = vld [vmem:[#allocation7 + $0x38] sm:$0xf]
    %v757 = vld [vmem:[#allocation7 + $0x3c] sm:$0xff]
    %v758 = vld [vmem:[#allocation7 + $0x44] sm:$0xf]
    %v759 = vld [vmem:[#allocation7 + $0x48] sm:$0xff]
    %v760 = vld [vmem:[#allocation7 + $0x50] sm:$0xf]
    %v761 = vld [vmem:[#allocation7 + $0x54] sm:$0xff]
    %v762 = vld [vmem:[#allocation7 + $0x5c] sm:$0xf]
    %v763 = vld [vmem:[#allocation7 + $0x60] sm:$0xff]
    %v764 = vld [vmem:[#allocation7 + $0x68] sm:$0xf]
    %v765 = vld [vmem:[#allocation7 + $0x6c] sm:$0xff]
    %v766 = vld [vmem:[#allocation7 + $0x74] sm:$0xf]
    %v767 = vld [vmem:[#allocation7 + $0x78] sm:$0xff]
    %v768 = vld [vmem:[#allocation7 + $0x80] sm:$0xf]
    %v769 = vld [vmem:[#allocation7 + $0x84] sm:$0xff]
    %v770 = vld [vmem:[#allocation7 + $0x8c] sm:$0xf]
    %v771 = vld [vmem:[#allocation7 + $0x90] sm:$0xff]
    %v772 = vld [vmem:[#allocation7 + $0x98] sm:$0xf]
    %v773 = vld [vmem:[#allocation7 + $0x9c] sm:$0xff]
    %v774 = vld [vmem:[#allocation7 + $0xa4] sm:$0xf]
    %v775 = vld [vmem:[#allocation7 + $0xa8] sm:$0xff]
    %v776 = vld [vmem:[#allocation7 + $0xb0] sm:$0xf]
    %v777 = vld [vmem:[#allocation7 + $0xb4] sm:$0xff]
    %v778 = vld [vmem:[#allocation7 + $0xbc] sm:$0xf]
    %v779 = vld [vmem:[%s8] sm:$0x7]
    %v781 = vlaneseq
    %v782 = vshrl.u32 %v781, 7
    %v783 = vsub.s32 0, %v782
    %v784 = vrot.slane %v779, %v783
    %v785 = vlaneseq
    %v786 = vshrl.u32 %v785, 7
    %v787 = vsub.s32 1, %v786
    %v788 = vrot.slane %v779, %v787
    %v789 = vlaneseq
    %v790 = vshrl.u32 %v789, 7
    %v791 = vsub.s32 2, %v790
    %v792 = vrot.slane %v779, %v791
    %v828 = vunpack.c.l.b16 %v747
    %v829 = vunpack.c.h.b16 %v747
    %v830 = vunpack.c.l.b16 %v748
    %v831 = vunpack.c.l.b16 %v749
    %v832 = vunpack.c.h.b16 %v749
    %v833 = vunpack.c.l.b16 %v750
    %v834 = vunpack.c.l.b16 %v751
    %v835 = vunpack.c.h.b16 %v751
    %v836 = vunpack.c.l.b16 %v752
    %v837 = vunpack.c.l.b16 %v753
    %v838 = vunpack.c.h.b16 %v753
    %v839 = vunpack.c.l.b16 %v754
    %v840 = vunpack.c.l.b16 %v755
    %v841 = vunpack.c.h.b16 %v755
    %v842 = vunpack.c.l.b16 %v756
    %v843 = vunpack.c.l.b16 %v757
    %v844 = vunpack.c.h.b16 %v757
    %v845 = vunpack.c.l.b16 %v758
    %v846 = vunpack.c.l.b16 %v759
    %v847 = vunpack.c.h.b16 %v759
    %v848 = vunpack.c.l.b16 %v760
    %v849 = vunpack.c.l.b16 %v761
    %v850 = vunpack.c.h.b16 %v761
    %v851 = vunpack.c.l.b16 %v762
    %v852 = vunpack.c.l.b16 %v763
    %v853 = vunpack.c.h.b16 %v763
    %v854 = vunpack.c.l.b16 %v764
    %v855 = vunpack.c.l.b16 %v765
    %v856 = vunpack.c.h.b16 %v765
    %v857 = vunpack.c.l.b16 %v766
    %v858 = vunpack.c.l.b16 %v767
    %v859 = vunpack.c.h.b16 %v767
    %v860 = vunpack.c.l.b16 %v768
    %v861 = vunpack.c.l.b16 %v769
    %v862 = vunpack.c.h.b16 %v769
    %v863 = vunpack.c.l.b16 %v770
    %v864 = vunpack.c.l.b16 %v771
    %v865 = vunpack.c.h.b16 %v771
    %v866 = vunpack.c.l.b16 %v772
    %v867 = vunpack.c.l.b16 %v773
    %v868 = vunpack.c.h.b16 %v773
    %v869 = vunpack.c.l.b16 %v774
    %v870 = vunpack.c.l.b16 %v775
    %v871 = vunpack.c.h.b16 %v775
    %v872 = vunpack.c.l.b16 %v776
    %v873 = vunpack.c.l.b16 %v777
    %v874 = vunpack.c.h.b16 %v777
    %v875 = vunpack.c.l.b16 %v778
    %v876 = vpack.c.b16 %v831, %v828
    %v877 = vpack.c.b16 %v832, %v829
    %v878 = vpack.c.b16 %v833, %v830
    %v879 = vpack.c.b16 %v837, %v834
    %v880 = vpack.c.b16 %v838, %v835
    %v881 = vpack.c.b16 %v839, %v836
    %v882 = vpack.c.b16 %v843, %v840
    %v883 = vpack.c.b16 %v844, %v841
    %v884 = vpack.c.b16 %v845, %v842
    %v885 = vpack.c.b16 %v849, %v846
    %v886 = vpack.c.b16 %v850, %v847
    %v887 = vpack.c.b16 %v851, %v848
    %v888 = vpack.c.b16 %v855, %v852
    %v889 = vpack.c.b16 %v856, %v853
    %v890 = vpack.c.b16 %v857, %v854
    %v891 = vpack.c.b16 %v861, %v858
    %v892 = vpack.c.b16 %v862, %v859
    %v893 = vpack.c.b16 %v863, %v860
    %v894 = vpack.c.b16 %v867, %v864
    %v895 = vpack.c.b16 %v868, %v865
    %v896 = vpack.c.b16 %v869, %v866
    %v897 = vpack.c.b16 %v873, %v870
    %v898 = vpack.c.b16 %v874, %v871
    %v899 = vpack.c.b16 %v875, %v872
    %924 = vmatprep.subr.bf16.mxu0 %v877
    %925 = vmatpush1.bf16.msra.mxu0 %v876
    %926 = vmatprep.subr.bf16.mxu0 %v880
    %927 = vmatpush1.bf16.msra.mxu0 %v879
    %928 = vmatprep.subr.bf16.mxu0 %v883
    %929 = vmatpush1.bf16.msra.mxu0 %v882
    %930 = vmatprep.subr.bf16.mxu0 %v886
    %931 = vmatpush1.bf16.msra.mxu0 %v885
    %932 = vmatprep.subr.bf16.mxu0 %v889
    %933 = vmatpush1.bf16.msra.mxu0 %v888
    %934 = vmatprep.subr.bf16.mxu0 %v892
    %935 = vmatpush1.bf16.msra.mxu0 %v891
    %936 = vmatprep.subr.bf16.mxu0 %v895
    %937 = vmatpush1.bf16.msra.mxu0 %v894
    %938 = vmatprep.subr.bf16.mxu0 %v898
    %939 = vmatpush1.bf16.msra.mxu0 %v897
    %940 = vmatprep.subr.bf16.mxu0 0
    %941 = vmatpush1.bf16.msra.mxu0 0
    %942 = vmatprep.subr.bf16.mxu0 0
    %943 = vmatpush1.bf16.msra.mxu0 0
    %944 = vmatprep.subr.bf16.mxu0 0
    %945 = vmatpush1.bf16.msra.mxu0 0
    %946 = vmatprep.subr.bf16.mxu0 0
    %947 = vmatpush1.bf16.msra.mxu0 0
    %948 = vmatprep.subr.bf16.mxu0 0
    %949 = vmatpush1.bf16.msra.mxu0 0
    %950 = vmatprep.subr.bf16.mxu0 0
    %951 = vmatpush1.bf16.msra.mxu0 0
    %952 = vmatprep.subr.bf16.mxu0 0
    %953 = vmatpush1.bf16.msra.mxu0 0
    %954 = vmatprep.subr.bf16.mxu0 0
    %955 = vmatpush1.bf16.msra.mxu0 0
    %956 = vmatprep.mubr.bf16.mxu0 0
    %957 = vmatmul.mubr.bf16.gmra.mrb[0].mxu0 %v746
    %v958 = vpop.f32.mrb[0].mxu0
    %v959 = vadd.f32 %v784, %v958
    %v960 = vpop.f32.mrb[0].mxu0
    %v961 = vadd.f32 %v788, %v960
    %v962 = vpop.f32.mrb[0].mxu0
    %v963 = vadd.f32 %v784, %v962
    %v964 = vpop.f32.mrb[0].mxu0
    %v965 = vadd.f32 %v788, %v964
    %966 = vdwg.mxu0
    %967 = vmatprep.subr.bf16.mxu0 0
    %968 = vmatpush1.bf16.msra.mxu0 %v878
    %969 = vmatprep.subr.bf16.mxu0 0
    %970 = vmatpush1.bf16.msra.mxu0 %v881
    %971 = vmatprep.subr.bf16.mxu0 0
    %972 = vmatpush1.bf16.msra.mxu0 %v884
    %973 = vmatprep.subr.bf16.mxu0 0
    %974 = vmatpush1.bf16.msra.mxu0 %v887
    %975 = vmatprep.subr.bf16.mxu0 0
    %976 = vmatpush1.bf16.msra.mxu0 %v890
    %977 = vmatprep.subr.bf16.mxu0 0
    %978 = vmatpush1.bf16.msra.mxu0 %v893
    %979 = vmatprep.subr.bf16.mxu0 0
    %980 = vmatpush1.bf16.msra.mxu0 %v896
    %981 = vmatprep.subr.bf16.mxu0 0
    %982 = vmatpush1.bf16.msra.mxu0 %v899
    %983 = vmatprep.subr.bf16.mxu0 0
    %984 = vmatpush1.bf16.msra.mxu0 0
    %985 = vmatprep.subr.bf16.mxu0 0
    %986 = vmatpush1.bf16.msra.mxu0 0
    %987 = vmatprep.subr.bf16.mxu0 0
    %988 = vmatpush1.bf16.msra.mxu0 0
    %989 = vmatprep.subr.bf16.mxu0 0
    %990 = vmatpush1.bf16.msra.mxu0 0
    %991 = vmatprep.subr.bf16.mxu0 0
    %992 = vmatpush1.bf16.msra.mxu0 0
    %993 = vmatprep.subr.bf16.mxu0 0
    %994 = vmatpush1.bf16.msra.mxu0 0
    %995 = vmatprep.subr.bf16.mxu0 0
    %996 = vmatpush1.bf16.msra.mxu0 0
    %997 = vmatprep.subr.bf16.mxu0 0
    %998 = vmatpush1.bf16.msra.mxu0 0
    %999 = vmatprep.mubr.bf16.mxu0 0
    %1000 = vmatmul.mubr.bf16.gmra.mrb[0].mxu0 %v746
    %v1001 = vpop.f32.mrb[0].mxu0
    %v1002 = vadd.f32 %v792, %v1001
    %v1003 = vpop.f32.mrb[0].mxu0
    %v1004 = vpop.f32.mrb[0].mxu0
    %v1005 = vadd.f32 %v792, %v1004
    %v1006 = vpop.f32.mrb[0].mxu0
    %1007 = vdwg.mxu0
    %v1008 = vpack.c.bf16 %v963, %v959
    %v1010 = vunpack.c.l.b16 %v1008
    %v1011 = vunpack.c.h.b16 %v1008
    %v1012 = vpack.c.b16 %v1010, %v1010
    %v1013 = vpack.c.b16 %v1011, %v1011
    %v1014 = vpack.c.bf16 %v965, %v961
    %v1016 = vunpack.c.l.b16 %v1014
    %v1017 = vunpack.c.h.b16 %v1014
    %v1018 = vpack.c.b16 %v1016, %v1016
    %v1019 = vpack.c.b16 %v1017, %v1017
    %v1020 = vpack.c.bf16 %v1005, %v1002
    %v1022 = vunpack.c.l.b16 %v1020
    %v1023 = vunpack.c.h.b16 %v1020
    %v1024 = vpack.c.b16 %v1022, %v1022
    %v1025 = vpack.c.b16 %v1023, %v1023
    %vm1026 = vcmask 261120
    %v1028 = vsel %vm1026, %v1012, 0
    %v1031 = vsel %vm1026, %v1018, 0
    %1033 = vmatprep.subr.bf16.mxu0 0
    %1034 = vmatpush1.bf16.xpose.msra.mxu0 %v1031
    %1035 = vmatprep.subr.bf16.mxu0 0
    %1036 = vmatpush1.bf16.xpose.msra.mxu0 0
    %1037 = vmatprep.subr.bf16.mxu0 0
    %1038 = vmatpush1.bf16.xpose.msra.mxu0 0
    %1039 = vmatprep.subr.bf16.mxu0 0
    %1040 = vmatpush1.bf16.xpose.msra.mxu0 0
    %1041 = vmatprep.subr.bf16.mxu0 0
    %1042 = vmatpush1.bf16.xpose.msra.mxu0 0
    %1043 = vmatprep.subr.bf16.mxu0 0
    %1044 = vmatpush1.bf16.xpose.msra.mxu0 0
    %1045 = vmatprep.subr.bf16.mxu0 0
    %1046 = vmatpush1.bf16.xpose.msra.mxu0 0
    %1047 = vmatprep.subr.bf16.mxu0 0
    %1048 = vmatpush1.bf16.xpose.msra.mxu0 0
    %1049 = vmatprep.subr.bf16.mxu0 0
    %1050 = vmatpush1.bf16.xpose.msra.mxu0 0
    %1051 = vmatprep.subr.bf16.mxu0 0
    %1052 = vmatpush1.bf16.xpose.msra.mxu0 0
    %1053 = vmatprep.subr.bf16.mxu0 0
    %1054 = vmatpush1.bf16.xpose.msra.mxu0 0
    %1055 = vmatprep.subr.bf16.mxu0 0
    %1056 = vmatpush1.bf16.xpose.msra.mxu0 0
    %1057 = vmatprep.subr.bf16.mxu0 0
    %1058 = vmatpush1.bf16.xpose.msra.mxu0 0
    %1059 = vmatprep.subr.bf16.mxu0 0
    %1060 = vmatpush1.bf16.xpose.msra.mxu0 0
    %1061 = vmatprep.subr.bf16.mxu0 0
    %1062 = vmatpush1.bf16.xpose.msra.mxu0 0
    %1063 = vmatprep.subr.bf16.mxu0 0
    %1064 = vmatpush1.bf16.xpose.msra.mxu0 0
    %1065 = vmatprep.mubr.bf16.mxu0 0
    %1066 = vmatmul.mubr.bf16.gmra.mrb[0].mxu0 %v1028
    %v1067 = vpop.f32.mrb[0].mxu0
    %v1068 = vadd.f32 0.0, %v1067
    %v1069 = vpop.f32.mrb[0].mxu0
    %v1070 = vpop.f32.mrb[0].mxu0
    %v1071 = vpop.f32.mrb[0].mxu0
    %1072 = vdwg.mxu0
    %v1074 = vsel %vm1026, %v1013, 0
    %v1077 = vsel %vm1026, %v1019, 0
    %1079 = vmatprep.subr.bf16.mxu0 0
    %1080 = vmatpush1.bf16.xpose.msra.mxu0 %v1077
    %1081 = vmatprep.subr.bf16.mxu0 0
    %1082 = vmatpush1.bf16.xpose.msra.mxu0 0
    %1083 = vmatprep.subr.bf16.mxu0 0
    %1084 = vmatpush1.bf16.xpose.msra.mxu0 0
    %1085 = vmatprep.subr.bf16.mxu0 0
    %1086 = vmatpush1.bf16.xpose.msra.mxu0 0
    %1087 = vmatprep.subr.bf16.mxu0 0
    %1088 = vmatpush1.bf16.xpose.msra.mxu0 0
    %1089 = vmatprep.subr.bf16.mxu0 0
    %1090 = vmatpush1.bf16.xpose.msra.mxu0 0
    %1091 = vmatprep.subr.bf16.mxu0 0
    %1092 = vmatpush1.bf16.xpose.msra.mxu0 0
    %1093 = vmatprep.subr.bf16.mxu0 0
    %1094 = vmatpush1.bf16.xpose.msra.mxu0 0
    %1095 = vmatprep.subr.bf16.mxu0 0
    %1096 = vmatpush1.bf16.xpose.msra.mxu0 0
    %1097 = vmatprep.subr.bf16.mxu0 0
    %1098 = vmatpush1.bf16.xpose.msra.mxu0 0
    %1099 = vmatprep.subr.bf16.mxu0 0
    %1100 = vmatpush1.bf16.xpose.msra.mxu0 0
    %1101 = vmatprep.subr.bf16.mxu0 0
    %1102 = vmatpush1.bf16.xpose.msra.mxu0 0
    %1103 = vmatprep.subr.bf16.mxu0 0
    %1104 = vmatpush1.bf16.xpose.msra.mxu0 0
    %1105 = vmatprep.subr.bf16.mxu0 0
    %1106 = vmatpush1.bf16.xpose.msra.mxu0 0
    %1107 = vmatprep.subr.bf16.mxu0 0
    %1108 = vmatpush1.bf16.xpose.msra.mxu0 0
    %1109 = vmatprep.subr.bf16.mxu0 0
    %1110 = vmatpush1.bf16.xpose.msra.mxu0 0
    %1111 = vmatprep.mubr.bf16.mxu0 0
    %1112 = vmatmul.mubr.bf16.gmra.mrb[0].mxu0 %v1074
    %v1113 = vpop.f32.mrb[0].mxu0
    %v1114 = vadd.f32 0.0, %v1113
    %v1115 = vpop.f32.mrb[0].mxu0
    %v1116 = vpop.f32.mrb[0].mxu0
    %v1117 = vpop.f32.mrb[0].mxu0
    %1118 = vdwg.mxu0
    %v1119 = vmul.f32 %v1068, 0.17677669
    %v1120 = vmul.f32 %v1114, 0.17677669
    %v1121 = vadd.f32 %v1119, %v704
    %v1122 = vadd.f32 %v1120, %v704
    %vm1123 = vcmask 64512
    %v1124 = vsel %vm1123, %v1121, -inf
    %1125 = vmax.xlane.f32.xlu0 %v1124
    %v1126 = vpop.xlane.xlu0 %1125
    %v1127 = vsel %vm1123, %v1122, -inf
    %1128 = vmax.xlane.f32.xlu0 %v1127
    %v1129 = vpop.xlane.xlu0 %1128
    %v1130 = vsub.f32 %v1121, %v1126
    %v1131 = vsub.f32 %v1122, %v1129
    %v1132 = vmul.f32 %v1130, 1.442695
    %v1133 = vpow.pop %v1132
    %v1134 = vmul.f32 %v1131, 1.442695
    %v1135 = vpow.pop %v1134
    %v1136 = vsel %vm1123, %v1133, 0.0
    %1137 = vadd.xlane.f32.xlu0 %v1136
    %v1138 = vpop.xlane.xlu0 %1137
    %v1139 = vsel %vm1123, %v1135, 0.0
    %1140 = vadd.xlane.f32.xlu0 %v1139
    %v1141 = vpop.xlane.xlu0 %1140
    %v1142 = vrcp.pop %v1138
    %v1143 = vrcp.pop %v1141
    %v1144 = vmul.f32 %v1133, %v1142
    %v1145 = vmul.f32 %v1135, %v1143
    %v1146 = vpack.c.bf16 %v1144, %v1144
    %v1147 = vpack.c.bf16 %v1145, %v1145
    %v1149 = vsel %vm1123, %v1146, 0
    %vm1151 = vcmask 1043456
    %v1153 = vsel %vm1151, %v1024, 0
    %1155 = vmatprep.subr.bf16.mxu0 0
    %1156 = vmatpush1.bf16.msra.mxu0 %v1153
    %1157 = vmatprep.subr.bf16.mxu0 0
    %1158 = vmatpush1.bf16.msra.mxu0 0
    %1159 = vmatprep.subr.bf16.mxu0 0
    %1160 = vmatpush1.bf16.msra.mxu0 0
    %1161 = vmatprep.subr.bf16.mxu0 0
    %1162 = vmatpush1.bf16.msra.mxu0 0
    %1163 = vmatprep.subr.bf16.mxu0 0
    %1164 = vmatpush1.bf16.msra.mxu0 0
    %1165 = vmatprep.subr.bf16.mxu0 0
    %1166 = vmatpush1.bf16.msra.mxu0 0
    %1167 = vmatprep.subr.bf16.mxu0 0
    %1168 = vmatpush1.bf16.msra.mxu0 0
    %1169 = vmatprep.subr.bf16.mxu0 0
    %1170 = vmatpush1.bf16.msra.mxu0 0
    %1171 = vmatprep.subr.bf16.mxu0 0
    %1172 = vmatpush1.bf16.msra.mxu0 0
    %1173 = vmatprep.subr.bf16.mxu0 0
    %1174 = vmatpush1.bf16.msra.mxu0 0
    %1175 = vmatprep.subr.bf16.mxu0 0
    %1176 = vmatpush1.bf16.msra.mxu0 0
    %1177 = vmatprep.subr.bf16.mxu0 0
    %1178 = vmatpush1.bf16.msra.mxu0 0
    %1179 = vmatprep.subr.bf16.mxu0 0
    %1180 = vmatpush1.bf16.msra.mxu0 0
    %1181 = vmatprep.subr.bf16.mxu0 0
    %1182 = vmatpush1.bf16.msra.mxu0 0
    %1183 = vmatprep.subr.bf16.mxu0 0
    %1184 = vmatpush1.bf16.msra.mxu0 0
    %1185 = vmatprep.subr.bf16.mxu0 0
    %1186 = vmatpush1.bf16.msra.mxu0 0
    %1187 = vmatprep.mubr.bf16.mxu0 0
    %1188 = vmatmul.mubr.bf16.gmra.mrb[0].mxu0 %v1149
    %v1189 = vpop.f32.mrb[0].mxu0
    %v1190 = vadd.f32 0.0, %v1189
    %v1191 = vpop.f32.mrb[0].mxu0
    %v1192 = vpop.f32.mrb[0].mxu0
    %v1193 = vpop.f32.mrb[0].mxu0
    %1194 = vdwg.mxu0
    %v1196 = vsel %vm1123, %v1147, 0
    %v1199 = vsel %vm1151, %v1025, 0
    %1201 = vmatprep.subr.bf16.mxu0 0
    %1202 = vmatpush1.bf16.msra.mxu0 %v1199
    %1203 = vmatprep.subr.bf16.mxu0 0
    %1204 = vmatpush1.bf16.msra.mxu0 0
    %1205 = vmatprep.subr.bf16.mxu0 0
    %1206 = vmatpush1.bf16.msra.mxu0 0
    %1207 = vmatprep.subr.bf16.mxu0 0
    %1208 = vmatpush1.bf16.msra.mxu0 0
    %1209 = vmatprep.subr.bf16.mxu0 0
    %1210 = vmatpush1.bf16.msra.mxu0 0
    %1211 = vmatprep.subr.bf16.mxu0 0
    %1212 = vmatpush1.bf16.msra.mxu0 0
    %1213 = vmatprep.subr.bf16.mxu0 0
    %1214 = vmatpush1.bf16.msra.mxu0 0
    %1215 = vmatprep.subr.bf16.mxu0 0
    %1216 = vmatpush1.bf16.msra.mxu0 0
    %1217 = vmatprep.subr.bf16.mxu0 0
    %1218 = vmatpush1.bf16.msra.mxu0 0
    %1219 = vmatprep.subr.bf16.mxu0 0
    %1220 = vmatpush1.bf16.msra.mxu0 0
    %1221 = vmatprep.subr.bf16.mxu0 0
    %1222 = vmatpush1.bf16.msra.mxu0 0
    %1223 = vmatprep.subr.bf16.mxu0 0
    %1224 = vmatpush1.bf16.msra.mxu0 0
    %1225 = vmatprep.subr.bf16.mxu0 0
    %1226 = vmatpush1.bf16.msra.mxu0 0
    %1227 = vmatprep.subr.bf16.mxu0 0
    %1228 = vmatpush1.bf16.msra.mxu0 0
    %1229 = vmatprep.subr.bf16.mxu0 0
    %1230 = vmatpush1.bf16.msra.mxu0 0
    %1231 = vmatprep.subr.bf16.mxu0 0
    %1232 = vmatpush1.bf16.msra.mxu0 0
    %1233 = vmatprep.mubr.bf16.mxu0 0
    %1234 = vmatmul.mubr.bf16.gmra.mrb[0].mxu0 %v1196
    %v1235 = vpop.f32.mrb[0].mxu0
    %v1236 = vadd.f32 0.0, %v1235
    %v1237 = vpop.f32.mrb[0].mxu0
    %v1238 = vpop.f32.mrb[0].mxu0
    %v1239 = vpop.f32.mrb[0].mxu0
    %1240 = vdwg.mxu0
    %1241 = vrot.lane.b32.xlu0 %v1012, 96
    %v1242 = vpop.permute.xlu0 %1241
    %1243 = vrot.lane.b32.xlu0 %v1018, 96
    %v1244 = vpop.permute.xlu0 %1243
    %v1246 = vsel %vm1026, %v1242, 0
    %v1249 = vsel %vm1026, %v1244, 0
    %1251 = vmatprep.subr.bf16.mxu0 0
    %1252 = vmatpush1.bf16.xpose.msra.mxu0 %v1249
    %1253 = vmatprep.subr.bf16.mxu0 0
    %1254 = vmatpush1.bf16.xpose.msra.mxu0 0
    %1255 = vmatprep.subr.bf16.mxu0 0
    %1256 = vmatpush1.bf16.xpose.msra.mxu0 0
    %1257 = vmatprep.subr.bf16.mxu0 0
    %1258 = vmatpush1.bf16.xpose.msra.mxu0 0
    %1259 = vmatprep.subr.bf16.mxu0 0
    %1260 = vmatpush1.bf16.xpose.msra.mxu0 0
    %1261 = vmatprep.subr.bf16.mxu0 0
    %1262 = vmatpush1.bf16.xpose.msra.mxu0 0
    %1263 = vmatprep.subr.bf16.mxu0 0
    %1264 = vmatpush1.bf16.xpose.msra.mxu0 0
    %1265 = vmatprep.subr.bf16.mxu0 0
    %1266 = vmatpush1.bf16.xpose.msra.mxu0 0
    %1267 = vmatprep.subr.bf16.mxu0 0
    %1268 = vmatpush1.bf16.xpose.msra.mxu0 0
    %1269 = vmatprep.subr.bf16.mxu0 0
    %1270 = vmatpush1.bf16.xpose.msra.mxu0 0
    %1271 = vmatprep.subr.bf16.mxu0 0
    %1272 = vmatpush1.bf16.xpose.msra.mxu0 0
    %1273 = vmatprep.subr.bf16.mxu0 0
    %1274 = vmatpush1.bf16.xpose.msra.mxu0 0
    %1275 = vmatprep.subr.bf16.mxu0 0
    %1276 = vmatpush1.bf16.xpose.msra.mxu0 0
    %1277 = vmatprep.subr.bf16.mxu0 0
    %1278 = vmatpush1.bf16.xpose.msra.mxu0 0
    %1279 = vmatprep.subr.bf16.mxu0 0
    %1280 = vmatpush1.bf16.xpose.msra.mxu0 0
    %1281 = vmatprep.subr.bf16.mxu0 0
    %1282 = vmatpush1.bf16.xpose.msra.mxu0 0
    %1283 = vmatprep.mubr.bf16.mxu0 0
    %1284 = vmatmul.mubr.bf16.gmra.mrb[0].mxu0 %v1246
    %v1285 = vpop.f32.mrb[0].mxu0
    %v1286 = vadd.f32 0.0, %v1285
    %v1287 = vpop.f32.mrb[0].mxu0
    %v1288 = vpop.f32.mrb[0].mxu0
    %v1289 = vpop.f32.mrb[0].mxu0
    %1290 = vdwg.mxu0
    %1291 = vrot.lane.b32.xlu0 %v1013, 96
    %v1292 = vpop.permute.xlu0 %1291
    %1293 = vrot.lane.b32.xlu0 %v1019, 96
    %v1294 = vpop.permute.xlu0 %1293
    %v1296 = vsel %vm1026, %v1292, 0
    %v1299 = vsel %vm1026, %v1294, 0
    %1301 = vmatprep.subr.bf16.mxu0 0
    %1302 = vmatpush1.bf16.xpose.msra.mxu0 %v1299
    %1303 = vmatprep.subr.bf16.mxu0 0
    %1304 = vmatpush1.bf16.xpose.msra.mxu0 0
    %1305 = vmatprep.subr.bf16.mxu0 0
    %1306 = vmatpush1.bf16.xpose.msra.mxu0 0
    %1307 = vmatprep.subr.bf16.mxu0 0
    %1308 = vmatpush1.bf16.xpose.msra.mxu0 0
    %1309 = vmatprep.subr.bf16.mxu0 0
    %1310 = vmatpush1.bf16.xpose.msra.mxu0 0
    %1311 = vmatprep.subr.bf16.mxu0 0
    %1312 = vmatpush1.bf16.xpose.msra.mxu0 0
    %1313 = vmatprep.subr.bf16.mxu0 0
    %1314 = vmatpush1.bf16.xpose.msra.mxu0 0
    %1315 = vmatprep.subr.bf16.mxu0 0
    %1316 = vmatpush1.bf16.xpose.msra.mxu0 0
    %1317 = vmatprep.subr.bf16.mxu0 0
    %1318 = vmatpush1.bf16.xpose.msra.mxu0 0
    %1319 = vmatprep.subr.bf16.mxu0 0
    %1320 = vmatpush1.bf16.xpose.msra.mxu0 0
    %1321 = vmatprep.subr.bf16.mxu0 0
    %1322 = vmatpush1.bf16.xpose.msra.mxu0 0
    %1323 = vmatprep.subr.bf16.mxu0 0
    %1324 = vmatpush1.bf16.xpose.msra.mxu0 0
    %1325 = vmatprep.subr.bf16.mxu0 0
    %1326 = vmatpush1.bf16.xpose.msra.mxu0 0
    %1327 = vmatprep.subr.bf16.mxu0 0
    %1328 = vmatpush1.bf16.xpose.msra.mxu0 0
    %1329 = vmatprep.subr.bf16.mxu0 0
    %1330 = vmatpush1.bf16.xpose.msra.mxu0 0
    %1331 = vmatprep.subr.bf16.mxu0 0
    %1332 = vmatpush1.bf16.xpose.msra.mxu0 0
    %1333 = vmatprep.mubr.bf16.mxu0 0
    %1334 = vmatmul.mubr.bf16.gmra.mrb[0].mxu0 %v1296
    %v1335 = vpop.f32.mrb[0].mxu0
    %v1336 = vadd.f32 0.0, %v1335
    %v1337 = vpop.f32.mrb[0].mxu0
    %v1338 = vpop.f32.mrb[0].mxu0
    %v1339 = vpop.f32.mrb[0].mxu0
    %1340 = vdwg.mxu0
    %v1341 = vmul.f32 %v1286, 0.17677669
    %v1342 = vmul.f32 %v1336, 0.17677669
    %v1343 = vadd.f32 %v1341, %v704
    %v1344 = vadd.f32 %v1342, %v704
    %v1345 = vsel %vm1123, %v1343, -inf
    %1346 = vmax.xlane.f32.xlu0 %v1345
    %v1347 = vpop.xlane.xlu0 %1346
    %v1348 = vsel %vm1123, %v1344, -inf
    %1349 = vmax.xlane.f32.xlu0 %v1348
    %v1350 = vpop.xlane.xlu0 %1349
    %v1351 = vsub.f32 %v1343, %v1347
    %v1352 = vsub.f32 %v1344, %v1350
    %v1353 = vmul.f32 %v1351, 1.442695
    %v1354 = vpow.pop %v1353
    %v1355 = vmul.f32 %v1352, 1.442695
    %v1356 = vpow.pop %v1355
    %v1357 = vsel %vm1123, %v1354, 0.0
    %1358 = vadd.xlane.f32.xlu0 %v1357
    %v1359 = vpop.xlane.xlu0 %1358
    %v1360 = vsel %vm1123, %v1356, 0.0
    %1361 = vadd.xlane.f32.xlu0 %v1360
    %v1362 = vpop.xlane.xlu0 %1361
    %v1363 = vrcp.pop %v1359
    %v1364 = vrcp.pop %v1362
    %v1365 = vmul.f32 %v1354, %v1363
    %v1366 = vmul.f32 %v1356, %v1364
    %v1367 = vpack.c.bf16 %v1365, %v1365
    %v1368 = vpack.c.bf16 %v1366, %v1366
    %1369 = vrot.lane.b32.xlu0 %v1024, 96
    %v1370 = vpop.permute.xlu0 %1369
    %v1372 = vsel %vm1123, %v1367, 0
    %v1375 = vsel %vm1151, %v1370, 0
    %1377 = vmatprep.subr.bf16.mxu0 0
    %1378 = vmatpush1.bf16.msra.mxu0 %v1375
    %1379 = vmatprep.subr.bf16.mxu0 0
    %1380 = vmatpush1.bf16.msra.mxu0 0
    %1381 = vmatprep.subr.bf16.mxu0 0
    %1382 = vmatpush1.bf16.msra.mxu0 0
    %1383 = vmatprep.subr.bf16.mxu0 0
    %1384 = vmatpush1.bf16.msra.mxu0 0
    %1385 = vmatprep.subr.bf16.mxu0 0
    %1386 = vmatpush1.bf16.msra.mxu0 0
    %1387 = vmatprep.subr.bf16.mxu0 0
    %1388 = vmatpush1.bf16.msra.mxu0 0
    %1389 = vmatprep.subr.bf16.mxu0 0
    %1390 = vmatpush1.bf16.msra.mxu0 0
    %1391 = vmatprep.subr.bf16.mxu0 0
    %1392 = vmatpush1.bf16.msra.mxu0 0
    %1393 = vmatprep.subr.bf16.mxu0 0
    %1394 = vmatpush1.bf16.msra.mxu0 0
    %1395 = vmatprep.subr.bf16.mxu0 0
    %1396 = vmatpush1.bf16.msra.mxu0 0
    %1397 = vmatprep.subr.bf16.mxu0 0
    %1398 = vmatpush1.bf16.msra.mxu0 0
    %1399 = vmatprep.subr.bf16.mxu0 0
    %1400 = vmatpush1.bf16.msra.mxu0 0
    %1401 = vmatprep.subr.bf16.mxu0 0
    %1402 = vmatpush1.bf16.msra.mxu0 0
    %1403 = vmatprep.subr.bf16.mxu0 0
    %1404 = vmatpush1.bf16.msra.mxu0 0
    %1405 = vmatprep.subr.bf16.mxu0 0
    %1406 = vmatpush1.bf16.msra.mxu0 0
    %1407 = vmatprep.subr.bf16.mxu0 0
    %1408 = vmatpush1.bf16.msra.mxu0 0
    %1409 = vmatprep.mubr.bf16.mxu0 0
    %1410 = vmatmul.mubr.bf16.gmra.mrb[0].mxu0 %v1372
    %v1411 = vpop.f32.mrb[0].mxu0
    %v1412 = vadd.f32 0.0, %v1411
    %v1413 = vpop.f32.mrb[0].mxu0
    %v1414 = vpop.f32.mrb[0].mxu0
    %v1415 = vpop.f32.mrb[0].mxu0
    %1416 = vdwg.mxu0
    %1417 = vrot.lane.b32.xlu0 %v1025, 96
    %v1418 = vpop.permute.xlu0 %1417
    %v1420 = vsel %vm1123, %v1368, 0
    %v1423 = vsel %vm1151, %v1418, 0
    %1425 = vmatprep.subr.bf16.mxu0 0
    %1426 = vmatpush1.bf16.msra.mxu0 %v1423
    %1427 = vmatprep.subr.bf16.mxu0 0
    %1428 = vmatpush1.bf16.msra.mxu0 0
    %1429 = vmatprep.subr.bf16.mxu0 0
    %1430 = vmatpush1.bf16.msra.mxu0 0
    %1431 = vmatprep.subr.bf16.mxu0 0
    %1432 = vmatpush1.bf16.msra.mxu0 0
    %1433 = vmatprep.subr.bf16.mxu0 0
    %1434 = vmatpush1.bf16.msra.mxu0 0
    %1435 = vmatprep.subr.bf16.mxu0 0
    %1436 = vmatpush1.bf16.msra.mxu0 0
    %1437 = vmatprep.subr.bf16.mxu0 0
    %1438 = vmatpush1.bf16.msra.mxu0 0
    %1439 = vmatprep.subr.bf16.mxu0 0
    %1440 = vmatpush1.bf16.msra.mxu0 0
    %1441 = vmatprep.subr.bf16.mxu0 0
    %1442 = vmatpush1.bf16.msra.mxu0 0
    %1443 = vmatprep.subr.bf16.mxu0 0
    %1444 = vmatpush1.bf16.msra.mxu0 0
    %1445 = vmatprep.subr.bf16.mxu0 0
    %1446 = vmatpush1.bf16.msra.mxu0 0
    %1447 = vmatprep.subr.bf16.mxu0 0
    %1448 = vmatpush1.bf16.msra.mxu0 0
    %1449 = vmatprep.subr.bf16.mxu0 0
    %1450 = vmatpush1.bf16.msra.mxu0 0
    %1451 = vmatprep.subr.bf16.mxu0 0
    %1452 = vmatpush1.bf16.msra.mxu0 0
    %1453 = vmatprep.subr.bf16.mxu0 0
    %1454 = vmatpush1.bf16.msra.mxu0 0
    %1455 = vmatprep.subr.bf16.mxu0 0
    %1456 = vmatpush1.bf16.msra.mxu0 0
    %1457 = vmatprep.mubr.bf16.mxu0 0
    %1458 = vmatmul.mubr.bf16.gmra.mrb[0].mxu0 %v1420
    %v1459 = vpop.f32.mrb[0].mxu0
    %v1460 = vadd.f32 0.0, %v1459
    %v1461 = vpop.f32.mrb[0].mxu0
    %v1462 = vpop.f32.mrb[0].mxu0
    %v1463 = vpop.f32.mrb[0].mxu0
    %1464 = vdwg.mxu0
    %1465 = vrot.lane.b32.xlu0 %v1012, 64
    %v1466 = vpop.permute.xlu0 %1465
    %1467 = vrot.lane.b32.xlu0 %v1018, 64
    %v1468 = vpop.permute.xlu0 %1467
    %v1470 = vsel %vm1026, %v1466, 0
    %v1473 = vsel %vm1026, %v1468, 0
    %1475 = vmatprep.subr.bf16.mxu0 0
    %1476 = vmatpush1.bf16.xpose.msra.mxu0 %v1473
    %1477 = vmatprep.subr.bf16.mxu0 0
    %1478 = vmatpush1.bf16.xpose.msra.mxu0 0
    %1479 = vmatprep.subr.bf16.mxu0 0
    %1480 = vmatpush1.bf16.xpose.msra.mxu0 0
    %1481 = vmatprep.subr.bf16.mxu0 0
    %1482 = vmatpush1.bf16.xpose.msra.mxu0 0
    %1483 = vmatprep.subr.bf16.mxu0 0
    %1484 = vmatpush1.bf16.xpose.msra.mxu0 0
    %1485 = vmatprep.subr.bf16.mxu0 0
    %1486 = vmatpush1.bf16.xpose.msra.mxu0 0
    %1487 = vmatprep.subr.bf16.mxu0 0
    %1488 = vmatpush1.bf16.xpose.msra.mxu0 0
    %1489 = vmatprep.subr.bf16.mxu0 0
    %1490 = vmatpush1.bf16.xpose.msra.mxu0 0
    %1491 = vmatprep.subr.bf16.mxu0 0
    %1492 = vmatpush1.bf16.xpose.msra.mxu0 0
    %1493 = vmatprep.subr.bf16.mxu0 0
    %1494 = vmatpush1.bf16.xpose.msra.mxu0 0
    %1495 = vmatprep.subr.bf16.mxu0 0
    %1496 = vmatpush1.bf16.xpose.msra.mxu0 0
    %1497 = vmatprep.subr.bf16.mxu0 0
    %1498 = vmatpush1.bf16.xpose.msra.mxu0 0
    %1499 = vmatprep.subr.bf16.mxu0 0
    %1500 = vmatpush1.bf16.xpose.msra.mxu0 0
    %1501 = vmatprep.subr.bf16.mxu0 0
    %1502 = vmatpush1.bf16.xpose.msra.mxu0 0
    %1503 = vmatprep.subr.bf16.mxu0 0
    %1504 = vmatpush1.bf16.xpose.msra.mxu0 0
    %1505 = vmatprep.subr.bf16.mxu0 0
    %1506 = vmatpush1.bf16.xpose.msra.mxu0 0
    %1507 = vmatprep.mubr.bf16.mxu0 0
    %1508 = vmatmul.mubr.bf16.gmra.mrb[0].mxu0 %v1470
    %v1509 = vpop.f32.mrb[0].mxu0
    %v1510 = vadd.f32 0.0, %v1509
    %v1511 = vpop.f32.mrb[0].mxu0
    %v1512 = vpop.f32.mrb[0].mxu0
    %v1513 = vpop.f32.mrb[0].mxu0
    %1514 = vdwg.mxu0
    %1515 = vrot.lane.b32.xlu0 %v1013, 64
    %v1516 = vpop.permute.xlu0 %1515
    %1517 = vrot.lane.b32.xlu0 %v1019, 64
    %v1518 = vpop.permute.xlu0 %1517
    %v1520 = vsel %vm1026, %v1516, 0
    %v1523 = vsel %vm1026, %v1518, 0
    %1525 = vmatprep.subr.bf16.mxu0 0
    %1526 = vmatpush1.bf16.xpose.msra.mxu0 %v1523
    %1527 = vmatprep.subr.bf16.mxu0 0
    %1528 = vmatpush1.bf16.xpose.msra.mxu0 0
    %1529 = vmatprep.subr.bf16.mxu0 0
    %1530 = vmatpush1.bf16.xpose.msra.mxu0 0
    %1531 = vmatprep.subr.bf16.mxu0 0
    %1532 = vmatpush1.bf16.xpose.msra.mxu0 0
    %1533 = vmatprep.subr.bf16.mxu0 0
    %1534 = vmatpush1.bf16.xpose.msra.mxu0 0
    %1535 = vmatprep.subr.bf16.mxu0 0
    %1536 = vmatpush1.bf16.xpose.msra.mxu0 0
    %1537 = vmatprep.subr.bf16.mxu0 0
    %1538 = vmatpush1.bf16.xpose.msra.mxu0 0
    %1539 = vmatprep.subr.bf16.mxu0 0
    %1540 = vmatpush1.bf16.xpose.msra.mxu0 0
    %1541 = vmatprep.subr.bf16.mxu0 0
    %1542 = vmatpush1.bf16.xpose.msra.mxu0 0
    %1543 = vmatprep.subr.bf16.mxu0 0
    %1544 = vmatpush1.bf16.xpose.msra.mxu0 0
    %1545 = vmatprep.subr.bf16.mxu0 0
    %1546 = vmatpush1.bf16.xpose.msra.mxu0 0
    %1547 = vmatprep.subr.bf16.mxu0 0
    %1548 = vmatpush1.bf16.xpose.msra.mxu0 0
    %1549 = vmatprep.subr.bf16.mxu0 0
    %1550 = vmatpush1.bf16.xpose.msra.mxu0 0
    %1551 = vmatprep.subr.bf16.mxu0 0
    %1552 = vmatpush1.bf16.xpose.msra.mxu0 0
    %1553 = vmatprep.subr.bf16.mxu0 0
    %1554 = vmatpush1.bf16.xpose.msra.mxu0 0
    %1555 = vmatprep.subr.bf16.mxu0 0
    %1556 = vmatpush1.bf16.xpose.msra.mxu0 0
    %1557 = vmatprep.mubr.bf16.mxu0 0
    %1558 = vmatmul.mubr.bf16.gmra.mrb[0].mxu0 %v1520
    %v1559 = vpop.f32.mrb[0].mxu0
    %v1560 = vadd.f32 0.0, %v1559
    %v1561 = vpop.f32.mrb[0].mxu0
    %v1562 = vpop.f32.mrb[0].mxu0
    %v1563 = vpop.f32.mrb[0].mxu0
    %1564 = vdwg.mxu0
    %v1565 = vmul.f32 %v1510, 0.17677669
    %v1566 = vmul.f32 %v1560, 0.17677669
    %v1567 = vadd.f32 %v1565, %v704
    %v1568 = vadd.f32 %v1566, %v704
    %v1569 = vsel %vm1123, %v1567, -inf
    %1570 = vmax.xlane.f32.xlu0 %v1569
    %v1571 = vpop.xlane.xlu0 %1570
    %v1572 = vsel %vm1123, %v1568, -inf
    %1573 = vmax.xlane.f32.xlu0 %v1572
    %v1574 = vpop.xlane.xlu0 %1573
    %v1575 = vsub.f32 %v1567, %v1571
    %v1576 = vsub.f32 %v1568, %v1574
    %v1577 = vmul.f32 %v1575, 1.442695
    %v1578 = vpow.pop %v1577
    %v1579 = vmul.f32 %v1576, 1.442695
    %v1580 = vpow.pop %v1579
    %v1581 = vsel %vm1123, %v1578, 0.0
    %1582 = vadd.xlane.f32.xlu0 %v1581
    %v1583 = vpop.xlane.xlu0 %1582
    %v1584 = vsel %vm1123, %v1580, 0.0
    %1585 = vadd.xlane.f32.xlu0 %v1584
    %v1586 = vpop.xlane.xlu0 %1585
    %v1587 = vrcp.pop %v1583
    %v1588 = vrcp.pop %v1586
    %v1589 = vmul.f32 %v1578, %v1587
    %v1590 = vmul.f32 %v1580, %v1588
    %v1591 = vpack.c.bf16 %v1589, %v1589
    %v1592 = vpack.c.bf16 %v1590, %v1590
    %1593 = vrot.lane.b32.xlu0 %v1024, 64
    %v1594 = vpop.permute.xlu0 %1593
    %v1596 = vsel %vm1123, %v1591, 0
    %v1599 = vsel %vm1151, %v1594, 0
    %1601 = vmatprep.subr.bf16.mxu0 0
    %1602 = vmatpush1.bf16.msra.mxu0 %v1599
    %1603 = vmatprep.subr.bf16.mxu0 0
    %1604 = vmatpush1.bf16.msra.mxu0 0
    %1605 = vmatprep.subr.bf16.mxu0 0
    %1606 = vmatpush1.bf16.msra.mxu0 0
    %1607 = vmatprep.subr.bf16.mxu0 0
    %1608 = vmatpush1.bf16.msra.mxu0 0
    %1609 = vmatprep.subr.bf16.mxu0 0
    %1610 = vmatpush1.bf16.msra.mxu0 0
    %1611 = vmatprep.subr.bf16.mxu0 0
    %1612 = vmatpush1.bf16.msra.mxu0 0
    %1613 = vmatprep.subr.bf16.mxu0 0
    %1614 = vmatpush1.bf16.msra.mxu0 0
    %1615 = vmatprep.subr.bf16.mxu0 0
    %1616 = vmatpush1.bf16.msra.mxu0 0
    %1617 = vmatprep.subr.bf16.mxu0 0
    %1618 = vmatpush1.bf16.msra.mxu0 0
    %1619 = vmatprep.subr.bf16.mxu0 0
    %1620 = vmatpush1.bf16.msra.mxu0 0
    %1621 = vmatprep.subr.bf16.mxu0 0
    %1622 = vmatpush1.bf16.msra.mxu0 0
    %1623 = vmatprep.subr.bf16.mxu0 0
    %1624 = vmatpush1.bf16.msra.mxu0 0
    %1625 = vmatprep.subr.bf16.mxu0 0
    %1626 = vmatpush1.bf16.msra.mxu0 0
    %1627 = vmatprep.subr.bf16.mxu0 0
    %1628 = vmatpush1.bf16.msra.mxu0 0
    %1629 = vmatprep.subr.bf16.mxu0 0
    %1630 = vmatpush1.bf16.msra.mxu0 0
    %1631 = vmatprep.subr.bf16.mxu0 0
    %1632 = vmatpush1.bf16.msra.mxu0 0
    %1633 = vmatprep.mubr.bf16.mxu0 0
    %1634 = vmatmul.mubr.bf16.gmra.mrb[0].mxu0 %v1596
    %v1635 = vpop.f32.mrb[0].mxu0
    %v1636 = vadd.f32 0.0, %v1635
    %v1637 = vpop.f32.mrb[0].mxu0
    %v1638 = vpop.f32.mrb[0].mxu0
    %v1639 = vpop.f32.mrb[0].mxu0
    %1640 = vdwg.mxu0
    %1641 = vrot.lane.b32.xlu0 %v1025, 64
    %v1642 = vpop.permute.xlu0 %1641
    %v1644 = vsel %vm1123, %v1592, 0
    %v1647 = vsel %vm1151, %v1642, 0
    %1649 = vmatprep.subr.bf16.mxu0 0
    %1650 = vmatpush1.bf16.msra.mxu0 %v1647
    %1651 = vmatprep.subr.bf16.mxu0 0
    %1652 = vmatpush1.bf16.msra.mxu0 0
    %1653 = vmatprep.subr.bf16.mxu0 0
    %1654 = vmatpush1.bf16.msra.mxu0 0
    %1655 = vmatprep.subr.bf16.mxu0 0
    %1656 = vmatpush1.bf16.msra.mxu0 0
    %1657 = vmatprep.subr.bf16.mxu0 0
    %1658 = vmatpush1.bf16.msra.mxu0 0
    %1659 = vmatprep.subr.bf16.mxu0 0
    %1660 = vmatpush1.bf16.msra.mxu0 0
    %1661 = vmatprep.subr.bf16.mxu0 0
    %1662 = vmatpush1.bf16.msra.mxu0 0
    %1663 = vmatprep.subr.bf16.mxu0 0
    %1664 = vmatpush1.bf16.msra.mxu0 0
    %1665 = vmatprep.subr.bf16.mxu0 0
    %1666 = vmatpush1.bf16.msra.mxu0 0
    %1667 = vmatprep.subr.bf16.mxu0 0
    %1668 = vmatpush1.bf16.msra.mxu0 0
    %1669 = vmatprep.subr.bf16.mxu0 0
    %1670 = vmatpush1.bf16.msra.mxu0 0
    %1671 = vmatprep.subr.bf16.mxu0 0
    %1672 = vmatpush1.bf16.msra.mxu0 0
    %1673 = vmatprep.subr.bf16.mxu0 0
    %1674 = vmatpush1.bf16.msra.mxu0 0
    %1675 = vmatprep.subr.bf16.mxu0 0
    %1676 = vmatpush1.bf16.msra.mxu0 0
    %1677 = vmatprep.subr.bf16.mxu0 0
    %1678 = vmatpush1.bf16.msra.mxu0 0
    %1679 = vmatprep.subr.bf16.mxu0 0
    %1680 = vmatpush1.bf16.msra.mxu0 0
    %1681 = vmatprep.mubr.bf16.mxu0 0
    %1682 = vmatmul.mubr.bf16.gmra.mrb[0].mxu0 %v1644
    %v1683 = vpop.f32.mrb[0].mxu0
    %v1684 = vadd.f32 0.0, %v1683
    %v1685 = vpop.f32.mrb[0].mxu0
    %v1686 = vpop.f32.mrb[0].mxu0
    %v1687 = vpop.f32.mrb[0].mxu0
    %1688 = vdwg.mxu0
    %1689 = vrot.lane.b32.xlu0 %v1012, 32
    %v1690 = vpop.permute.xlu0 %1689
    %1691 = vrot.lane.b32.xlu0 %v1018, 32
    %v1692 = vpop.permute.xlu0 %1691
    %v1694 = vsel %vm1026, %v1690, 0
    %v1697 = vsel %vm1026, %v1692, 0
    %1699 = vmatprep.subr.bf16.mxu0 0
    %1700 = vmatpush1.bf16.xpose.msra.mxu0 %v1697
    %1701 = vmatprep.subr.bf16.mxu0 0
    %1702 = vmatpush1.bf16.xpose.msra.mxu0 0
    %1703 = vmatprep.subr.bf16.mxu0 0
    %1704 = vmatpush1.bf16.xpose.msra.mxu0 0
    %1705 = vmatprep.subr.bf16.mxu0 0
    %1706 = vmatpush1.bf16.xpose.msra.mxu0 0
    %1707 = vmatprep.subr.bf16.mxu0 0
    %1708 = vmatpush1.bf16.xpose.msra.mxu0 0
    %1709 = vmatprep.subr.bf16.mxu0 0
    %1710 = vmatpush1.bf16.xpose.msra.mxu0 0
    %1711 = vmatprep.subr.bf16.mxu0 0
    %1712 = vmatpush1.bf16.xpose.msra.mxu0 0
    %1713 = vmatprep.subr.bf16.mxu0 0
    %1714 = vmatpush1.bf16.xpose.msra.mxu0 0
    %1715 = vmatprep.subr.bf16.mxu0 0
    %1716 = vmatpush1.bf16.xpose.msra.mxu0 0
    %1717 = vmatprep.subr.bf16.mxu0 0
    %1718 = vmatpush1.bf16.xpose.msra.mxu0 0
    %1719 = vmatprep.subr.bf16.mxu0 0
    %1720 = vmatpush1.bf16.xpose.msra.mxu0 0
    %1721 = vmatprep.subr.bf16.mxu0 0
    %1722 = vmatpush1.bf16.xpose.msra.mxu0 0
    %1723 = vmatprep.subr.bf16.mxu0 0
    %1724 = vmatpush1.bf16.xpose.msra.mxu0 0
    %1725 = vmatprep.subr.bf16.mxu0 0
    %1726 = vmatpush1.bf16.xpose.msra.mxu0 0
    %1727 = vmatprep.subr.bf16.mxu0 0
    %1728 = vmatpush1.bf16.xpose.msra.mxu0 0
    %1729 = vmatprep.subr.bf16.mxu0 0
    %1730 = vmatpush1.bf16.xpose.msra.mxu0 0
    %1731 = vmatprep.mubr.bf16.mxu0 0
    %1732 = vmatmul.mubr.bf16.gmra.mrb[0].mxu0 %v1694
    %v1733 = vpop.f32.mrb[0].mxu0
    %v1734 = vadd.f32 0.0, %v1733
    %v1735 = vpop.f32.mrb[0].mxu0
    %v1736 = vpop.f32.mrb[0].mxu0
    %v1737 = vpop.f32.mrb[0].mxu0
    %1738 = vdwg.mxu0
    %1739 = vrot.lane.b32.xlu0 %v1013, 32
    %v1740 = vpop.permute.xlu0 %1739
    %1741 = vrot.lane.b32.xlu0 %v1019, 32
    %v1742 = vpop.permute.xlu0 %1741
    %v1744 = vsel %vm1026, %v1740, 0
    %v1747 = vsel %vm1026, %v1742, 0
    %1749 = vmatprep.subr.bf16.mxu0 0
    %1750 = vmatpush1.bf16.xpose.msra.mxu0 %v1747
    %1751 = vmatprep.subr.bf16.mxu0 0
    %1752 = vmatpush1.bf16.xpose.msra.mxu0 0
    %1753 = vmatprep.subr.bf16.mxu0 0
    %1754 = vmatpush1.bf16.xpose.msra.mxu0 0
    %1755 = vmatprep.subr.bf16.mxu0 0
    %1756 = vmatpush1.bf16.xpose.msra.mxu0 0
    %1757 = vmatprep.subr.bf16.mxu0 0
    %1758 = vmatpush1.bf16.xpose.msra.mxu0 0
    %1759 = vmatprep.subr.bf16.mxu0 0
    %1760 = vmatpush1.bf16.xpose.msra.mxu0 0
    %1761 = vmatprep.subr.bf16.mxu0 0
    %1762 = vmatpush1.bf16.xpose.msra.mxu0 0
    %1763 = vmatprep.subr.bf16.mxu0 0
    %1764 = vmatpush1.bf16.xpose.msra.mxu0 0
    %1765 = vmatprep.subr.bf16.mxu0 0
    %1766 = vmatpush1.bf16.xpose.msra.mxu0 0
    %1767 = vmatprep.subr.bf16.mxu0 0
    %1768 = vmatpush1.bf16.xpose.msra.mxu0 0
    %1769 = vmatprep.subr.bf16.mxu0 0
    %1770 = vmatpush1.bf16.xpose.msra.mxu0 0
    %1771 = vmatprep.subr.bf16.mxu0 0
    %1772 = vmatpush1.bf16.xpose.msra.mxu0 0
    %1773 = vmatprep.subr.bf16.mxu0 0
    %1774 = vmatpush1.bf16.xpose.msra.mxu0 0
    %1775 = vmatprep.subr.bf16.mxu0 0
    %1776 = vmatpush1.bf16.xpose.msra.mxu0 0
    %1777 = vmatprep.subr.bf16.mxu0 0
    %1778 = vmatpush1.bf16.xpose.msra.mxu0 0
    %1779 = vmatprep.subr.bf16.mxu0 0
    %1780 = vmatpush1.bf16.xpose.msra.mxu0 0
    %1781 = vmatprep.mubr.bf16.mxu0 0
    %1782 = vmatmul.mubr.bf16.gmra.mrb[0].mxu0 %v1744
    %v1783 = vpop.f32.mrb[0].mxu0
    %v1784 = vadd.f32 0.0, %v1783
    %v1785 = vpop.f32.mrb[0].mxu0
    %v1786 = vpop.f32.mrb[0].mxu0
    %v1787 = vpop.f32.mrb[0].mxu0
    %1788 = vdwg.mxu0
    %v1789 = vmul.f32 %v1734, 0.17677669
    %v1790 = vmul.f32 %v1784, 0.17677669
    %v1791 = vadd.f32 %v1789, %v704
    %v1792 = vadd.f32 %v1790, %v704
    %v1793 = vsel %vm1123, %v1791, -inf
    %1794 = vmax.xlane.f32.xlu0 %v1793
    %v1795 = vpop.xlane.xlu0 %1794
    %v1796 = vsel %vm1123, %v1792, -inf
    %1797 = vmax.xlane.f32.xlu0 %v1796
    %v1798 = vpop.xlane.xlu0 %1797
    %v1799 = vsub.f32 %v1791, %v1795
    %v1800 = vsub.f32 %v1792, %v1798
    %v1801 = vmul.f32 %v1799, 1.442695
    %v1802 = vpow.pop %v1801
    %v1803 = vmul.f32 %v1800, 1.442695
    %v1804 = vpow.pop %v1803
    %v1805 = vsel %vm1123, %v1802, 0.0
    %1806 = vadd.xlane.f32.xlu0 %v1805
    %v1807 = vpop.xlane.xlu0 %1806
    %v1808 = vsel %vm1123, %v1804, 0.0
    %1809 = vadd.xlane.f32.xlu0 %v1808
    %v1810 = vpop.xlane.xlu0 %1809
    %v1811 = vrcp.pop %v1807
    %v1812 = vrcp.pop %v1810
    %v1813 = vmul.f32 %v1802, %v1811
    %v1814 = vmul.f32 %v1804, %v1812
    %v1815 = vpack.c.bf16 %v1813, %v1813
    %v1816 = vpack.c.bf16 %v1814, %v1814
    %1817 = vrot.lane.b32.xlu0 %v1024, 32
    %v1818 = vpop.permute.xlu0 %1817
    %v1820 = vsel %vm1123, %v1815, 0
    %v1823 = vsel %vm1151, %v1818, 0
    %1825 = vmatprep.subr.bf16.mxu0 0
    %1826 = vmatpush1.bf16.msra.mxu0 %v1823
    %1827 = vmatprep.subr.bf16.mxu0 0
    %1828 = vmatpush1.bf16.msra.mxu0 0
    %1829 = vmatprep.subr.bf16.mxu0 0
    %1830 = vmatpush1.bf16.msra.mxu0 0
    %1831 = vmatprep.subr.bf16.mxu0 0
    %1832 = vmatpush1.bf16.msra.mxu0 0
    %1833 = vmatprep.subr.bf16.mxu0 0
    %1834 = vmatpush1.bf16.msra.mxu0 0
    %1835 = vmatprep.subr.bf16.mxu0 0
    %1836 = vmatpush1.bf16.msra.mxu0 0
    %1837 = vmatprep.subr.bf16.mxu0 0
    %1838 = vmatpush1.bf16.msra.mxu0 0
    %1839 = vmatprep.subr.bf16.mxu0 0
    %1840 = vmatpush1.bf16.msra.mxu0 0
    %1841 = vmatprep.subr.bf16.mxu0 0
    %1842 = vmatpush1.bf16.msra.mxu0 0
    %1843 = vmatprep.subr.bf16.mxu0 0
    %1844 = vmatpush1.bf16.msra.mxu0 0
    %1845 = vmatprep.subr.bf16.mxu0 0
    %1846 = vmatpush1.bf16.msra.mxu0 0
    %1847 = vmatprep.subr.bf16.mxu0 0
    %1848 = vmatpush1.bf16.msra.mxu0 0
    %1849 = vmatprep.subr.bf16.mxu0 0
    %1850 = vmatpush1.bf16.msra.mxu0 0
    %1851 = vmatprep.subr.bf16.mxu0 0
    %1852 = vmatpush1.bf16.msra.mxu0 0
    %1853 = vmatprep.subr.bf16.mxu0 0
    %1854 = vmatpush1.bf16.msra.mxu0 0
    %1855 = vmatprep.subr.bf16.mxu0 0
    %1856 = vmatpush1.bf16.msra.mxu0 0
    %1857 = vmatprep.mubr.bf16.mxu0 0
    %1858 = vmatmul.mubr.bf16.gmra.mrb[0].mxu0 %v1820
    %v1859 = vpop.f32.mrb[0].mxu0
    %v1860 = vadd.f32 0.0, %v1859
    %v1861 = vpop.f32.mrb[0].mxu0
    %v1862 = vpop.f32.mrb[0].mxu0
    %v1863 = vpop.f32.mrb[0].mxu0
    %1864 = vdwg.mxu0
    %1865 = vrot.lane.b32.xlu0 %v1025, 32
    %v1866 = vpop.permute.xlu0 %1865
    %v1868 = vsel %vm1123, %v1816, 0
    %v1871 = vsel %vm1151, %v1866, 0
    %1873 = vmatprep.subr.bf16.mxu0 0
    %1874 = vmatpush1.bf16.msra.mxu0 %v1871
    %1875 = vmatprep.subr.bf16.mxu0 0
    %1876 = vmatpush1.bf16.msra.mxu0 0
    %1877 = vmatprep.subr.bf16.mxu0 0
    %1878 = vmatpush1.bf16.msra.mxu0 0
    %1879 = vmatprep.subr.bf16.mxu0 0
    %1880 = vmatpush1.bf16.msra.mxu0 0
    %1881 = vmatprep.subr.bf16.mxu0 0
    %1882 = vmatpush1.bf16.msra.mxu0 0
    %1883 = vmatprep.subr.bf16.mxu0 0
    %1884 = vmatpush1.bf16.msra.mxu0 0
    %1885 = vmatprep.subr.bf16.mxu0 0
    %1886 = vmatpush1.bf16.msra.mxu0 0
    %1887 = vmatprep.subr.bf16.mxu0 0
    %1888 = vmatpush1.bf16.msra.mxu0 0
    %1889 = vmatprep.subr.bf16.mxu0 0
    %1890 = vmatpush1.bf16.msra.mxu0 0
    %1891 = vmatprep.subr.bf16.mxu0 0
    %1892 = vmatpush1.bf16.msra.mxu0 0
    %1893 = vmatprep.subr.bf16.mxu0 0
    %1894 = vmatpush1.bf16.msra.mxu0 0
    %1895 = vmatprep.subr.bf16.mxu0 0
    %1896 = vmatpush1.bf16.msra.mxu0 0
    %1897 = vmatprep.subr.bf16.mxu0 0
    %1898 = vmatpush1.bf16.msra.mxu0 0
    %1899 = vmatprep.subr.bf16.mxu0 0
    %1900 = vmatpush1.bf16.msra.mxu0 0
    %1901 = vmatprep.subr.bf16.mxu0 0
    %1902 = vmatpush1.bf16.msra.mxu0 0
    %1903 = vmatprep.subr.bf16.mxu0 0
    %1904 = vmatpush1.bf16.msra.mxu0 0
    %1905 = vmatprep.mubr.bf16.mxu0 0
    %1906 = vmatmul.mubr.bf16.gmra.mrb[0].mxu0 %v1868
    %v1907 = vpop.f32.mrb[0].mxu0
    %v1908 = vadd.f32 0.0, %v1907
    %v1909 = vpop.f32.mrb[0].mxu0
    %v1910 = vpop.f32.mrb[0].mxu0
    %v1911 = vpop.f32.mrb[0].mxu0
    %1912 = vdwg.mxu0
    %1915 = vrot.lane.b32.xlu0 %v1412, 32
    %v1916 = vpop.permute.xlu0 %1915
    %1917 = vrot.lane.b32.xlu0 %v1460, 32
    %v1918 = vpop.permute.xlu0 %1917
    %1923 = vrot.lane.b32.xlu0 %v1636, 64
    %v1924 = vpop.permute.xlu0 %1923
    %1925 = vrot.lane.b32.xlu0 %v1684, 64
    %v1926 = vpop.permute.xlu0 %1925
    %1931 = vrot.lane.b32.xlu0 %v1860, 96
    %v1932 = vpop.permute.xlu0 %1931
    %1933 = vrot.lane.b32.xlu0 %v1908, 96
    %v1934 = vpop.permute.xlu0 %1933
    %v1937 = vsel %vm1026, %v1190, %v1916
    %v1938 = vsel %vm1026, %v1236, %v1918
    %vm1939 = vcmask 523264
    %v1940 = vsel %vm1939, %v1937, %v1924
    %v1941 = vsel %vm1939, %v1938, %v1926
    %vm1942 = vcmask 785408
    %v1943 = vsel %vm1942, %v1940, %v1932
    %v1944 = vsel %vm1942, %v1941, %v1934
    %v1945 = vpack.c.bf16 %v1944, %v1943
    %v1946 = vld [vmem:[%s9] sm:$0xf]
    %v1947 = vld [vmem:[%s9 + $0x4] sm:$0xf]
    %v1948 = vld [vmem:[%s9 + $0x8] sm:$0xf]
    %v1949 = vld [vmem:[%s9 + $0xc] sm:$0xf]
    %v1950 = vld [vmem:[%s9 + $0x10] sm:$0xf]
    %v1951 = vld [vmem:[%s9 + $0x14] sm:$0xf]
    %v1952 = vld [vmem:[%s9 + $0x18] sm:$0xf]
    %v1953 = vld [vmem:[%s9 + $0x1c] sm:$0xf]
    %v1954 = vld [vmem:[%s9 + $0x20] sm:$0xf]
    %v1955 = vld [vmem:[%s9 + $0x24] sm:$0xf]
    %v1956 = vld [vmem:[%s9 + $0x28] sm:$0xf]
    %v1957 = vld [vmem:[%s9 + $0x2c] sm:$0xf]
    %v1958 = vld [vmem:[%s9 + $0x30] sm:$0xf]
    %v1959 = vld [vmem:[%s9 + $0x34] sm:$0xf]
    %v1960 = vld [vmem:[%s9 + $0x38] sm:$0xf]
    %v1961 = vld [vmem:[%s9 + $0x3c] sm:$0xf]
    %v1962 = vld [vmem:[%s10] sm:$0x1]
    %v1964 = vlaneseq
    %v1965 = vshrl.u32 %v1964, 7
    %v1966 = vsub.s32 0, %v1965
    %v1967 = vrot.slane %v1962, %v1966
    %v1985 = vunpack.c.l.b16 %v1946
    %v1986 = vunpack.c.l.b16 %v1947
    %v1987 = vunpack.c.l.b16 %v1948
    %v1988 = vunpack.c.l.b16 %v1949
    %v1989 = vunpack.c.l.b16 %v1950
    %v1990 = vunpack.c.l.b16 %v1951
    %v1991 = vunpack.c.l.b16 %v1952
    %v1992 = vunpack.c.l.b16 %v1953
    %v1993 = vunpack.c.l.b16 %v1954
    %v1994 = vunpack.c.l.b16 %v1955
    %v1995 = vunpack.c.l.b16 %v1956
    %v1996 = vunpack.c.l.b16 %v1957
    %v1997 = vunpack.c.l.b16 %v1958
    %v1998 = vunpack.c.l.b16 %v1959
    %v1999 = vunpack.c.l.b16 %v1960
    %v2000 = vunpack.c.l.b16 %v1961
    %v2001 = vpack.c.b16 %v1986, %v1985
    %v2002 = vpack.c.b16 %v1988, %v1987
    %v2003 = vpack.c.b16 %v1990, %v1989
    %v2004 = vpack.c.b16 %v1992, %v1991
    %v2005 = vpack.c.b16 %v1994, %v1993
    %v2006 = vpack.c.b16 %v1996, %v1995
    %v2007 = vpack.c.b16 %v1998, %v1997
    %v2008 = vpack.c.b16 %v2000, %v1999
    %2017 = vmatprep.subr.bf16.mxu0 0
    %2018 = vmatpush1.bf16.msra.mxu0 %v2001
    %2019 = vmatprep.subr.bf16.mxu0 0
    %2020 = vmatpush1.bf16.msra.mxu0 %v2002
    %2021 = vmatprep.subr.bf16.mxu0 0
    %2022 = vmatpush1.bf16.msra.mxu0 %v2003
    %2023 = vmatprep.subr.bf16.mxu0 0
    %2024 = vmatpush1.bf16.msra.mxu0 %v2004
    %2025 = vmatprep.subr.bf16.mxu0 0
    %2026 = vmatpush1.bf16.msra.mxu0 %v2005
    %2027 = vmatprep.subr.bf16.mxu0 0
    %2028 = vmatpush1.bf16.msra.mxu0 %v2006
    %2029 = vmatprep.subr.bf16.mxu0 0
    %2030 = vmatpush1.bf16.msra.mxu0 %v2007
    %2031 = vmatprep.subr.bf16.mxu0 0
    %2032 = vmatpush1.bf16.msra.mxu0 %v2008
    %2033 = vmatprep.subr.bf16.mxu0 0
    %2034 = vmatpush1.bf16.msra.mxu0 0
    %2035 = vmatprep.subr.bf16.mxu0 0
    %2036 = vmatpush1.bf16.msra.mxu0 0
    %2037 = vmatprep.subr.bf16.mxu0 0
    %2038 = vmatpush1.bf16.msra.mxu0 0
    %2039 = vmatprep.subr.bf16.mxu0 0
    %2040 = vmatpush1.bf16.msra.mxu0 0
    %2041 = vmatprep.subr.bf16.mxu0 0
    %2042 = vmatpush1.bf16.msra.mxu0 0
    %2043 = vmatprep.subr.bf16.mxu0 0
    %2044 = vmatpush1.bf16.msra.mxu0 0
    %2045 = vmatprep.subr.bf16.mxu0 0
    %2046 = vmatpush1.bf16.msra.mxu0 0
    %2047 = vmatprep.subr.bf16.mxu0 0
    %2048 = vmatpush1.bf16.msra.mxu0 0
    %2049 = vmatprep.mubr.bf16.mxu0 0
    %2050 = vmatmul.mubr.bf16.gmra.mrb[0].mxu0 %v1945
    %v2051 = vpop.f32.mrb[0].mxu0
    %v2052 = vadd.f32 %v1967, %v2051
    %v2053 = vpop.f32.mrb[0].mxu0
    %v2054 = vpop.f32.mrb[0].mxu0
    %v2055 = vadd.f32 %v1967, %v2054
    %v2056 = vpop.f32.mrb[0].mxu0
    %2057 = vdwg.mxu0
    %v2058 = vadd.f32 %v699, %v2052
    %v2059 = vadd.f32 %v700, %v2055
    %v2060 = vld [vmem:[%s11] sm:$0x1]
    %v2061 = vld [vmem:[%s12] sm:$0x1]
    %2062 = vadd.xlane.f32.xlu0 %v2058
    %v2063 = vpop.xlane.xlu0 %2062
    %2064 = vadd.xlane.f32.xlu0 %v2059
    %v2065 = vpop.xlane.xlu0 %2064
    %v2066 = vmul.f32 %v2063, %v711
    %v2067 = vmul.f32 %v2065, %v711
    %v2068 = vsub.f32 %v2058, %v2066
    %v2069 = vsub.f32 %v2059, %v2067
    %v2070 = vmul.f32 %v2068, %v2068
    %v2071 = vmul.f32 %v2069, %v2069
    %2072 = vadd.xlane.f32.xlu0 %v2070
    %v2073 = vpop.xlane.xlu0 %2072
    %2074 = vadd.xlane.f32.xlu0 %v2071
    %v2075 = vpop.xlane.xlu0 %2074
    %v2076 = vmul.f32 %v2073, %v711
    %v2077 = vmul.f32 %v2075, %v711
    %v2078 = vadd.f32 %v2076, 1e-06
    %v2079 = vadd.f32 %v2077, 1e-06
    %v2080 = vrsqrt.pop %v2078
    %v2081 = vrsqrt.pop %v2079
    %v2082 = vmul.f32 %v2068, %v2080
    %v2083 = vmul.f32 %v2069, %v2081
    %v2085 = vlaneseq
    %v2086 = vshrl.u32 %v2085, 7
    %v2087 = vsub.s32 0, %v2086
    %v2088 = vrot.slane %v2060, %v2087
    %v2090 = vmul.f32 %v2082, %v2088
    %v2091 = vmul.f32 %v2083, %v2088
    %v2093 = vlaneseq
    %v2094 = vshrl.u32 %v2093, 7
    %v2095 = vsub.s32 0, %v2094
    %v2096 = vrot.slane %v2061, %v2095
    %v2098 = vadd.f32 %v2090, %v2096
    %v2099 = vadd.f32 %v2091, %v2096
    %v2100 = vpack.c.bf16 %v2099, %v2098
    %v2101 = vld [vmem:[%s13] sm:$0xff]
    %v2102 = vld [vmem:[%s13 + $0x8] sm:$0xff]
    %v2103 = vld [vmem:[%s13 + $0x10] sm:$0xff]
    %v2104 = vld [vmem:[%s13 + $0x18] sm:$0xff]
    %v2105 = vld [vmem:[%s13 + $0x20] sm:$0xff]
    %v2106 = vld [vmem:[%s13 + $0x28] sm:$0xff]
    %v2107 = vld [vmem:[%s13 + $0x30] sm:$0xff]
    %v2108 = vld [vmem:[%s13 + $0x38] sm:$0xff]
    %v2109 = vld [vmem:[%s13 + $0x40] sm:$0xff]
    %v2110 = vld [vmem:[%s13 + $0x48] sm:$0xff]
    %v2111 = vld [vmem:[%s13 + $0x50] sm:$0xff]
    %v2112 = vld [vmem:[%s13 + $0x58] sm:$0xff]
    %v2113 = vld [vmem:[%s13 + $0x60] sm:$0xff]
    %v2114 = vld [vmem:[%s13 + $0x68] sm:$0xff]
    %v2115 = vld [vmem:[%s13 + $0x70] sm:$0xff]
    %v2116 = vld [vmem:[%s13 + $0x78] sm:$0xff]
    %v2117 = vld [vmem:[%s13 + $0x80] sm:$0xff]
    %v2118 = vld [vmem:[%s13 + $0x88] sm:$0xff]
    %v2119 = vld [vmem:[%s13 + $0x90] sm:$0xff]
    %v2120 = vld [vmem:[%s13 + $0x98] sm:$0xff]
    %v2121 = vld [vmem:[%s13 + $0xa0] sm:$0xff]
    %v2122 = vld [vmem:[%s13 + $0xa8] sm:$0xff]
    %v2123 = vld [vmem:[%s13 + $0xb0] sm:$0xff]
    %v2124 = vld [vmem:[%s13 + $0xb8] sm:$0xff]
    %v2125 = vld [vmem:[%s13 + $0xc0] sm:$0xff]
    %v2126 = vld [vmem:[%s13 + $0xc8] sm:$0xff]
    %v2127 = vld [vmem:[%s13 + $0xd0] sm:$0xff]
    %v2128 = vld [vmem:[%s13 + $0xd8] sm:$0xff]
    %v2129 = vld [vmem:[%s13 + $0xe0] sm:$0xff]
    %v2130 = vld [vmem:[%s13 + $0xe8] sm:$0xff]
    %v2131 = vld [vmem:[%s13 + $0xf0] sm:$0xff]
    %v2132 = vld [vmem:[%s13 + $0xf8] sm:$0xff]
    %v2133 = vld [vmem:[%s14] sm:$0xf]
    %v2135 = vlaneseq
    %v2136 = vshrl.u32 %v2135, 7
    %v2137 = vsub.s32 0, %v2136
    %v2138 = vrot.slane %v2133, %v2137
    %v2139 = vlaneseq
    %v2140 = vshrl.u32 %v2139, 7
    %v2141 = vsub.s32 1, %v2140
    %v2142 = vrot.slane %v2133, %v2141
    %v2143 = vlaneseq
    %v2144 = vshrl.u32 %v2143, 7
    %v2145 = vsub.s32 2, %v2144
    %v2146 = vrot.slane %v2133, %v2145
    %v2147 = vlaneseq
    %v2148 = vshrl.u32 %v2147, 7
    %v2149 = vsub.s32 3, %v2148
    %v2150 = vrot.slane %v2133, %v2149
    %v2187 = vunpack.c.l.b16 %v2101
    %v2188 = vunpack.c.h.b16 %v2101
    %v2189 = vunpack.c.l.b16 %v2102
    %v2190 = vunpack.c.h.b16 %v2102
    %v2191 = vunpack.c.l.b16 %v2103
    %v2192 = vunpack.c.h.b16 %v2103
    %v2193 = vunpack.c.l.b16 %v2104
    %v2194 = vunpack.c.h.b16 %v2104
    %v2195 = vunpack.c.l.b16 %v2105
    %v2196 = vunpack.c.h.b16 %v2105
    %v2197 = vunpack.c.l.b16 %v2106
    %v2198 = vunpack.c.h.b16 %v2106
    %v2199 = vunpack.c.l.b16 %v2107
    %v2200 = vunpack.c.h.b16 %v2107
    %v2201 = vunpack.c.l.b16 %v2108
    %v2202 = vunpack.c.h.b16 %v2108
    %v2203 = vunpack.c.l.b16 %v2109
    %v2204 = vunpack.c.h.b16 %v2109
    %v2205 = vunpack.c.l.b16 %v2110
    %v2206 = vunpack.c.h.b16 %v2110
    %v2207 = vunpack.c.l.b16 %v2111
    %v2208 = vunpack.c.h.b16 %v2111
    %v2209 = vunpack.c.l.b16 %v2112
    %v2210 = vunpack.c.h.b16 %v2112
    %v2211 = vunpack.c.l.b16 %v2113
    %v2212 = vunpack.c.h.b16 %v2113
    %v2213 = vunpack.c.l.b16 %v2114
    %v2214 = vunpack.c.h.b16 %v2114
    %v2215 = vunpack.c.l.b16 %v2115
    %v2216 = vunpack.c.h.b16 %v2115
    %v2217 = vunpack.c.l.b16 %v2116
    %v2218 = vunpack.c.h.b16 %v2116
    %v2219 = vunpack.c.l.b16 %v2117
    %v2220 = vunpack.c.h.b16 %v2117
    %v2221 = vunpack.c.l.b16 %v2118
    %v2222 = vunpack.c.h.b16 %v2118
    %v2223 = vunpack.c.l.b16 %v2119
    %v2224 = vunpack.c.h.b16 %v2119
    %v2225 = vunpack.c.l.b16 %v2120
    %v2226 = vunpack.c.h.b16 %v2120
    %v2227 = vunpack.c.l.b16 %v2121
    %v2228 = vunpack.c.h.b16 %v2121
    %v2229 = vunpack.c.l.b16 %v2122
    %v2230 = vunpack.c.h.b16 %v2122
    %v2231 = vunpack.c.l.b16 %v2123
    %v2232 = vunpack.c.h.b16 %v2123
    %v2233 = vunpack.c.l.b16 %v2124
    %v2234 = vunpack.c.h.b16 %v2124
    %v2235 = vunpack.c.l.b16 %v2125
    %v2236 = vunpack.c.h.b16 %v2125
    %v2237 = vunpack.c.l.b16 %v2126
    %v2238 = vunpack.c.h.b16 %v2126
    %v2239 = vunpack.c.l.b16 %v2127
    %v2240 = vunpack.c.h.b16 %v2127
    %v2241 = vunpack.c.l.b16 %v2128
    %v2242 = vunpack.c.h.b16 %v2128
    %v2243 = vunpack.c.l.b16 %v2129
    %v2244 = vunpack.c.h.b16 %v2129
    %v2245 = vunpack.c.l.b16 %v2130
    %v2246 = vunpack.c.h.b16 %v2130
    %v2247 = vunpack.c.l.b16 %v2131
    %v2248 = vunpack.c.h.b16 %v2131
    %v2249 = vunpack.c.l.b16 %v2132
    %v2250 = vunpack.c.h.b16 %v2132
    %v2251 = vpack.c.b16 %v2191, %v2187
    %v2252 = vpack.c.b16 %v2192, %v2188
    %v2253 = vpack.c.b16 %v2193, %v2189
    %v2254 = vpack.c.b16 %v2194, %v2190
    %v2255 = vpack.c.b16 %v2199, %v2195
    %v2256 = vpack.c.b16 %v2200, %v2196
    %v2257 = vpack.c.b16 %v2201, %v2197
    %v2258 = vpack.c.b16 %v2202, %v2198
    %v2259 = vpack.c.b16 %v2207, %v2203
    %v2260 = vpack.c.b16 %v2208, %v2204
    %v2261 = vpack.c.b16 %v2209, %v2205
    %v2262 = vpack.c.b16 %v2210, %v2206
    %v2263 = vpack.c.b16 %v2215, %v2211
    %v2264 = vpack.c.b16 %v2216, %v2212
    %v2265 = vpack.c.b16 %v2217, %v2213
    %v2266 = vpack.c.b16 %v2218, %v2214
    %v2267 = vpack.c.b16 %v2223, %v2219
    %v2268 = vpack.c.b16 %v2224, %v2220
    %v2269 = vpack.c.b16 %v2225, %v2221
    %v2270 = vpack.c.b16 %v2226, %v2222
    %v2271 = vpack.c.b16 %v2231, %v2227
    %v2272 = vpack.c.b16 %v2232, %v2228
    %v2273 = vpack.c.b16 %v2233, %v2229
    %v2274 = vpack.c.b16 %v2234, %v2230
    %v2275 = vpack.c.b16 %v2239, %v2235
    %v2276 = vpack.c.b16 %v2240, %v2236
    %v2277 = vpack.c.b16 %v2241, %v2237
    %v2278 = vpack.c.b16 %v2242, %v2238
    %v2279 = vpack.c.b16 %v2247, %v2243
    %v2280 = vpack.c.b16 %v2248, %v2244
    %v2281 = vpack.c.b16 %v2249, %v2245
    %v2282 = vpack.c.b16 %v2250, %v2246
    %2315 = vmatprep.subr.bf16.mxu0 %v2252
    %2316 = vmatpush1.bf16.msra.mxu0 %v2251
    %2317 = vmatprep.subr.bf16.mxu0 %v2256
    %2318 = vmatpush1.bf16.msra.mxu0 %v2255
    %2319 = vmatprep.subr.bf16.mxu0 %v2260
    %2320 = vmatpush1.bf16.msra.mxu0 %v2259
    %2321 = vmatprep.subr.bf16.mxu0 %v2264
    %2322 = vmatpush1.bf16.msra.mxu0 %v2263
    %2323 = vmatprep.subr.bf16.mxu0 %v2268
    %2324 = vmatpush1.bf16.msra.mxu0 %v2267
    %2325 = vmatprep.subr.bf16.mxu0 %v2272
    %2326 = vmatpush1.bf16.msra.mxu0 %v2271
    %2327 = vmatprep.subr.bf16.mxu0 %v2276
    %2328 = vmatpush1.bf16.msra.mxu0 %v2275
    %2329 = vmatprep.subr.bf16.mxu0 %v2280
    %2330 = vmatpush1.bf16.msra.mxu0 %v2279
    %2331 = vmatprep.subr.bf16.mxu0 0
    %2332 = vmatpush1.bf16.msra.mxu0 0
    %2333 = vmatprep.subr.bf16.mxu0 0
    %2334 = vmatpush1.bf16.msra.mxu0 0
    %2335 = vmatprep.subr.bf16.mxu0 0
    %2336 = vmatpush1.bf16.msra.mxu0 0
    %2337 = vmatprep.subr.bf16.mxu0 0
    %2338 = vmatpush1.bf16.msra.mxu0 0
    %2339 = vmatprep.subr.bf16.mxu0 0
    %2340 = vmatpush1.bf16.msra.mxu0 0
    %2341 = vmatprep.subr.bf16.mxu0 0
    %2342 = vmatpush1.bf16.msra.mxu0 0
    %2343 = vmatprep.subr.bf16.mxu0 0
    %2344 = vmatpush1.bf16.msra.mxu0 0
    %2345 = vmatprep.subr.bf16.mxu0 0
    %2346 = vmatpush1.bf16.msra.mxu0 0
    %2347 = vmatprep.mubr.bf16.mxu0 0
    %2348 = vmatmul.mubr.bf16.gmra.mrb[0].mxu0 %v2100
    %v2349 = vpop.f32.mrb[0].mxu0
    %v2350 = vadd.f32 %v2138, %v2349
    %v2351 = vpop.f32.mrb[0].mxu0
    %v2352 = vadd.f32 %v2142, %v2351
    %v2353 = vpop.f32.mrb[0].mxu0
    %v2354 = vadd.f32 %v2138, %v2353
    %v2355 = vpop.f32.mrb[0].mxu0
    %v2356 = vadd.f32 %v2142, %v2355
    %2357 = vdwg.mxu0
    %2358 = vmatprep.subr.bf16.mxu0 %v2254
    %2359 = vmatpush1.bf16.msra.mxu0 %v2253
    %2360 = vmatprep.subr.bf16.mxu0 %v2258
    %2361 = vmatpush1.bf16.msra.mxu0 %v2257
    %2362 = vmatprep.subr.bf16.mxu0 %v2262
    %2363 = vmatpush1.bf16.msra.mxu0 %v2261
    %2364 = vmatprep.subr.bf16.mxu0 %v2266
    %2365 = vmatpush1.bf16.msra.mxu0 %v2265
    %2366 = vmatprep.subr.bf16.mxu0 %v2270
    %2367 = vmatpush1.bf16.msra.mxu0 %v2269
    %2368 = vmatprep.subr.bf16.mxu0 %v2274
    %2369 = vmatpush1.bf16.msra.mxu0 %v2273
    %2370 = vmatprep.subr.bf16.mxu0 %v2278
    %2371 = vmatpush1.bf16.msra.mxu0 %v2277
    %2372 = vmatprep.subr.bf16.mxu0 %v2282
    %2373 = vmatpush1.bf16.msra.mxu0 %v2281
    %2374 = vmatprep.subr.bf16.mxu0 0
    %2375 = vmatpush1.bf16.msra.mxu0 0
    %2376 = vmatprep.subr.bf16.mxu0 0
    %2377 = vmatpush1.bf16.msra.mxu0 0
    %2378 = vmatprep.subr.bf16.mxu0 0
    %2379 = vmatpush1.bf16.msra.mxu0 0
    %2380 = vmatprep.subr.bf16.mxu0 0
    %2381 = vmatpush1.bf16.msra.mxu0 0
    %2382 = vmatprep.subr.bf16.mxu0 0
    %2383 = vmatpush1.bf16.msra.mxu0 0
    %2384 = vmatprep.subr.bf16.mxu0 0
    %2385 = vmatpush1.bf16.msra.mxu0 0
    %2386 = vmatprep.subr.bf16.mxu0 0
    %2387 = vmatpush1.bf16.msra.mxu0 0
    %2388 = vmatprep.subr.bf16.mxu0 0
    %2389 = vmatpush1.bf16.msra.mxu0 0
    %2390 = vmatprep.mubr.bf16.mxu0 0
    %2391 = vmatmul.mubr.bf16.gmra.mrb[0].mxu0 %v2100
    %v2392 = vpop.f32.mrb[0].mxu0
    %v2393 = vadd.f32 %v2146, %v2392
    %v2394 = vpop.f32.mrb[0].mxu0
    %v2395 = vadd.f32 %v2150, %v2394
    %v2396 = vpop.f32.mrb[0].mxu0
    %v2397 = vadd.f32 %v2146, %v2396
    %v2398 = vpop.f32.mrb[0].mxu0
    %v2399 = vadd.f32 %v2150, %v2398
    %2400 = vdwg.mxu0
    %v2401 = vmul.f32 %v2350, %v2350
    %v2402 = vmul.f32 %v2352, %v2352
    %v2403 = vmul.f32 %v2393, %v2393
    %v2404 = vmul.f32 %v2395, %v2395
    %v2405 = vmul.f32 %v2354, %v2354
    %v2406 = vmul.f32 %v2356, %v2356
    %v2407 = vmul.f32 %v2397, %v2397
    %v2408 = vmul.f32 %v2399, %v2399
    %v2409 = vmul.f32 %v2350, %v2401
    %v2410 = vmul.f32 %v2352, %v2402
    %v2411 = vmul.f32 %v2393, %v2403
    %v2412 = vmul.f32 %v2395, %v2404
    %v2413 = vmul.f32 %v2354, %v2405
    %v2414 = vmul.f32 %v2356, %v2406
    %v2415 = vmul.f32 %v2397, %v2407
    %v2416 = vmul.f32 %v2399, %v2408
    %v2417 = vmul.f32 %v2409, 0.044715
    %v2418 = vmul.f32 %v2410, 0.044715
    %v2419 = vmul.f32 %v2411, 0.044715
    %v2420 = vmul.f32 %v2412, 0.044715
    %v2421 = vmul.f32 %v2413, 0.044715
    %v2422 = vmul.f32 %v2414, 0.044715
    %v2423 = vmul.f32 %v2415, 0.044715
    %v2424 = vmul.f32 %v2416, 0.044715
    %v2425 = vadd.f32 %v2350, %v2417
    %v2426 = vadd.f32 %v2352, %v2418
    %v2427 = vadd.f32 %v2393, %v2419
    %v2428 = vadd.f32 %v2395, %v2420
    %v2429 = vadd.f32 %v2354, %v2421
    %v2430 = vadd.f32 %v2356, %v2422
    %v2431 = vadd.f32 %v2397, %v2423
    %v2432 = vadd.f32 %v2399, %v2424
    %v2433 = vmul.f32 %v2425, 0.7978846
    %v2434 = vmul.f32 %v2426, 0.7978846
    %v2435 = vmul.f32 %v2427, 0.7978846
    %v2436 = vmul.f32 %v2428, 0.7978846
    %v2437 = vmul.f32 %v2429, 0.7978846
    %v2438 = vmul.f32 %v2430, 0.7978846
    %v2439 = vmul.f32 %v2431, 0.7978846
    %v2440 = vmul.f32 %v2432, 0.7978846
    %v2441 = vtanh.pop %v2433
    %v2442 = vtanh.pop %v2434
    %v2443 = vtanh.pop %v2435
    %v2444 = vtanh.pop %v2436
    %v2445 = vtanh.pop %v2437
    %v2446 = vtanh.pop %v2438
    %v2447 = vtanh.pop %v2439
    %v2448 = vtanh.pop %v2440
    %v2449 = vadd.f32 %v2441, 1.0
    %v2450 = vadd.f32 %v2442, 1.0
    %v2451 = vadd.f32 %v2443, 1.0
    %v2452 = vadd.f32 %v2444, 1.0
    %v2453 = vadd.f32 %v2445, 1.0
    %v2454 = vadd.f32 %v2446, 1.0
    %v2455 = vadd.f32 %v2447, 1.0
    %v2456 = vadd.f32 %v2448, 1.0
    %v2457 = vmul.f32 %v2449, 0.5
    %v2458 = vmul.f32 %v2450, 0.5
    %v2459 = vmul.f32 %v2451, 0.5
    %v2460 = vmul.f32 %v2452, 0.5
    %v2461 = vmul.f32 %v2453, 0.5
    %v2462 = vmul.f32 %v2454, 0.5
    %v2463 = vmul.f32 %v2455, 0.5
    %v2464 = vmul.f32 %v2456, 0.5
    %v2465 = vmul.f32 %v2350, %v2457
    %v2466 = vmul.f32 %v2352, %v2458
    %v2467 = vmul.f32 %v2393, %v2459
    %v2468 = vmul.f32 %v2395, %v2460
    %v2469 = vmul.f32 %v2354, %v2461
    %v2470 = vmul.f32 %v2356, %v2462
    %v2471 = vmul.f32 %v2397, %v2463
    %v2472 = vmul.f32 %v2399, %v2464
    %v2473 = vpack.c.bf16 %v2469, %v2465
    %v2474 = vpack.c.bf16 %v2470, %v2466
    %v2475 = vpack.c.bf16 %v2471, %v2467
    %v2476 = vpack.c.bf16 %v2472, %v2468
    %v2477 = vld [vmem:[%s15] sm:$0xf]
    %v2478 = vld [vmem:[%s15 + $0x4] sm:$0xf]
    %v2479 = vld [vmem:[%s15 + $0x8] sm:$0xf]
    %v2480 = vld [vmem:[%s15 + $0xc] sm:$0xf]
    %v2481 = vld [vmem:[%s15 + $0x10] sm:$0xf]
    %v2482 = vld [vmem:[%s15 + $0x14] sm:$0xf]
    %v2483 = vld [vmem:[%s15 + $0x18] sm:$0xf]
    %v2484 = vld [vmem:[%s15 + $0x1c] sm:$0xf]
    %v2485 = vld [vmem:[%s15 + $0x20] sm:$0xf]
    %v2486 = vld [vmem:[%s15 + $0x24] sm:$0xf]
    %v2487 = vld [vmem:[%s15 + $0x28] sm:$0xf]
    %v2488 = vld [vmem:[%s15 + $0x2c] sm:$0xf]
    %v2489 = vld [vmem:[%s15 + $0x30] sm:$0xf]
    %v2490 = vld [vmem:[%s15 + $0x34] sm:$0xf]
    %v2491 = vld [vmem:[%s15 + $0x38] sm:$0xf]
    %v2492 = vld [vmem:[%s15 + $0x3c] sm:$0xf]
    %v2493 = vld [vmem:[%s15 + $0x40] sm:$0xf]
    %v2494 = vld [vmem:[%s15 + $0x44] sm:$0xf]
    %v2495 = vld [vmem:[%s15 + $0x48] sm:$0xf]
    %v2496 = vld [vmem:[%s15 + $0x4c] sm:$0xf]
    %v2497 = vld [vmem:[%s15 + $0x50] sm:$0xf]
    %v2498 = vld [vmem:[%s15 + $0x54] sm:$0xf]
    %v2499 = vld [vmem:[%s15 + $0x58] sm:$0xf]
    %v2500 = vld [vmem:[%s15 + $0x5c] sm:$0xf]
    %v2501 = vld [vmem:[%s15 + $0x60] sm:$0xf]
    %v2502 = vld [vmem:[%s15 + $0x64] sm:$0xf]
    %v2503 = vld [vmem:[%s15 + $0x68] sm:$0xf]
    %v2504 = vld [vmem:[%s15 + $0x6c] sm:$0xf]
    %v2505 = vld [vmem:[%s15 + $0x70] sm:$0xf]
    %v2506 = vld [vmem:[%s15 + $0x74] sm:$0xf]
    %v2507 = vld [vmem:[%s15 + $0x78] sm:$0xf]
    %v2508 = vld [vmem:[%s15 + $0x7c] sm:$0xf]
    %v2509 = vld [vmem:[%s15 + $0x80] sm:$0xf]
    %v2510 = vld [vmem:[%s15 + $0x84] sm:$0xf]
    %v2511 = vld [vmem:[%s15 + $0x88] sm:$0xf]
    %v2512 = vld [vmem:[%s15 + $0x8c] sm:$0xf]
    %v2513 = vld [vmem:[%s15 + $0x90] sm:$0xf]
    %v2514 = vld [vmem:[%s15 + $0x94] sm:$0xf]
    %v2515 = vld [vmem:[%s15 + $0x98] sm:$0xf]
    %v2516 = vld [vmem:[%s15 + $0x9c] sm:$0xf]
    %v2517 = vld [vmem:[%s15 + $0xa0] sm:$0xf]
    %v2518 = vld [vmem:[%s15 + $0xa4] sm:$0xf]
    %v2519 = vld [vmem:[%s15 + $0xa8] sm:$0xf]
    %v2520 = vld [vmem:[%s15 + $0xac] sm:$0xf]
    %v2521 = vld [vmem:[%s15 + $0xb0] sm:$0xf]
    %v2522 = vld [vmem:[%s15 + $0xb4] sm:$0xf]
    %v2523 = vld [vmem:[%s15 + $0xb8] sm:$0xf]
    %v2524 = vld [vmem:[%s15 + $0xbc] sm:$0xf]
    %v2525 = vld [vmem:[%s15 + $0xc0] sm:$0xf]
    %v2526 = vld [vmem:[%s15 + $0xc4] sm:$0xf]
    %v2527 = vld [vmem:[%s15 + $0xc8] sm:$0xf]
    %v2528 = vld [vmem:[%s15 + $0xcc] sm:$0xf]
    %v2529 = vld [vmem:[%s15 + $0xd0] sm:$0xf]
    %v2530 = vld [vmem:[%s15 + $0xd4] sm:$0xf]
    %v2531 = vld [vmem:[%s15 + $0xd8] sm:$0xf]
    %v2532 = vld [vmem:[%s15 + $0xdc] sm:$0xf]
    %v2533 = vld [vmem:[%s15 + $0xe0] sm:$0xf]
    %v2534 = vld [vmem:[%s15 + $0xe4] sm:$0xf]
    %v2535 = vld [vmem:[%s15 + $0xe8] sm:$0xf]
    %v2536 = vld [vmem:[%s15 + $0xec] sm:$0xf]
    %v2537 = vld [vmem:[%s15 + $0xf0] sm:$0xf]
    %v2538 = vld [vmem:[%s15 + $0xf4] sm:$0xf]
    %v2539 = vld [vmem:[%s15 + $0xf8] sm:$0xf]
    %v2540 = vld [vmem:[%s15 + $0xfc] sm:$0xf]
    %v2541 = vld [vmem:[#allocation8] sm:$0x1]
    %v2543 = vlaneseq
    %v2544 = vshrl.u32 %v2543, 7
    %v2545 = vsub.s32 0, %v2544
    %v2546 = vrot.slane %v2541, %v2545
    %v2612 = vunpack.c.l.b16 %v2477
    %v2613 = vunpack.c.l.b16 %v2478
    %v2614 = vunpack.c.l.b16 %v2479
    %v2615 = vunpack.c.l.b16 %v2480
    %v2616 = vunpack.c.l.b16 %v2481
    %v2617 = vunpack.c.l.b16 %v2482
    %v2618 = vunpack.c.l.b16 %v2483
    %v2619 = vunpack.c.l.b16 %v2484
    %v2620 = vunpack.c.l.b16 %v2485
    %v2621 = vunpack.c.l.b16 %v2486
    %v2622 = vunpack.c.l.b16 %v2487
    %v2623 = vunpack.c.l.b16 %v2488
    %v2624 = vunpack.c.l.b16 %v2489
    %v2625 = vunpack.c.l.b16 %v2490
    %v2626 = vunpack.c.l.b16 %v2491
    %v2627 = vunpack.c.l.b16 %v2492
    %v2628 = vunpack.c.l.b16 %v2493
    %v2629 = vunpack.c.l.b16 %v2494
    %v2630 = vunpack.c.l.b16 %v2495
    %v2631 = vunpack.c.l.b16 %v2496
    %v2632 = vunpack.c.l.b16 %v2497
    %v2633 = vunpack.c.l.b16 %v2498
    %v2634 = vunpack.c.l.b16 %v2499
    %v2635 = vunpack.c.l.b16 %v2500
    %v2636 = vunpack.c.l.b16 %v2501
    %v2637 = vunpack.c.l.b16 %v2502
    %v2638 = vunpack.c.l.b16 %v2503
    %v2639 = vunpack.c.l.b16 %v2504
    %v2640 = vunpack.c.l.b16 %v2505
    %v2641 = vunpack.c.l.b16 %v2506
    %v2642 = vunpack.c.l.b16 %v2507
    %v2643 = vunpack.c.l.b16 %v2508
    %v2644 = vunpack.c.l.b16 %v2509
    %v2645 = vunpack.c.l.b16 %v2510
    %v2646 = vunpack.c.l.b16 %v2511
    %v2647 = vunpack.c.l.b16 %v2512
    %v2648 = vunpack.c.l.b16 %v2513
    %v2649 = vunpack.c.l.b16 %v2514
    %v2650 = vunpack.c.l.b16 %v2515
    %v2651 = vunpack.c.l.b16 %v2516
    %v2652 = vunpack.c.l.b16 %v2517
    %v2653 = vunpack.c.l.b16 %v2518
    %v2654 = vunpack.c.l.b16 %v2519
    %v2655 = vunpack.c.l.b16 %v2520
    %v2656 = vunpack.c.l.b16 %v2521
    %v2657 = vunpack.c.l.b16 %v2522
    %v2658 = vunpack.c.l.b16 %v2523
    %v2659 = vunpack.c.l.b16 %v2524
    %v2660 = vunpack.c.l.b16 %v2525
    %v2661 = vunpack.c.l.b16 %v2526
    %v2662 = vunpack.c.l.b16 %v2527
    %v2663 = vunpack.c.l.b16 %v2528
    %v2664 = vunpack.c.l.b16 %v2529
    %v2665 = vunpack.c.l.b16 %v2530
    %v2666 = vunpack.c.l.b16 %v2531
    %v2667 = vunpack.c.l.b16 %v2532
    %v2668 = vunpack.c.l.b16 %v2533
    %v2669 = vunpack.c.l.b16 %v2534
    %v2670 = vunpack.c.l.b16 %v2535
    %v2671 = vunpack.c.l.b16 %v2536
    %v2672 = vunpack.c.l.b16 %v2537
    %v2673 = vunpack.c.l.b16 %v2538
    %v2674 = vunpack.c.l.b16 %v2539
    %v2675 = vunpack.c.l.b16 %v2540
    %v2676 = vpack.c.b16 %v2613, %v2612
    %v2677 = vpack.c.b16 %v2615, %v2614
    %v2678 = vpack.c.b16 %v2617, %v2616
    %v2679 = vpack.c.b16 %v2619, %v2618
    %v2680 = vpack.c.b16 %v2621, %v2620
    %v2681 = vpack.c.b16 %v2623, %v2622
    %v2682 = vpack.c.b16 %v2625, %v2624
    %v2683 = vpack.c.b16 %v2627, %v2626
    %v2684 = vpack.c.b16 %v2629, %v2628
    %v2685 = vpack.c.b16 %v2631, %v2630
    %v2686 = vpack.c.b16 %v2633, %v2632
    %v2687 = vpack.c.b16 %v2635, %v2634
    %v2688 = vpack.c.b16 %v2637, %v2636
    %v2689 = vpack.c.b16 %v2639, %v2638
    %v2690 = vpack.c.b16 %v2641, %v2640
    %v2691 = vpack.c.b16 %v2643, %v2642
    %v2692 = vpack.c.b16 %v2645, %v2644
    %v2693 = vpack.c.b16 %v2647, %v2646
    %v2694 = vpack.c.b16 %v2649, %v2648
    %v2695 = vpack.c.b16 %v2651, %v2650
    %v2696 = vpack.c.b16 %v2653, %v2652
    %v2697 = vpack.c.b16 %v2655, %v2654
    %v2698 = vpack.c.b16 %v2657, %v2656
    %v2699 = vpack.c.b16 %v2659, %v2658
    %v2700 = vpack.c.b16 %v2661, %v2660
    %v2701 = vpack.c.b16 %v2663, %v2662
    %v2702 = vpack.c.b16 %v2665, %v2664
    %v2703 = vpack.c.b16 %v2667, %v2666
    %v2704 = vpack.c.b16 %v2669, %v2668
    %v2705 = vpack.c.b16 %v2671, %v2670
    %v2706 = vpack.c.b16 %v2673, %v2672
    %v2707 = vpack.c.b16 %v2675, %v2674
    %2740 = vmatprep.subr.bf16.mxu0 0
    %2741 = vmatpush1.bf16.msra.mxu0 %v2676
    %2742 = vmatprep.subr.bf16.mxu0 0
    %2743 = vmatpush1.bf16.msra.mxu0 %v2677
    %2744 = vmatprep.subr.bf16.mxu0 0
    %2745 = vmatpush1.bf16.msra.mxu0 %v2678
    %2746 = vmatprep.subr.bf16.mxu0 0
    %2747 = vmatpush1.bf16.msra.mxu0 %v2679
    %2748 = vmatprep.subr.bf16.mxu0 0
    %2749 = vmatpush1.bf16.msra.mxu0 %v2680
    %2750 = vmatprep.subr.bf16.mxu0 0
    %2751 = vmatpush1.bf16.msra.mxu0 %v2681
    %2752 = vmatprep.subr.bf16.mxu0 0
    %2753 = vmatpush1.bf16.msra.mxu0 %v2682
    %2754 = vmatprep.subr.bf16.mxu0 0
    %2755 = vmatpush1.bf16.msra.mxu0 %v2683
    %2756 = vmatprep.subr.bf16.mxu0 0
    %2757 = vmatpush1.bf16.msra.mxu0 %v2684
    %2758 = vmatprep.subr.bf16.mxu0 0
    %2759 = vmatpush1.bf16.msra.mxu0 %v2685
    %2760 = vmatprep.subr.bf16.mxu0 0
    %2761 = vmatpush1.bf16.msra.mxu0 %v2686
    %2762 = vmatprep.subr.bf16.mxu0 0
    %2763 = vmatpush1.bf16.msra.mxu0 %v2687
    %2764 = vmatprep.subr.bf16.mxu0 0
    %2765 = vmatpush1.bf16.msra.mxu0 %v2688
    %2766 = vmatprep.subr.bf16.mxu0 0
    %2767 = vmatpush1.bf16.msra.mxu0 %v2689
    %2768 = vmatprep.subr.bf16.mxu0 0
    %2769 = vmatpush1.bf16.msra.mxu0 %v2690
    %2770 = vmatprep.subr.bf16.mxu0 0
    %2771 = vmatpush1.bf16.msra.mxu0 %v2691
    %2772 = vmatprep.mubr.bf16.mxu0 %v2474
    %2773 = vmatmul.mubr.bf16.gmra.mrb[0].mxu0 %v2473
    %v2774 = vpop.f32.mrb[0].mxu0
    %v2775 = vadd.f32 %v2546, %v2774
    %v2776 = vpop.f32.mrb[0].mxu0
    %v2777 = vpop.f32.mrb[0].mxu0
    %v2778 = vadd.f32 %v2546, %v2777
    %v2779 = vpop.f32.mrb[0].mxu0
    %2780 = vdwg.mxu0
    %2781 = vmatprep.subr.bf16.mxu0 0
    %2782 = vmatpush1.bf16.msra.mxu0 %v2692
    %2783 = vmatprep.subr.bf16.mxu0 0
    %2784 = vmatpush1.bf16.msra.mxu0 %v2693
    %2785 = vmatprep.subr.bf16.mxu0 0
    %2786 = vmatpush1.bf16.msra.mxu0 %v2694
    %2787 = vmatprep.subr.bf16.mxu0 0
    %2788 = vmatpush1.bf16.msra.mxu0 %v2695
    %2789 = vmatprep.subr.bf16.mxu0 0
    %2790 = vmatpush1.bf16.msra.mxu0 %v2696
    %2791 = vmatprep.subr.bf16.mxu0 0
    %2792 = vmatpush1.bf16.msra.mxu0 %v2697
    %2793 = vmatprep.subr.bf16.mxu0 0
    %2794 = vmatpush1.bf16.msra.mxu0 %v2698
    %2795 = vmatprep.subr.bf16.mxu0 0
    %2796 = vmatpush1.bf16.msra.mxu0 %v2699
    %2797 = vmatprep.subr.bf16.mxu0 0
    %2798 = vmatpush1.bf16.msra.mxu0 %v2700
    %2799 = vmatprep.subr.bf16.mxu0 0
    %2800 = vmatpush1.bf16.msra.mxu0 %v2701
    %2801 = vmatprep.subr.bf16.mxu0 0
    %2802 = vmatpush1.bf16.msra.mxu0 %v2702
    %2803 = vmatprep.subr.bf16.mxu0 0
    %2804 = vmatpush1.bf16.msra.mxu0 %v2703
    %2805 = vmatprep.subr.bf16.mxu0 0
    %2806 = vmatpush1.bf16.msra.mxu0 %v2704
    %2807 = vmatprep.subr.bf16.mxu0 0
    %2808 = vmatpush1.bf16.msra.mxu0 %v2705
    %2809 = vmatprep.subr.bf16.mxu0 0
    %2810 = vmatpush1.bf16.msra.mxu0 %v2706
    %2811 = vmatprep.subr.bf16.mxu0 0
    %2812 = vmatpush1.bf16.msra.mxu0 %v2707
    %2813 = vmatprep.mubr.bf16.mxu0 %v2476
    %2814 = vmatmul.mubr.bf16.gmra.mrb[0].mxu0 %v2475
    %v2815 = vpop.f32.mrb[0].mxu0
    %v2816 = vadd.f32 %v2775, %v2815
    %v2817 = vpop.f32.mrb[0].mxu0
    %v2818 = vpop.f32.mrb[0].mxu0
    %v2819 = vadd.f32 %v2778, %v2818
    %v2820 = vpop.f32.mrb[0].mxu0
    %2821 = vdwg.mxu0
    %v2822 = vadd.f32 %v2058, %v2816
    %v2823 = vadd.f32 %v2059, %v2819
    %s2824 = scalar_lea.vmem %s5, 1
    %v2825 = vld [vmem:[%s2824] sm:$0x1]
    %s2826 = scalar_lea.vmem %s6, 1
    %v2827 = vld [vmem:[%s2826] sm:$0x1]
    %2828 = vadd.xlane.f32.xlu0 %v2822
    %v2829 = vpop.xlane.xlu0 %2828
    %2830 = vadd.xlane.f32.xlu0 %v2823
    %v2831 = vpop.xlane.xlu0 %2830
    %v2832 = vmul.f32 %v2829, %v711
    %v2833 = vmul.f32 %v2831, %v711
    %v2834 = vsub.f32 %v2822, %v2832
    %v2835 = vsub.f32 %v2823, %v2833
    %v2836 = vmul.f32 %v2834, %v2834
    %v2837 = vmul.f32 %v2835, %v2835
    %2838 = vadd.xlane.f32.xlu0 %v2836
    %v2839 = vpop.xlane.xlu0 %2838
    %2840 = vadd.xlane.f32.xlu0 %v2837
    %v2841 = vpop.xlane.xlu0 %2840
    %v2842 = vmul.f32 %v2839, %v711
    %v2843 = vmul.f32 %v2841, %v711
    %v2844 = vadd.f32 %v2842, 1e-06
    %v2845 = vadd.f32 %v2843, 1e-06
    %v2846 = vrsqrt.pop %v2844
    %v2847 = vrsqrt.pop %v2845
    %v2848 = vmul.f32 %v2834, %v2846
    %v2849 = vmul.f32 %v2835, %v2847
    %v2851 = vlaneseq
    %v2852 = vshrl.u32 %v2851, 7
    %v2853 = vsub.s32 0, %v2852
    %v2854 = vrot.slane %v2825, %v2853
    %v2856 = vmul.f32 %v2848, %v2854
    %v2857 = vmul.f32 %v2849, %v2854
    %v2859 = vlaneseq
    %v2860 = vshrl.u32 %v2859, 7
    %v2861 = vsub.s32 0, %v2860
    %v2862 = vrot.slane %v2827, %v2861
    %v2864 = vadd.f32 %v2856, %v2862
    %v2865 = vadd.f32 %v2857, %v2862
    %v2866 = vpack.c.bf16 %v2865, %v2864
    %s2867 = scalar_lea.vmem [#allocation7], 192
    %v2868 = vld [vmem:[%s2867] sm:$0xff]
    %v2869 = vld [vmem:[%s2867 + $0x8] sm:$0xf]
    %v2870 = vld [vmem:[%s2867 + $0xc] sm:$0xff]
    %v2871 = vld [vmem:[%s2867 + $0x14] sm:$0xf]
    %v2872 = vld [vmem:[%s2867 + $0x18] sm:$0xff]
    %v2873 = vld [vmem:[%s2867 + $0x20] sm:$0xf]
    %v2874 = vld [vmem:[%s2867 + $0x24] sm:$0xff]
    %v2875 = vld [vmem:[%s2867 + $0x2c] sm:$0xf]
    %v2876 = vld [vmem:[%s2867 + $0x30] sm:$0xff]
    %v2877 = vld [vmem:[%s2867 + $0x38] sm:$0xf]
    %v2878 = vld [vmem:[%s2867 + $0x3c] sm:$0xff]
    %v2879 = vld [vmem:[%s2867 + $0x44] sm:$0xf]
    %v2880 = vld [vmem:[%s2867 + $0x48] sm:$0xff]
    %v2881 = vld [vmem:[%s2867 + $0x50] sm:$0xf]
    %v2882 = vld [vmem:[%s2867 + $0x54] sm:$0xff]
    %v2883 = vld [vmem:[%s2867 + $0x5c] sm:$0xf]
    %v2884 = vld [vmem:[%s2867 + $0x60] sm:$0xff]
    %v2885 = vld [vmem:[%s2867 + $0x68] sm:$0xf]
    %v2886 = vld [vmem:[%s2867 + $0x6c] sm:$0xff]
    %v2887 = vld [vmem:[%s2867 + $0x74] sm:$0xf]
    %v2888 = vld [vmem:[%s2867 + $0x78] sm:$0xff]
    %v2889 = vld [vmem:[%s2867 + $0x80] sm:$0xf]
    %v2890 = vld [vmem:[%s2867 + $0x84] sm:$0xff]
    %v2891 = vld [vmem:[%s2867 + $0x8c] sm:$0xf]
    %v2892 = vld [vmem:[%s2867 + $0x90] sm:$0xff]
    %v2893 = vld [vmem:[%s2867 + $0x98] sm:$0xf]
    %v2894 = vld [vmem:[%s2867 + $0x9c] sm:$0xff]
    %v2895 = vld [vmem:[%s2867 + $0xa4] sm:$0xf]
    %v2896 = vld [vmem:[%s2867 + $0xa8] sm:$0xff]
    %v2897 = vld [vmem:[%s2867 + $0xb0] sm:$0xf]
    %v2898 = vld [vmem:[%s2867 + $0xb4] sm:$0xff]
    %v2899 = vld [vmem:[%s2867 + $0xbc] sm:$0xf]
    %s2900 = scalar_lea.vmem %s8, 3
    %v2901 = vld [vmem:[%s2900] sm:$0x7]
    %v2903 = vlaneseq
    %v2904 = vshrl.u32 %v2903, 7
    %v2905 = vsub.s32 0, %v2904
    %v2906 = vrot.slane %v2901, %v2905
    %v2907 = vlaneseq
    %v2908 = vshrl.u32 %v2907, 7
    %v2909 = vsub.s32 1, %v2908
    %v2910 = vrot.slane %v2901, %v2909
    %v2911 = vlaneseq
    %v2912 = vshrl.u32 %v2911, 7
    %v2913 = vsub.s32 2, %v2912
    %v2914 = vrot.slane %v2901, %v2913
    %v2950 = vunpack.c.l.b16 %v2868
    %v2951 = vunpack.c.h.b16 %v2868
    %v2952 = vunpack.c.l.b16 %v2869
    %v2953 = vunpack.c.l.b16 %v2870
    %v2954 = vunpack.c.h.b16 %v2870
    %v2955 = vunpack.c.l.b16 %v2871
    %v2956 = vunpack.c.l.b16 %v2872
    %v2957 = vunpack.c.h.b16 %v2872
    %v2958 = vunpack.c.l.b16 %v2873
    %v2959 = vunpack.c.l.b16 %v2874
    %v2960 = vunpack.c.h.b16 %v2874
    %v2961 = vunpack.c.l.b16 %v2875
    %v2962 = vunpack.c.l.b16 %v2876
    %v2963 = vunpack.c.h.b16 %v2876
    %v2964 = vunpack.c.l.b16 %v2877
    %v2965 = vunpack.c.l.b16 %v2878
    %v2966 = vunpack.c.h.b16 %v2878
    %v2967 = vunpack.c.l.b16 %v2879
    %v2968 = vunpack.c.l.b16 %v2880
    %v2969 = vunpack.c.h.b16 %v2880
    %v2970 = vunpack.c.l.b16 %v2881
    %v2971 = vunpack.c.l.b16 %v2882
    %v2972 = vunpack.c.h.b16 %v2882
    %v2973 = vunpack.c.l.b16 %v2883
    %v2974 = vunpack.c.l.b16 %v2884
    %v2975 = vunpack.c.h.b16 %v2884
    %v2976 = vunpack.c.l.b16 %v2885
    %v2977 = vunpack.c.l.b16 %v2886
    %v2978 = vunpack.c.h.b16 %v2886
    %v2979 = vunpack.c.l.b16 %v2887
    %v2980 = vunpack.c.l.b16 %v2888
    %v2981 = vunpack.c.h.b16 %v2888
    %v2982 = vunpack.c.l.b16 %v2889
    %v2983 = vunpack.c.l.b16 %v2890
    %v2984 = vunpack.c.h.b16 %v2890
    %v2985 = vunpack.c.l.b16 %v2891
    %v2986 = vunpack.c.l.b16 %v2892
    %v2987 = vunpack.c.h.b16 %v2892
    %v2988 = vunpack.c.l.b16 %v2893
    %v2989 = vunpack.c.l.b16 %v2894
    %v2990 = vunpack.c.h.b16 %v2894
    %v2991 = vunpack.c.l.b16 %v2895
    %v2992 = vunpack.c.l.b16 %v2896
    %v2993 = vunpack.c.h.b16 %v2896
    %v2994 = vunpack.c.l.b16 %v2897
    %v2995 = vunpack.c.l.b16 %v2898
    %v2996 = vunpack.c.h.b16 %v2898
    %v2997 = vunpack.c.l.b16 %v2899
    %v2998 = vpack.c.b16 %v2953, %v2950
    %v2999 = vpack.c.b16 %v2954, %v2951
    %v3000 = vpack.c.b16 %v2955, %v2952
    %v3001 = vpack.c.b16 %v2959, %v2956
    %v3002 = vpack.c.b16 %v2960, %v2957
    %v3003 = vpack.c.b16 %v2961, %v2958
    %v3004 = vpack.c.b16 %v2965, %v2962
    %v3005 = vpack.c.b16 %v2966, %v2963
    %v3006 = vpack.c.b16 %v2967, %v2964
    %v3007 = vpack.c.b16 %v2971, %v2968
    %v3008 = vpack.c.b16 %v2972, %v2969
    %v3009 = vpack.c.b16 %v2973, %v2970
    %v3010 = vpack.c.b16 %v2977, %v2974
    %v3011 = vpack.c.b16 %v2978, %v2975
    %v3012 = vpack.c.b16 %v2979, %v2976
    %v3013 = vpack.c.b16 %v2983, %v2980
    %v3014 = vpack.c.b16 %v2984, %v2981
    %v3015 = vpack.c.b16 %v2985, %v2982
    %v3016 = vpack.c.b16 %v2989, %v2986
    %v3017 = vpack.c.b16 %v2990, %v2987
    %v3018 = vpack.c.b16 %v2991, %v2988
    %v3019 = vpack.c.b16 %v2995, %v2992
    %v3020 = vpack.c.b16 %v2996, %v2993
    %v3021 = vpack.c.b16 %v2997, %v2994
    %3046 = vmatprep.subr.bf16.mxu0 %v2999
    %3047 = vmatpush1.bf16.msra.mxu0 %v2998
    %3048 = vmatprep.subr.bf16.mxu0 %v3002
    %3049 = vmatpush1.bf16.msra.mxu0 %v3001
    %3050 = vmatprep.subr.bf16.mxu0 %v3005
    %3051 = vmatpush1.bf16.msra.mxu0 %v3004
    %3052 = vmatprep.subr.bf16.mxu0 %v3008
    %3053 = vmatpush1.bf16.msra.mxu0 %v3007
    %3054 = vmatprep.subr.bf16.mxu0 %v3011
    %3055 = vmatpush1.bf16.msra.mxu0 %v3010
    %3056 = vmatprep.subr.bf16.mxu0 %v3014
    %3057 = vmatpush1.bf16.msra.mxu0 %v3013
    %3058 = vmatprep.subr.bf16.mxu0 %v3017
    %3059 = vmatpush1.bf16.msra.mxu0 %v3016
    %3060 = vmatprep.subr.bf16.mxu0 %v3020
    %3061 = vmatpush1.bf16.msra.mxu0 %v3019
    %3062 = vmatprep.subr.bf16.mxu0 0
    %3063 = vmatpush1.bf16.msra.mxu0 0
    %3064 = vmatprep.subr.bf16.mxu0 0
    %3065 = vmatpush1.bf16.msra.mxu0 0
    %3066 = vmatprep.subr.bf16.mxu0 0
    %3067 = vmatpush1.bf16.msra.mxu0 0
    %3068 = vmatprep.subr.bf16.mxu0 0
    %3069 = vmatpush1.bf16.msra.mxu0 0
    %3070 = vmatprep.subr.bf16.mxu0 0
    %3071 = vmatpush1.bf16.msra.mxu0 0
    %3072 = vmatprep.subr.bf16.mxu0 0
    %3073 = vmatpush1.bf16.msra.mxu0 0
    %3074 = vmatprep.subr.bf16.mxu0 0
    %3075 = vmatpush1.bf16.msra.mxu0 0
    %3076 = vmatprep.subr.bf16.mxu0 0
    %3077 = vmatpush1.bf16.msra.mxu0 0
    %3078 = vmatprep.mubr.bf16.mxu0 0
    %3079 = vmatmul.mubr.bf16.gmra.mrb[0].mxu0 %v2866
    %v3080 = vpop.f32.mrb[0].mxu0
    %v3081 = vadd.f32 %v2906, %v3080
    %v3082 = vpop.f32.mrb[0].mxu0
    %v3083 = vadd.f32 %v2910, %v3082
    %v3084 = vpop.f32.mrb[0].mxu0
    %v3085 = vadd.f32 %v2906, %v3084
    %v3086 = vpop.f32.mrb[0].mxu0
    %v3087 = vadd.f32 %v2910, %v3086
    %3088 = vdwg.mxu0
    %3089 = vmatprep.subr.bf16.mxu0 0
    %3090 = vmatpush1.bf16.msra.mxu0 %v3000
    %3091 = vmatprep.subr.bf16.mxu0 0
    %3092 = vmatpush1.bf16.msra.mxu0 %v3003
    %3093 = vmatprep.subr.bf16.mxu0 0
    %3094 = vmatpush1.bf16.msra.mxu0 %v3006
    %3095 = vmatprep.subr.bf16.mxu0 0
    %3096 = vmatpush1.bf16.msra.mxu0 %v3009
    %3097 = vmatprep.subr.bf16.mxu0 0
    %3098 = vmatpush1.bf16.msra.mxu0 %v3012
    %3099 = vmatprep.subr.bf16.mxu0 0
    %3100 = vmatpush1.bf16.msra.mxu0 %v3015
    %3101 = vmatprep.subr.bf16.mxu0 0
    %3102 = vmatpush1.bf16.msra.mxu0 %v3018
    %3103 = vmatprep.subr.bf16.mxu0 0
    %3104 = vmatpush1.bf16.msra.mxu0 %v3021
    %3105 = vmatprep.subr.bf16.mxu0 0
    %3106 = vmatpush1.bf16.msra.mxu0 0
    %3107 = vmatprep.subr.bf16.mxu0 0
    %3108 = vmatpush1.bf16.msra.mxu0 0
    %3109 = vmatprep.subr.bf16.mxu0 0
    %3110 = vmatpush1.bf16.msra.mxu0 0
    %3111 = vmatprep.subr.bf16.mxu0 0
    %3112 = vmatpush1.bf16.msra.mxu0 0
    %3113 = vmatprep.subr.bf16.mxu0 0
    %3114 = vmatpush1.bf16.msra.mxu0 0
    %3115 = vmatprep.subr.bf16.mxu0 0
    %3116 = vmatpush1.bf16.msra.mxu0 0
    %3117 = vmatprep.subr.bf16.mxu0 0
    %3118 = vmatpush1.bf16.msra.mxu0 0
    %3119 = vmatprep.subr.bf16.mxu0 0
    %3120 = vmatpush1.bf16.msra.mxu0 0
    %3121 = vmatprep.mubr.bf16.mxu0 0
    %3122 = vmatmul.mubr.bf16.gmra.mrb[0].mxu0 %v2866
    %v3123 = vpop.f32.mrb[0].mxu0
    %v3124 = vadd.f32 %v2914, %v3123
    %v3125 = vpop.f32.mrb[0].mxu0
    %v3126 = vpop.f32.mrb[0].mxu0
    %v3127 = vadd.f32 %v2914, %v3126
    %v3128 = vpop.f32.mrb[0].mxu0
    %3129 = vdwg.mxu0
    %v3130 = vpack.c.bf16 %v3085, %v3081
    %v3132 = vunpack.c.l.b16 %v3130
    %v3133 = vunpack.c.h.b16 %v3130
    %v3134 = vpack.c.b16 %v3132, %v3132
    %v3135 = vpack.c.b16 %v3133, %v3133
    %v3136 = vpack.c.bf16 %v3087, %v3083
    %v3138 = vunpack.c.l.b16 %v3136
    %v3139 = vunpack.c.h.b16 %v3136
    %v3140 = vpack.c.b16 %v3138, %v3138
    %v3141 = vpack.c.b16 %v3139, %v3139
    %v3142 = vpack.c.bf16 %v3127, %v3124
    %v3144 = vunpack.c.l.b16 %v3142
    %v3145 = vunpack.c.h.b16 %v3142
    %v3146 = vpack.c.b16 %v3144, %v3144
    %v3147 = vpack.c.b16 %v3145, %v3145
    %v3149 = vsel %vm1026, %v3134, 0
    %v3152 = vsel %vm1026, %v3140, 0
    %3154 = vmatprep.subr.bf16.mxu0 0
    %3155 = vmatpush1.bf16.xpose.msra.mxu0 %v3152
    %3156 = vmatprep.subr.bf16.mxu0 0
    %3157 = vmatpush1.bf16.xpose.msra.mxu0 0
    %3158 = vmatprep.subr.bf16.mxu0 0
    %3159 = vmatpush1.bf16.xpose.msra.mxu0 0
    %3160 = vmatprep.subr.bf16.mxu0 0
    %3161 = vmatpush1.bf16.xpose.msra.mxu0 0
    %3162 = vmatprep.subr.bf16.mxu0 0
    %3163 = vmatpush1.bf16.xpose.msra.mxu0 0
    %3164 = vmatprep.subr.bf16.mxu0 0
    %3165 = vmatpush1.bf16.xpose.msra.mxu0 0
    %3166 = vmatprep.subr.bf16.mxu0 0
    %3167 = vmatpush1.bf16.xpose.msra.mxu0 0
    %3168 = vmatprep.subr.bf16.mxu0 0
    %3169 = vmatpush1.bf16.xpose.msra.mxu0 0
    %3170 = vmatprep.subr.bf16.mxu0 0
    %3171 = vmatpush1.bf16.xpose.msra.mxu0 0
    %3172 = vmatprep.subr.bf16.mxu0 0
    %3173 = vmatpush1.bf16.xpose.msra.mxu0 0
    %3174 = vmatprep.subr.bf16.mxu0 0
    %3175 = vmatpush1.bf16.xpose.msra.mxu0 0
    %3176 = vmatprep.subr.bf16.mxu0 0
    %3177 = vmatpush1.bf16.xpose.msra.mxu0 0
    %3178 = vmatprep.subr.bf16.mxu0 0
    %3179 = vmatpush1.bf16.xpose.msra.mxu0 0
    %3180 = vmatprep.subr.bf16.mxu0 0
    %3181 = vmatpush1.bf16.xpose.msra.mxu0 0
    %3182 = vmatprep.subr.bf16.mxu0 0
    %3183 = vmatpush1.bf16.xpose.msra.mxu0 0
    %3184 = vmatprep.subr.bf16.mxu0 0
    %3185 = vmatpush1.bf16.xpose.msra.mxu0 0
    %3186 = vmatprep.mubr.bf16.mxu0 0
    %3187 = vmatmul.mubr.bf16.gmra.mrb[0].mxu0 %v3149
    %v3188 = vpop.f32.mrb[0].mxu0
    %v3189 = vadd.f32 0.0, %v3188
    %v3190 = vpop.f32.mrb[0].mxu0
    %v3191 = vpop.f32.mrb[0].mxu0
    %v3192 = vpop.f32.mrb[0].mxu0
    %3193 = vdwg.mxu0
    %v3195 = vsel %vm1026, %v3135, 0
    %v3198 = vsel %vm1026, %v3141, 0
    %3200 = vmatprep.subr.bf16.mxu0 0
    %3201 = vmatpush1.bf16.xpose.msra.mxu0 %v3198
    %3202 = vmatprep.subr.bf16.mxu0 0
    %3203 = vmatpush1.bf16.xpose.msra.mxu0 0
    %3204 = vmatprep.subr.bf16.mxu0 0
    %3205 = vmatpush1.bf16.xpose.msra.mxu0 0
    %3206 = vmatprep.subr.bf16.mxu0 0
    %3207 = vmatpush1.bf16.xpose.msra.mxu0 0
    %3208 = vmatprep.subr.bf16.mxu0 0
    %3209 = vmatpush1.bf16.xpose.msra.mxu0 0
    %3210 = vmatprep.subr.bf16.mxu0 0
    %3211 = vmatpush1.bf16.xpose.msra.mxu0 0
    %3212 = vmatprep.subr.bf16.mxu0 0
    %3213 = vmatpush1.bf16.xpose.msra.mxu0 0
    %3214 = vmatprep.subr.bf16.mxu0 0
    %3215 = vmatpush1.bf16.xpose.msra.mxu0 0
    %3216 = vmatprep.subr.bf16.mxu0 0
    %3217 = vmatpush1.bf16.xpose.msra.mxu0 0
    %3218 = vmatprep.subr.bf16.mxu0 0
    %3219 = vmatpush1.bf16.xpose.msra.mxu0 0
    %3220 = vmatprep.subr.bf16.mxu0 0
    %3221 = vmatpush1.bf16.xpose.msra.mxu0 0
    %3222 = vmatprep.subr.bf16.mxu0 0
    %3223 = vmatpush1.bf16.xpose.msra.mxu0 0
    %3224 = vmatprep.subr.bf16.mxu0 0
    %3225 = vmatpush1.bf16.xpose.msra.mxu0 0
    %3226 = vmatprep.subr.bf16.mxu0 0
    %3227 = vmatpush1.bf16.xpose.msra.mxu0 0
    %3228 = vmatprep.subr.bf16.mxu0 0
    %3229 = vmatpush1.bf16.xpose.msra.mxu0 0
    %3230 = vmatprep.subr.bf16.mxu0 0
    %3231 = vmatpush1.bf16.xpose.msra.mxu0 0
    %3232 = vmatprep.mubr.bf16.mxu0 0
    %3233 = vmatmul.mubr.bf16.gmra.mrb[0].mxu0 %v3195
    %v3234 = vpop.f32.mrb[0].mxu0
    %v3235 = vadd.f32 0.0, %v3234
    %v3236 = vpop.f32.mrb[0].mxu0
    %v3237 = vpop.f32.mrb[0].mxu0
    %v3238 = vpop.f32.mrb[0].mxu0
    %3239 = vdwg.mxu0
    %v3240 = vmul.f32 %v3189, 0.17677669
    %v3241 = vmul.f32 %v3235, 0.17677669
    %v3242 = vadd.f32 %v3240, %v704
    %v3243 = vadd.f32 %v3241, %v704
    %v3244 = vsel %vm1123, %v3242, -inf
    %3245 = vmax.xlane.f32.xlu0 %v3244
    %v3246 = vpop.xlane.xlu0 %3245
    %v3247 = vsel %vm1123, %v3243, -inf
    %3248 = vmax.xlane.f32.xlu0 %v3247
    %v3249 = vpop.xlane.xlu0 %3248
    %v3250 = vsub.f32 %v3242, %v3246
    %v3251 = vsub.f32 %v3243, %v3249
    %v3252 = vmul.f32 %v3250, 1.442695
    %v3253 = vpow.pop %v3252
    %v3254 = vmul.f32 %v3251, 1.442695
    %v3255 = vpow.pop %v3254
    %v3256 = vsel %vm1123, %v3253, 0.0
    %3257 = vadd.xlane.f32.xlu0 %v3256
    %v3258 = vpop.xlane.xlu0 %3257
    %v3259 = vsel %vm1123, %v3255, 0.0
    %3260 = vadd.xlane.f32.xlu0 %v3259
    %v3261 = vpop.xlane.xlu0 %3260
    %v3262 = vrcp.pop %v3258
    %v3263 = vrcp.pop %v3261
    %v3264 = vmul.f32 %v3253, %v3262
    %v3265 = vmul.f32 %v3255, %v3263
    %v3266 = vpack.c.bf16 %v3264, %v3264
    %v3267 = vpack.c.bf16 %v3265, %v3265
    %v3269 = vsel %vm1123, %v3266, 0
    %v3272 = vsel %vm1151, %v3146, 0
    %3274 = vmatprep.subr.bf16.mxu0 0
    %3275 = vmatpush1.bf16.msra.mxu0 %v3272
    %3276 = vmatprep.subr.bf16.mxu0 0
    %3277 = vmatpush1.bf16.msra.mxu0 0
    %3278 = vmatprep.subr.bf16.mxu0 0
    %3279 = vmatpush1.bf16.msra.mxu0 0
    %3280 = vmatprep.subr.bf16.mxu0 0
    %3281 = vmatpush1.bf16.msra.mxu0 0
    %3282 = vmatprep.subr.bf16.mxu0 0
    %3283 = vmatpush1.bf16.msra.mxu0 0
    %3284 = vmatprep.subr.bf16.mxu0 0
    %3285 = vmatpush1.bf16.msra.mxu0 0
    %3286 = vmatprep.subr.bf16.mxu0 0
    %3287 = vmatpush1.bf16.msra.mxu0 0
    %3288 = vmatprep.subr.bf16.mxu0 0
    %3289 = vmatpush1.bf16.msra.mxu0 0
    %3290 = vmatprep.subr.bf16.mxu0 0
    %3291 = vmatpush1.bf16.msra.mxu0 0
    %3292 = vmatprep.subr.bf16.mxu0 0
    %3293 = vmatpush1.bf16.msra.mxu0 0
    %3294 = vmatprep.subr.bf16.mxu0 0
    %3295 = vmatpush1.bf16.msra.mxu0 0
    %3296 = vmatprep.subr.bf16.mxu0 0
    %3297 = vmatpush1.bf16.msra.mxu0 0
    %3298 = vmatprep.subr.bf16.mxu0 0
    %3299 = vmatpush1.bf16.msra.mxu0 0
    %3300 = vmatprep.subr.bf16.mxu0 0
    %3301 = vmatpush1.bf16.msra.mxu0 0
    %3302 = vmatprep.subr.bf16.mxu0 0
    %3303 = vmatpush1.bf16.msra.mxu0 0
    %3304 = vmatprep.subr.bf16.mxu0 0
    %3305 = vmatpush1.bf16.msra.mxu0 0
    %3306 = vmatprep.mubr.bf16.mxu0 0
    %3307 = vmatmul.mubr.bf16.gmra.mrb[0].mxu0 %v3269
    %v3308 = vpop.f32.mrb[0].mxu0
    %v3309 = vadd.f32 0.0, %v3308
    %v3310 = vpop.f32.mrb[0].mxu0
    %v3311 = vpop.f32.mrb[0].mxu0
    %v3312 = vpop.f32.mrb[0].mxu0
    %3313 = vdwg.mxu0
    %v3315 = vsel %vm1123, %v3267, 0
    %v3318 = vsel %vm1151, %v3147, 0
    %3320 = vmatprep.subr.bf16.mxu0 0
    %3321 = vmatpush1.bf16.msra.mxu0 %v3318
    %3322 = vmatprep.subr.bf16.mxu0 0
    %3323 = vmatpush1.bf16.msra.mxu0 0
    %3324 = vmatprep.subr.bf16.mxu0 0
    %3325 = vmatpush1.bf16.msra.mxu0 0
    %3326 = vmatprep.subr.bf16.mxu0 0
    %3327 = vmatpush1.bf16.msra.mxu0 0
    %3328 = vmatprep.subr.bf16.mxu0 0
    %3329 = vmatpush1.bf16.msra.mxu0 0
    %3330 = vmatprep.subr.bf16.mxu0 0
    %3331 = vmatpush1.bf16.msra.mxu0 0
    %3332 = vmatprep.subr.bf16.mxu0 0
    %3333 = vmatpush1.bf16.msra.mxu0 0
    %3334 = vmatprep.subr.bf16.mxu0 0
    %3335 = vmatpush1.bf16.msra.mxu0 0
    %3336 = vmatprep.subr.bf16.mxu0 0
    %3337 = vmatpush1.bf16.msra.mxu0 0
    %3338 = vmatprep.subr.bf16.mxu0 0
    %3339 = vmatpush1.bf16.msra.mxu0 0
    %3340 = vmatprep.subr.bf16.mxu0 0
    %3341 = vmatpush1.bf16.msra.mxu0 0
    %3342 = vmatprep.subr.bf16.mxu0 0
    %3343 = vmatpush1.bf16.msra.mxu0 0
    %3344 = vmatprep.subr.bf16.mxu0 0
    %3345 = vmatpush1.bf16.msra.mxu0 0
    %3346 = vmatprep.subr.bf16.mxu0 0
    %3347 = vmatpush1.bf16.msra.mxu0 0
    %3348 = vmatprep.subr.bf16.mxu0 0
    %3349 = vmatpush1.bf16.msra.mxu0 0
    %3350 = vmatprep.subr.bf16.mxu0 0
    %3351 = vmatpush1.bf16.msra.mxu0 0
    %3352 = vmatprep.mubr.bf16.mxu0 0
    %3353 = vmatmul.mubr.bf16.gmra.mrb[0].mxu0 %v3315
    %v3354 = vpop.f32.mrb[0].mxu0
    %v3355 = vadd.f32 0.0, %v3354
    %v3356 = vpop.f32.mrb[0].mxu0
    %v3357 = vpop.f32.mrb[0].mxu0
    %v3358 = vpop.f32.mrb[0].mxu0
    %3359 = vdwg.mxu0
    %3360 = vrot.lane.b32.xlu0 %v3134, 96
    %v3361 = vpop.permute.xlu0 %3360
    %3362 = vrot.lane.b32.xlu0 %v3140, 96
    %v3363 = vpop.permute.xlu0 %3362
    %v3365 = vsel %vm1026, %v3361, 0
    %v3368 = vsel %vm1026, %v3363, 0
    %3370 = vmatprep.subr.bf16.mxu0 0
    %3371 = vmatpush1.bf16.xpose.msra.mxu0 %v3368
    %3372 = vmatprep.subr.bf16.mxu0 0
    %3373 = vmatpush1.bf16.xpose.msra.mxu0 0
    %3374 = vmatprep.subr.bf16.mxu0 0
    %3375 = vmatpush1.bf16.xpose.msra.mxu0 0
    %3376 = vmatprep.subr.bf16.mxu0 0
    %3377 = vmatpush1.bf16.xpose.msra.mxu0 0
    %3378 = vmatprep.subr.bf16.mxu0 0
    %3379 = vmatpush1.bf16.xpose.msra.mxu0 0
    %3380 = vmatprep.subr.bf16.mxu0 0
    %3381 = vmatpush1.bf16.xpose.msra.mxu0 0
    %3382 = vmatprep.subr.bf16.mxu0 0
    %3383 = vmatpush1.bf16.xpose.msra.mxu0 0
    %3384 = vmatprep.subr.bf16.mxu0 0
    %3385 = vmatpush1.bf16.xpose.msra.mxu0 0
    %3386 = vmatprep.subr.bf16.mxu0 0
    %3387 = vmatpush1.bf16.xpose.msra.mxu0 0
    %3388 = vmatprep.subr.bf16.mxu0 0
    %3389 = vmatpush1.bf16.xpose.msra.mxu0 0
    %3390 = vmatprep.subr.bf16.mxu0 0
    %3391 = vmatpush1.bf16.xpose.msra.mxu0 0
    %3392 = vmatprep.subr.bf16.mxu0 0
    %3393 = vmatpush1.bf16.xpose.msra.mxu0 0
    %3394 = vmatprep.subr.bf16.mxu0 0
    %3395 = vmatpush1.bf16.xpose.msra.mxu0 0
    %3396 = vmatprep.subr.bf16.mxu0 0
    %3397 = vmatpush1.bf16.xpose.msra.mxu0 0
    %3398 = vmatprep.subr.bf16.mxu0 0
    %3399 = vmatpush1.bf16.xpose.msra.mxu0 0
    %3400 = vmatprep.subr.bf16.mxu0 0
    %3401 = vmatpush1.bf16.xpose.msra.mxu0 0
    %3402 = vmatprep.mubr.bf16.mxu0 0
    %3403 = vmatmul.mubr.bf16.gmra.mrb[0].mxu0 %v3365
    %v3404 = vpop.f32.mrb[0].mxu0
    %v3405 = vadd.f32 0.0, %v3404
    %v3406 = vpop.f32.mrb[0].mxu0
    %v3407 = vpop.f32.mrb[0].mxu0
    %v3408 = vpop.f32.mrb[0].mxu0
    %3409 = vdwg.mxu0
    %3410 = vrot.lane.b32.xlu0 %v3135, 96
    %v3411 = vpop.permute.xlu0 %3410
    %3412 = vrot.lane.b32.xlu0 %v3141, 96
    %v3413 = vpop.permute.xlu0 %3412
    %v3415 = vsel %vm1026, %v3411, 0
    %v3418 = vsel %vm1026, %v3413, 0
    %3420 = vmatprep.subr.bf16.mxu0 0
    %3421 = vmatpush1.bf16.xpose.msra.mxu0 %v3418
    %3422 = vmatprep.subr.bf16.mxu0 0
    %3423 = vmatpush1.bf16.xpose.msra.mxu0 0
    %3424 = vmatprep.subr.bf16.mxu0 0
    %3425 = vmatpush1.bf16.xpose.msra.mxu0 0
    %3426 = vmatprep.subr.bf16.mxu0 0
    %3427 = vmatpush1.bf16.xpose.msra.mxu0 0
    %3428 = vmatprep.subr.bf16.mxu0 0
    %3429 = vmatpush1.bf16.xpose.msra.mxu0 0
    %3430 = vmatprep.subr.bf16.mxu0 0
    %3431 = vmatpush1.bf16.xpose.msra.mxu0 0
    %3432 = vmatprep.subr.bf16.mxu0 0
    %3433 = vmatpush1.bf16.xpose.msra.mxu0 0
    %3434 = vmatprep.subr.bf16.mxu0 0
    %3435 = vmatpush1.bf16.xpose.msra.mxu0 0
    %3436 = vmatprep.subr.bf16.mxu0 0
    %3437 = vmatpush1.bf16.xpose.msra.mxu0 0
    %3438 = vmatprep.subr.bf16.mxu0 0
    %3439 = vmatpush1.bf16.xpose.msra.mxu0 0
    %3440 = vmatprep.subr.bf16.mxu0 0
    %3441 = vmatpush1.bf16.xpose.msra.mxu0 0
    %3442 = vmatprep.subr.bf16.mxu0 0
    %3443 = vmatpush1.bf16.xpose.msra.mxu0 0
    %3444 = vmatprep.subr.bf16.mxu0 0
    %3445 = vmatpush1.bf16.xpose.msra.mxu0 0
    %3446 = vmatprep.subr.bf16.mxu0 0
    %3447 = vmatpush1.bf16.xpose.msra.mxu0 0
    %3448 = vmatprep.subr.bf16.mxu0 0
    %3449 = vmatpush1.bf16.xpose.msra.mxu0 0
    %3450 = vmatprep.subr.bf16.mxu0 0
    %3451 = vmatpush1.bf16.xpose.msra.mxu0 0
    %3452 = vmatprep.mubr.bf16.mxu0 0
    %3453 = vmatmul.mubr.bf16.gmra.mrb[0].mxu0 %v3415
    %v3454 = vpop.f32.mrb[0].mxu0
    %v3455 = vadd.f32 0.0, %v3454
    %v3456 = vpop.f32.mrb[0].mxu0
    %v3457 = vpop.f32.mrb[0].mxu0
    %v3458 = vpop.f32.mrb[0].mxu0
    %3459 = vdwg.mxu0
    %v3460 = vmul.f32 %v3405, 0.17677669
    %v3461 = vmul.f32 %v3455, 0.17677669
    %v3462 = vadd.f32 %v3460, %v704
    %v3463 = vadd.f32 %v3461, %v704
    %v3464 = vsel %vm1123, %v3462, -inf
    %3465 = vmax.xlane.f32.xlu0 %v3464
    %v3466 = vpop.xlane.xlu0 %3465
    %v3467 = vsel %vm1123, %v3463, -inf
    %3468 = vmax.xlane.f32.xlu0 %v3467
    %v3469 = vpop.xlane.xlu0 %3468
    %v3470 = vsub.f32 %v3462, %v3466
    %v3471 = vsub.f32 %v3463, %v3469
    %v3472 = vmul.f32 %v3470, 1.442695
    %v3473 = vpow.pop %v3472
    %v3474 = vmul.f32 %v3471, 1.442695
    %v3475 = vpow.pop %v3474
    %v3476 = vsel %vm1123, %v3473, 0.0
    %3477 = vadd.xlane.f32.xlu0 %v3476
    %v3478 = vpop.xlane.xlu0 %3477
    %v3479 = vsel %vm1123, %v3475, 0.0
    %3480 = vadd.xlane.f32.xlu0 %v3479
    %v3481 = vpop.xlane.xlu0 %3480
    %v3482 = vrcp.pop %v3478
    %v3483 = vrcp.pop %v3481
    %v3484 = vmul.f32 %v3473, %v3482
    %v3485 = vmul.f32 %v3475, %v3483
    %v3486 = vpack.c.bf16 %v3484, %v3484
    %v3487 = vpack.c.bf16 %v3485, %v3485
    %3488 = vrot.lane.b32.xlu0 %v3146, 96
    %v3489 = vpop.permute.xlu0 %3488
    %v3491 = vsel %vm1123, %v3486, 0
    %v3494 = vsel %vm1151, %v3489, 0
    %3496 = vmatprep.subr.bf16.mxu0 0
    %3497 = vmatpush1.bf16.msra.mxu0 %v3494
    %3498 = vmatprep.subr.bf16.mxu0 0
    %3499 = vmatpush1.bf16.msra.mxu0 0
    %3500 = vmatprep.subr.bf16.mxu0 0
    %3501 = vmatpush1.bf16.msra.mxu0 0
    %3502 = vmatprep.subr.bf16.mxu0 0
    %3503 = vmatpush1.bf16.msra.mxu0 0
    %3504 = vmatprep.subr.bf16.mxu0 0
    %3505 = vmatpush1.bf16.msra.mxu0 0
    %3506 = vmatprep.subr.bf16.mxu0 0
    %3507 = vmatpush1.bf16.msra.mxu0 0
    %3508 = vmatprep.subr.bf16.mxu0 0
    %3509 = vmatpush1.bf16.msra.mxu0 0
    %3510 = vmatprep.subr.bf16.mxu0 0
    %3511 = vmatpush1.bf16.msra.mxu0 0
    %3512 = vmatprep.subr.bf16.mxu0 0
    %3513 = vmatpush1.bf16.msra.mxu0 0
    %3514 = vmatprep.subr.bf16.mxu0 0
    %3515 = vmatpush1.bf16.msra.mxu0 0
    %3516 = vmatprep.subr.bf16.mxu0 0
    %3517 = vmatpush1.bf16.msra.mxu0 0
    %3518 = vmatprep.subr.bf16.mxu0 0
    %3519 = vmatpush1.bf16.msra.mxu0 0
    %3520 = vmatprep.subr.bf16.mxu0 0
    %3521 = vmatpush1.bf16.msra.mxu0 0
    %3522 = vmatprep.subr.bf16.mxu0 0
    %3523 = vmatpush1.bf16.msra.mxu0 0
    %3524 = vmatprep.subr.bf16.mxu0 0
    %3525 = vmatpush1.bf16.msra.mxu0 0
    %3526 = vmatprep.subr.bf16.mxu0 0
    %3527 = vmatpush1.bf16.msra.mxu0 0
    %3528 = vmatprep.mubr.bf16.mxu0 0
    %3529 = vmatmul.mubr.bf16.gmra.mrb[0].mxu0 %v3491
    %v3530 = vpop.f32.mrb[0].mxu0
    %v3531 = vadd.f32 0.0, %v3530
    %v3532 = vpop.f32.mrb[0].mxu0
    %v3533 = vpop.f32.mrb[0].mxu0
    %v3534 = vpop.f32.mrb[0].mxu0
    %3535 = vdwg.mxu0
    %3536 = vrot.lane.b32.xlu0 %v3147, 96
    %v3537 = vpop.permute.xlu0 %3536
    %v3539 = vsel %vm1123, %v3487, 0
    %v3542 = vsel %vm1151, %v3537, 0
    %3544 = vmatprep.subr.bf16.mxu0 0
    %3545 = vmatpush1.bf16.msra.mxu0 %v3542
    %3546 = vmatprep.subr.bf16.mxu0 0
    %3547 = vmatpush1.bf16.msra.mxu0 0
    %3548 = vmatprep.subr.bf16.mxu0 0
    %3549 = vmatpush1.bf16.msra.mxu0 0
    %3550 = vmatprep.subr.bf16.mxu0 0
    %3551 = vmatpush1.bf16.msra.mxu0 0
    %3552 = vmatprep.subr.bf16.mxu0 0
    %3553 = vmatpush1.bf16.msra.mxu0 0
    %3554 = vmatprep.subr.bf16.mxu0 0
    %3555 = vmatpush1.bf16.msra.mxu0 0
    %3556 = vmatprep.subr.bf16.mxu0 0
    %3557 = vmatpush1.bf16.msra.mxu0 0
    %3558 = vmatprep.subr.bf16.mxu0 0
    %3559 = vmatpush1.bf16.msra.mxu0 0
    %3560 = vmatprep.subr.bf16.mxu0 0
    %3561 = vmatpush1.bf16.msra.mxu0 0
    %3562 = vmatprep.subr.bf16.mxu0 0
    %3563 = vmatpush1.bf16.msra.mxu0 0
    %3564 = vmatprep.subr.bf16.mxu0 0
    %3565 = vmatpush1.bf16.msra.mxu0 0
    %3566 = vmatprep.subr.bf16.mxu0 0
    %3567 = vmatpush1.bf16.msra.mxu0 0
    %3568 = vmatprep.subr.bf16.mxu0 0
    %3569 = vmatpush1.bf16.msra.mxu0 0
    %3570 = vmatprep.subr.bf16.mxu0 0
    %3571 = vmatpush1.bf16.msra.mxu0 0
    %3572 = vmatprep.subr.bf16.mxu0 0
    %3573 = vmatpush1.bf16.msra.mxu0 0
    %3574 = vmatprep.subr.bf16.mxu0 0
    %3575 = vmatpush1.bf16.msra.mxu0 0
    %3576 = vmatprep.mubr.bf16.mxu0 0
    %3577 = vmatmul.mubr.bf16.gmra.mrb[0].mxu0 %v3539
    %v3578 = vpop.f32.mrb[0].mxu0
    %v3579 = vadd.f32 0.0, %v3578
    %v3580 = vpop.f32.mrb[0].mxu0
    %v3581 = vpop.f32.mrb[0].mxu0
    %v3582 = vpop.f32.mrb[0].mxu0
    %3583 = vdwg.mxu0
    %3584 = vrot.lane.b32.xlu0 %v3134, 64
    %v3585 = vpop.permute.xlu0 %3584
    %3586 = vrot.lane.b32.xlu0 %v3140, 64
    %v3587 = vpop.permute.xlu0 %3586
    %v3589 = vsel %vm1026, %v3585, 0
    %v3592 = vsel %vm1026, %v3587, 0
    %3594 = vmatprep.subr.bf16.mxu0 0
    %3595 = vmatpush1.bf16.xpose.msra.mxu0 %v3592
    %3596 = vmatprep.subr.bf16.mxu0 0
    %3597 = vmatpush1.bf16.xpose.msra.mxu0 0
    %3598 = vmatprep.subr.bf16.mxu0 0
    %3599 = vmatpush1.bf16.xpose.msra.mxu0 0
    %3600 = vmatprep.subr.bf16.mxu0 0
    %3601 = vmatpush1.bf16.xpose.msra.mxu0 0
    %3602 = vmatprep.subr.bf16.mxu0 0
    %3603 = vmatpush1.bf16.xpose.msra.mxu0 0
    %3604 = vmatprep.subr.bf16.mxu0 0
    %3605 = vmatpush1.bf16.xpose.msra.mxu0 0
    %3606 = vmatprep.subr.bf16.mxu0 0
    %3607 = vmatpush1.bf16.xpose.msra.mxu0 0
    %3608 = vmatprep.subr.bf16.mxu0 0
    %3609 = vmatpush1.bf16.xpose.msra.mxu0 0
    %3610 = vmatprep.subr.bf16.mxu0 0
    %3611 = vmatpush1.bf16.xpose.msra.mxu0 0
    %3612 = vmatprep.subr.bf16.mxu0 0
    %3613 = vmatpush1.bf16.xpose.msra.mxu0 0
    %3614 = vmatprep.subr.bf16.mxu0 0
    %3615 = vmatpush1.bf16.xpose.msra.mxu0 0
    %3616 = vmatprep.subr.bf16.mxu0 0
    %3617 = vmatpush1.bf16.xpose.msra.mxu0 0
    %3618 = vmatprep.subr.bf16.mxu0 0
    %3619 = vmatpush1.bf16.xpose.msra.mxu0 0
    %3620 = vmatprep.subr.bf16.mxu0 0
    %3621 = vmatpush1.bf16.xpose.msra.mxu0 0
    %3622 = vmatprep.subr.bf16.mxu0 0
    %3623 = vmatpush1.bf16.xpose.msra.mxu0 0
    %3624 = vmatprep.subr.bf16.mxu0 0
    %3625 = vmatpush1.bf16.xpose.msra.mxu0 0
    %3626 = vmatprep.mubr.bf16.mxu0 0
    %3627 = vmatmul.mubr.bf16.gmra.mrb[0].mxu0 %v3589
    %v3628 = vpop.f32.mrb[0].mxu0
    %v3629 = vadd.f32 0.0, %v3628
    %v3630 = vpop.f32.mrb[0].mxu0
    %v3631 = vpop.f32.mrb[0].mxu0
    %v3632 = vpop.f32.mrb[0].mxu0
    %3633 = vdwg.mxu0
    %3634 = vrot.lane.b32.xlu0 %v3135, 64
    %v3635 = vpop.permute.xlu0 %3634
    %3636 = vrot.lane.b32.xlu0 %v3141, 64
    %v3637 = vpop.permute.xlu0 %3636
    %v3639 = vsel %vm1026, %v3635, 0
    %v3642 = vsel %vm1026, %v3637, 0
    %3644 = vmatprep.subr.bf16.mxu0 0
    %3645 = vmatpush1.bf16.xpose.msra.mxu0 %v3642
    %3646 = vmatprep.subr.bf16.mxu0 0
    %3647 = vmatpush1.bf16.xpose.msra.mxu0 0
    %3648 = vmatprep.subr.bf16.mxu0 0
    %3649 = vmatpush1.bf16.xpose.msra.mxu0 0
    %3650 = vmatprep.subr.bf16.mxu0 0
    %3651 = vmatpush1.bf16.xpose.msra.mxu0 0
    %3652 = vmatprep.subr.bf16.mxu0 0
    %3653 = vmatpush1.bf16.xpose.msra.mxu0 0
    %3654 = vmatprep.subr.bf16.mxu0 0
    %3655 = vmatpush1.bf16.xpose.msra.mxu0 0
    %3656 = vmatprep.subr.bf16.mxu0 0
    %3657 = vmatpush1.bf16.xpose.msra.mxu0 0
    %3658 = vmatprep.subr.bf16.mxu0 0
    %3659 = vmatpush1.bf16.xpose.msra.mxu0 0
    %3660 = vmatprep.subr.bf16.mxu0 0
    %3661 = vmatpush1.bf16.xpose.msra.mxu0 0
    %3662 = vmatprep.subr.bf16.mxu0 0
    %3663 = vmatpush1.bf16.xpose.msra.mxu0 0
    %3664 = vmatprep.subr.bf16.mxu0 0
    %3665 = vmatpush1.bf16.xpose.msra.mxu0 0
    %3666 = vmatprep.subr.bf16.mxu0 0
    %3667 = vmatpush1.bf16.xpose.msra.mxu0 0
    %3668 = vmatprep.subr.bf16.mxu0 0
    %3669 = vmatpush1.bf16.xpose.msra.mxu0 0
    %3670 = vmatprep.subr.bf16.mxu0 0
    %3671 = vmatpush1.bf16.xpose.msra.mxu0 0
    %3672 = vmatprep.subr.bf16.mxu0 0
    %3673 = vmatpush1.bf16.xpose.msra.mxu0 0
    %3674 = vmatprep.subr.bf16.mxu0 0
    %3675 = vmatpush1.bf16.xpose.msra.mxu0 0
    %3676 = vmatprep.mubr.bf16.mxu0 0
    %3677 = vmatmul.mubr.bf16.gmra.mrb[0].mxu0 %v3639
    %v3678 = vpop.f32.mrb[0].mxu0
    %v3679 = vadd.f32 0.0, %v3678
    %v3680 = vpop.f32.mrb[0].mxu0
    %v3681 = vpop.f32.mrb[0].mxu0
    %v3682 = vpop.f32.mrb[0].mxu0
    %3683 = vdwg.mxu0
    %v3684 = vmul.f32 %v3629, 0.17677669
    %v3685 = vmul.f32 %v3679, 0.17677669
    %v3686 = vadd.f32 %v3684, %v704
    %v3687 = vadd.f32 %v3685, %v704
    %v3688 = vsel %vm1123, %v3686, -inf
    %3689 = vmax.xlane.f32.xlu0 %v3688
    %v3690 = vpop.xlane.xlu0 %3689
    %v3691 = vsel %vm1123, %v3687, -inf
    %3692 = vmax.xlane.f32.xlu0 %v3691
    %v3693 = vpop.xlane.xlu0 %3692
    %v3694 = vsub.f32 %v3686, %v3690
    %v3695 = vsub.f32 %v3687, %v3693
    %v3696 = vmul.f32 %v3694, 1.442695
    %v3697 = vpow.pop %v3696
    %v3698 = vmul.f32 %v3695, 1.442695
    %v3699 = vpow.pop %v3698
    %v3700 = vsel %vm1123, %v3697, 0.0
    %3701 = vadd.xlane.f32.xlu0 %v3700
    %v3702 = vpop.xlane.xlu0 %3701
    %v3703 = vsel %vm1123, %v3699, 0.0
    %3704 = vadd.xlane.f32.xlu0 %v3703
    %v3705 = vpop.xlane.xlu0 %3704
    %v3706 = vrcp.pop %v3702
    %v3707 = vrcp.pop %v3705
    %v3708 = vmul.f32 %v3697, %v3706
    %v3709 = vmul.f32 %v3699, %v3707
    %v3710 = vpack.c.bf16 %v3708, %v3708
    %v3711 = vpack.c.bf16 %v3709, %v3709
    %3712 = vrot.lane.b32.xlu0 %v3146, 64
    %v3713 = vpop.permute.xlu0 %3712
    %v3715 = vsel %vm1123, %v3710, 0
    %v3718 = vsel %vm1151, %v3713, 0
    %3720 = vmatprep.subr.bf16.mxu0 0
    %3721 = vmatpush1.bf16.msra.mxu0 %v3718
    %3722 = vmatprep.subr.bf16.mxu0 0
    %3723 = vmatpush1.bf16.msra.mxu0 0
    %3724 = vmatprep.subr.bf16.mxu0 0
    %3725 = vmatpush1.bf16.msra.mxu0 0
    %3726 = vmatprep.subr.bf16.mxu0 0
    %3727 = vmatpush1.bf16.msra.mxu0 0
    %3728 = vmatprep.subr.bf16.mxu0 0
    %3729 = vmatpush1.bf16.msra.mxu0 0
    %3730 = vmatprep.subr.bf16.mxu0 0
    %3731 = vmatpush1.bf16.msra.mxu0 0
    %3732 = vmatprep.subr.bf16.mxu0 0
    %3733 = vmatpush1.bf16.msra.mxu0 0
    %3734 = vmatprep.subr.bf16.mxu0 0
    %3735 = vmatpush1.bf16.msra.mxu0 0
    %3736 = vmatprep.subr.bf16.mxu0 0
    %3737 = vmatpush1.bf16.msra.mxu0 0
    %3738 = vmatprep.subr.bf16.mxu0 0
    %3739 = vmatpush1.bf16.msra.mxu0 0
    %3740 = vmatprep.subr.bf16.mxu0 0
    %3741 = vmatpush1.bf16.msra.mxu0 0
    %3742 = vmatprep.subr.bf16.mxu0 0
    %3743 = vmatpush1.bf16.msra.mxu0 0
    %3744 = vmatprep.subr.bf16.mxu0 0
    %3745 = vmatpush1.bf16.msra.mxu0 0
    %3746 = vmatprep.subr.bf16.mxu0 0
    %3747 = vmatpush1.bf16.msra.mxu0 0
    %3748 = vmatprep.subr.bf16.mxu0 0
    %3749 = vmatpush1.bf16.msra.mxu0 0
    %3750 = vmatprep.subr.bf16.mxu0 0
    %3751 = vmatpush1.bf16.msra.mxu0 0
    %3752 = vmatprep.mubr.bf16.mxu0 0
    %3753 = vmatmul.mubr.bf16.gmra.mrb[0].mxu0 %v3715
    %v3754 = vpop.f32.mrb[0].mxu0
    %v3755 = vadd.f32 0.0, %v3754
    %v3756 = vpop.f32.mrb[0].mxu0
    %v3757 = vpop.f32.mrb[0].mxu0
    %v3758 = vpop.f32.mrb[0].mxu0
    %3759 = vdwg.mxu0
    %3760 = vrot.lane.b32.xlu0 %v3147, 64
    %v3761 = vpop.permute.xlu0 %3760
    %v3763 = vsel %vm1123, %v3711, 0
    %v3766 = vsel %vm1151, %v3761, 0
    %3768 = vmatprep.subr.bf16.mxu0 0
    %3769 = vmatpush1.bf16.msra.mxu0 %v3766
    %3770 = vmatprep.subr.bf16.mxu0 0
    %3771 = vmatpush1.bf16.msra.mxu0 0
    %3772 = vmatprep.subr.bf16.mxu0 0
    %3773 = vmatpush1.bf16.msra.mxu0 0
    %3774 = vmatprep.subr.bf16.mxu0 0
    %3775 = vmatpush1.bf16.msra.mxu0 0
    %3776 = vmatprep.subr.bf16.mxu0 0
    %3777 = vmatpush1.bf16.msra.mxu0 0
    %3778 = vmatprep.subr.bf16.mxu0 0
    %3779 = vmatpush1.bf16.msra.mxu0 0
    %3780 = vmatprep.subr.bf16.mxu0 0
    %3781 = vmatpush1.bf16.msra.mxu0 0
    %3782 = vmatprep.subr.bf16.mxu0 0
    %3783 = vmatpush1.bf16.msra.mxu0 0
    %3784 = vmatprep.subr.bf16.mxu0 0
    %3785 = vmatpush1.bf16.msra.mxu0 0
    %3786 = vmatprep.subr.bf16.mxu0 0
    %3787 = vmatpush1.bf16.msra.mxu0 0
    %3788 = vmatprep.subr.bf16.mxu0 0
    %3789 = vmatpush1.bf16.msra.mxu0 0
    %3790 = vmatprep.subr.bf16.mxu0 0
    %3791 = vmatpush1.bf16.msra.mxu0 0
    %3792 = vmatprep.subr.bf16.mxu0 0
    %3793 = vmatpush1.bf16.msra.mxu0 0
    %3794 = vmatprep.subr.bf16.mxu0 0
    %3795 = vmatpush1.bf16.msra.mxu0 0
    %3796 = vmatprep.subr.bf16.mxu0 0
    %3797 = vmatpush1.bf16.msra.mxu0 0
    %3798 = vmatprep.subr.bf16.mxu0 0
    %3799 = vmatpush1.bf16.msra.mxu0 0
    %3800 = vmatprep.mubr.bf16.mxu0 0
    %3801 = vmatmul.mubr.bf16.gmra.mrb[0].mxu0 %v3763
    %v3802 = vpop.f32.mrb[0].mxu0
    %v3803 = vadd.f32 0.0, %v3802
    %v3804 = vpop.f32.mrb[0].mxu0
    %v3805 = vpop.f32.mrb[0].mxu0
    %v3806 = vpop.f32.mrb[0].mxu0
    %3807 = vdwg.mxu0
    %3808 = vrot.lane.b32.xlu0 %v3134, 32
    %v3809 = vpop.permute.xlu0 %3808
    %3810 = vrot.lane.b32.xlu0 %v3140, 32
    %v3811 = vpop.permute.xlu0 %3810
    %v3813 = vsel %vm1026, %v3809, 0
    %v3816 = vsel %vm1026, %v3811, 0
    %3818 = vmatprep.subr.bf16.mxu0 0
    %3819 = vmatpush1.bf16.xpose.msra.mxu0 %v3816
    %3820 = vmatprep.subr.bf16.mxu0 0
    %3821 = vmatpush1.bf16.xpose.msra.mxu0 0
    %3822 = vmatprep.subr.bf16.mxu0 0
    %3823 = vmatpush1.bf16.xpose.msra.mxu0 0
    %3824 = vmatprep.subr.bf16.mxu0 0
    %3825 = vmatpush1.bf16.xpose.msra.mxu0 0
    %3826 = vmatprep.subr.bf16.mxu0 0
    %3827 = vmatpush1.bf16.xpose.msra.mxu0 0
    %3828 = vmatprep.subr.bf16.mxu0 0
    %3829 = vmatpush1.bf16.xpose.msra.mxu0 0
    %3830 = vmatprep.subr.bf16.mxu0 0
    %3831 = vmatpush1.bf16.xpose.msra.mxu0 0
    %3832 = vmatprep.subr.bf16.mxu0 0
    %3833 = vmatpush1.bf16.xpose.msra.mxu0 0
    %3834 = vmatprep.subr.bf16.mxu0 0
    %3835 = vmatpush1.bf16.xpose.msra.mxu0 0
    %3836 = vmatprep.subr.bf16.mxu0 0
    %3837 = vmatpush1.bf16.xpose.msra.mxu0 0
    %3838 = vmatprep.subr.bf16.mxu0 0
    %3839 = vmatpush1.bf16.xpose.msra.mxu0 0
    %3840 = vmatprep.subr.bf16.mxu0 0
    %3841 = vmatpush1.bf16.xpose.msra.mxu0 0
    %3842 = vmatprep.subr.bf16.mxu0 0
    %3843 = vmatpush1.bf16.xpose.msra.mxu0 0
    %3844 = vmatprep.subr.bf16.mxu0 0
    %3845 = vmatpush1.bf16.xpose.msra.mxu0 0
    %3846 = vmatprep.subr.bf16.mxu0 0
    %3847 = vmatpush1.bf16.xpose.msra.mxu0 0
    %3848 = vmatprep.subr.bf16.mxu0 0
    %3849 = vmatpush1.bf16.xpose.msra.mxu0 0
    %3850 = vmatprep.mubr.bf16.mxu0 0
    %3851 = vmatmul.mubr.bf16.gmra.mrb[0].mxu0 %v3813
    %v3852 = vpop.f32.mrb[0].mxu0
    %v3853 = vadd.f32 0.0, %v3852
    %v3854 = vpop.f32.mrb[0].mxu0
    %v3855 = vpop.f32.mrb[0].mxu0
    %v3856 = vpop.f32.mrb[0].mxu0
    %3857 = vdwg.mxu0
    %3858 = vrot.lane.b32.xlu0 %v3135, 32
    %v3859 = vpop.permute.xlu0 %3858
    %3860 = vrot.lane.b32.xlu0 %v3141, 32
    %v3861 = vpop.permute.xlu0 %3860
    %v3863 = vsel %vm1026, %v3859, 0
    %v3866 = vsel %vm1026, %v3861, 0
    %3868 = vmatprep.subr.bf16.mxu0 0
    %3869 = vmatpush1.bf16.xpose.msra.mxu0 %v3866
    %3870 = vmatprep.subr.bf16.mxu0 0
    %3871 = vmatpush1.bf16.xpose.msra.mxu0 0
    %3872 = vmatprep.subr.bf16.mxu0 0
    %3873 = vmatpush1.bf16.xpose.msra.mxu0 0
    %3874 = vmatprep.subr.bf16.mxu0 0
    %3875 = vmatpush1.bf16.xpose.msra.mxu0 0
    %3876 = vmatprep.subr.bf16.mxu0 0
    %3877 = vmatpush1.bf16.xpose.msra.mxu0 0
    %3878 = vmatprep.subr.bf16.mxu0 0
    %3879 = vmatpush1.bf16.xpose.msra.mxu0 0
    %3880 = vmatprep.subr.bf16.mxu0 0
    %3881 = vmatpush1.bf16.xpose.msra.mxu0 0
    %3882 = vmatprep.subr.bf16.mxu0 0
    %3883 = vmatpush1.bf16.xpose.msra.mxu0 0
    %3884 = vmatprep.subr.bf16.mxu0 0
    %3885 = vmatpush1.bf16.xpose.msra.mxu0 0
    %3886 = vmatprep.subr.bf16.mxu0 0
    %3887 = vmatpush1.bf16.xpose.msra.mxu0 0
    %3888 = vmatprep.subr.bf16.mxu0 0
    %3889 = vmatpush1.bf16.xpose.msra.mxu0 0
    %3890 = vmatprep.subr.bf16.mxu0 0
    %3891 = vmatpush1.bf16.xpose.msra.mxu0 0
    %3892 = vmatprep.subr.bf16.mxu0 0
    %3893 = vmatpush1.bf16.xpose.msra.mxu0 0
    %3894 = vmatprep.subr.bf16.mxu0 0
    %3895 = vmatpush1.bf16.xpose.msra.mxu0 0
    %3896 = vmatprep.subr.bf16.mxu0 0
    %3897 = vmatpush1.bf16.xpose.msra.mxu0 0
    %3898 = vmatprep.subr.bf16.mxu0 0
    %3899 = vmatpush1.bf16.xpose.msra.mxu0 0
    %3900 = vmatprep.mubr.bf16.mxu0 0
    %3901 = vmatmul.mubr.bf16.gmra.mrb[0].mxu0 %v3863
    %v3902 = vpop.f32.mrb[0].mxu0
    %v3903 = vadd.f32 0.0, %v3902
    %v3904 = vpop.f32.mrb[0].mxu0
    %v3905 = vpop.f32.mrb[0].mxu0
    %v3906 = vpop.f32.mrb[0].mxu0
    %3907 = vdwg.mxu0
    %v3908 = vmul.f32 %v3853, 0.17677669
    %v3909 = vmul.f32 %v3903, 0.17677669
    %v3910 = vadd.f32 %v3908, %v704
    %v3911 = vadd.f32 %v3909, %v704
    %v3912 = vsel %vm1123, %v3910, -inf
    %3913 = vmax.xlane.f32.xlu0 %v3912
    %v3914 = vpop.xlane.xlu0 %3913
    %v3915 = vsel %vm1123, %v3911, -inf
    %3916 = vmax.xlane.f32.xlu0 %v3915
    %v3917 = vpop.xlane.xlu0 %3916
    %v3918 = vsub.f32 %v3910, %v3914
    %v3919 = vsub.f32 %v3911, %v3917
    %v3920 = vmul.f32 %v3918, 1.442695
    %v3921 = vpow.pop %v3920
    %v3922 = vmul.f32 %v3919, 1.442695
    %v3923 = vpow.pop %v3922
    %v3924 = vsel %vm1123, %v3921, 0.0
    %3925 = vadd.xlane.f32.xlu0 %v3924
    %v3926 = vpop.xlane.xlu0 %3925
    %v3927 = vsel %vm1123, %v3923, 0.0
    %3928 = vadd.xlane.f32.xlu0 %v3927
    %v3929 = vpop.xlane.xlu0 %3928
    %v3930 = vrcp.pop %v3926
    %v3931 = vrcp.pop %v3929
    %v3932 = vmul.f32 %v3921, %v3930
    %v3933 = vmul.f32 %v3923, %v3931
    %v3934 = vpack.c.bf16 %v3932, %v3932
    %v3935 = vpack.c.bf16 %v3933, %v3933
    %3936 = vrot.lane.b32.xlu0 %v3146, 32
    %v3937 = vpop.permute.xlu0 %3936
    %v3939 = vsel %vm1123, %v3934, 0
    %v3942 = vsel %vm1151, %v3937, 0
    %3944 = vmatprep.subr.bf16.mxu0 0
    %3945 = vmatpush1.bf16.msra.mxu0 %v3942
    %3946 = vmatprep.subr.bf16.mxu0 0
    %3947 = vmatpush1.bf16.msra.mxu0 0
    %3948 = vmatprep.subr.bf16.mxu0 0
    %3949 = vmatpush1.bf16.msra.mxu0 0
    %3950 = vmatprep.subr.bf16.mxu0 0
    %3951 = vmatpush1.bf16.msra.mxu0 0
    %3952 = vmatprep.subr.bf16.mxu0 0
    %3953 = vmatpush1.bf16.msra.mxu0 0
    %3954 = vmatprep.subr.bf16.mxu0 0
    %3955 = vmatpush1.bf16.msra.mxu0 0
    %3956 = vmatprep.subr.bf16.mxu0 0
    %3957 = vmatpush1.bf16.msra.mxu0 0
    %3958 = vmatprep.subr.bf16.mxu0 0
    %3959 = vmatpush1.bf16.msra.mxu0 0
    %3960 = vmatprep.subr.bf16.mxu0 0
    %3961 = vmatpush1.bf16.msra.mxu0 0
    %3962 = vmatprep.subr.bf16.mxu0 0
    %3963 = vmatpush1.bf16.msra.mxu0 0
    %3964 = vmatprep.subr.bf16.mxu0 0
    %3965 = vmatpush1.bf16.msra.mxu0 0
    %3966 = vmatprep.subr.bf16.mxu0 0
    %3967 = vmatpush1.bf16.msra.mxu0 0
    %3968 = vmatprep.subr.bf16.mxu0 0
    %3969 = vmatpush1.bf16.msra.mxu0 0
    %3970 = vmatprep.subr.bf16.mxu0 0
    %3971 = vmatpush1.bf16.msra.mxu0 0
    %3972 = vmatprep.subr.bf16.mxu0 0
    %3973 = vmatpush1.bf16.msra.mxu0 0
    %3974 = vmatprep.subr.bf16.mxu0 0
    %3975 = vmatpush1.bf16.msra.mxu0 0
    %3976 = vmatprep.mubr.bf16.mxu0 0
    %3977 = vmatmul.mubr.bf16.gmra.mrb[0].mxu0 %v3939
    %v3978 = vpop.f32.mrb[0].mxu0
    %v3979 = vadd.f32 0.0, %v3978
    %v3980 = vpop.f32.mrb[0].mxu0
    %v3981 = vpop.f32.mrb[0].mxu0
    %v3982 = vpop.f32.mrb[0].mxu0
    %3983 = vdwg.mxu0
    %3984 = vrot.lane.b32.xlu0 %v3147, 32
    %v3985 = vpop.permute.xlu0 %3984
    %v3987 = vsel %vm1123, %v3935, 0
    %v3990 = vsel %vm1151, %v3985, 0
    %3992 = vmatprep.subr.bf16.mxu0 0
    %3993 = vmatpush1.bf16.msra.mxu0 %v3990
    %3994 = vmatprep.subr.bf16.mxu0 0
    %3995 = vmatpush1.bf16.msra.mxu0 0
    %3996 = vmatprep.subr.bf16.mxu0 0
    %3997 = vmatpush1.bf16.msra.mxu0 0
    %3998 = vmatprep.subr.bf16.mxu0 0
    %3999 = vmatpush1.bf16.msra.mxu0 0
    %4000 = vmatprep.subr.bf16.mxu0 0
    %4001 = vmatpush1.bf16.msra.mxu0 0
    %4002 = vmatprep.subr.bf16.mxu0 0
    %4003 = vmatpush1.bf16.msra.mxu0 0
    %4004 = vmatprep.subr.bf16.mxu0 0
    %4005 = vmatpush1.bf16.msra.mxu0 0
    %4006 = vmatprep.subr.bf16.mxu0 0
    %4007 = vmatpush1.bf16.msra.mxu0 0
    %4008 = vmatprep.subr.bf16.mxu0 0
    %4009 = vmatpush1.bf16.msra.mxu0 0
    %4010 = vmatprep.subr.bf16.mxu0 0
    %4011 = vmatpush1.bf16.msra.mxu0 0
    %4012 = vmatprep.subr.bf16.mxu0 0
    %4013 = vmatpush1.bf16.msra.mxu0 0
    %4014 = vmatprep.subr.bf16.mxu0 0
    %4015 = vmatpush1.bf16.msra.mxu0 0
    %4016 = vmatprep.subr.bf16.mxu0 0
    %4017 = vmatpush1.bf16.msra.mxu0 0
    %4018 = vmatprep.subr.bf16.mxu0 0
    %4019 = vmatpush1.bf16.msra.mxu0 0
    %4020 = vmatprep.subr.bf16.mxu0 0
    %4021 = vmatpush1.bf16.msra.mxu0 0
    %4022 = vmatprep.subr.bf16.mxu0 0
    %4023 = vmatpush1.bf16.msra.mxu0 0
    %4024 = vmatprep.mubr.bf16.mxu0 0
    %4025 = vmatmul.mubr.bf16.gmra.mrb[0].mxu0 %v3987
    %v4026 = vpop.f32.mrb[0].mxu0
    %v4027 = vadd.f32 0.0, %v4026
    %v4028 = vpop.f32.mrb[0].mxu0
    %v4029 = vpop.f32.mrb[0].mxu0
    %v4030 = vpop.f32.mrb[0].mxu0
    %4031 = vdwg.mxu0
    %4034 = vrot.lane.b32.xlu0 %v3531, 32
    %v4035 = vpop.permute.xlu0 %4034
    %4036 = vrot.lane.b32.xlu0 %v3579, 32
    %v4037 = vpop.permute.xlu0 %4036
    %4042 = vrot.lane.b32.xlu0 %v3755, 64
    %v4043 = vpop.permute.xlu0 %4042
    %4044 = vrot.lane.b32.xlu0 %v3803, 64
    %v4045 = vpop.permute.xlu0 %4044
    %4050 = vrot.lane.b32.xlu0 %v3979, 96
    %v4051 = vpop.permute.xlu0 %4050
    %4052 = vrot.lane.b32.xlu0 %v4027, 96
    %v4053 = vpop.permute.xlu0 %4052
    %v4056 = vsel %vm1026, %v3309, %v4035
    %v4057 = vsel %vm1026, %v3355, %v4037
    %v4058 = vsel %vm1939, %v4056, %v4043
    %v4059 = vsel %vm1939, %v4057, %v4045
    %v4060 = vsel %vm1942, %v4058, %v4051
    %v4061 = vsel %vm1942, %v4059, %v4053
    %v4062 = vpack.c.bf16 %v4061, %v4060
    %s4063 = scalar_lea.vmem %s9, 64
    %v4064 = vld [vmem:[%s4063] sm:$0xf]
    %v4065 = vld [vmem:[%s4063 + $0x4] sm:$0xf]
    %v4066 = vld [vmem:[%s4063 + $0x8] sm:$0xf]
    %v4067 = vld [vmem:[%s4063 + $0xc] sm:$0xf]
    %v4068 = vld [vmem:[%s4063 + $0x10] sm:$0xf]
    %v4069 = vld [vmem:[%s4063 + $0x14] sm:$0xf]
    %v4070 = vld [vmem:[%s4063 + $0x18] sm:$0xf]
    %v4071 = vld [vmem:[%s4063 + $0x1c] sm:$0xf]
    %v4072 = vld [vmem:[%s4063 + $0x20] sm:$0xf]
    %v4073 = vld [vmem:[%s4063 + $0x24] sm:$0xf]
    %v4074 = vld [vmem:[%s4063 + $0x28] sm:$0xf]
    %v4075 = vld [vmem:[%s4063 + $0x2c] sm:$0xf]
    %v4076 = vld [vmem:[%s4063 + $0x30] sm:$0xf]
    %v4077 = vld [vmem:[%s4063 + $0x34] sm:$0xf]
    %v4078 = vld [vmem:[%s4063 + $0x38] sm:$0xf]
    %v4079 = vld [vmem:[%s4063 + $0x3c] sm:$0xf]
    %s4080 = scalar_lea.vmem %s10, 1
    %v4081 = vld [vmem:[%s4080] sm:$0x1]
    %v4083 = vlaneseq
    %v4084 = vshrl.u32 %v4083, 7
    %v4085 = vsub.s32 0, %v4084
    %v4086 = vrot.slane %v4081, %v4085
    %v4104 = vunpack.c.l.b16 %v4064
    %v4105 = vunpack.c.l.b16 %v4065
    %v4106 = vunpack.c.l.b16 %v4066
    %v4107 = vunpack.c.l.b16 %v4067
    %v4108 = vunpack.c.l.b16 %v4068
    %v4109 = vunpack.c.l.b16 %v4069
    %v4110 = vunpack.c.l.b16 %v4070
    %v4111 = vunpack.c.l.b16 %v4071
    %v4112 = vunpack.c.l.b16 %v4072
    %v4113 = vunpack.c.l.b16 %v4073
    %v4114 = vunpack.c.l.b16 %v4074
    %v4115 = vunpack.c.l.b16 %v4075
    %v4116 = vunpack.c.l.b16 %v4076
    %v4117 = vunpack.c.l.b16 %v4077
    %v4118 = vunpack.c.l.b16 %v4078
    %v4119 = vunpack.c.l.b16 %v4079
    %v4120 = vpack.c.b16 %v4105, %v4104
    %v4121 = vpack.c.b16 %v4107, %v4106
    %v4122 = vpack.c.b16 %v4109, %v4108
    %v4123 = vpack.c.b16 %v4111, %v4110
    %v4124 = vpack.c.b16 %v4113, %v4112
    %v4125 = vpack.c.b16 %v4115, %v4114
    %v4126 = vpack.c.b16 %v4117, %v4116
    %v4127 = vpack.c.b16 %v4119, %v4118
    %4136 = vmatprep.subr.bf16.mxu0 0
    %4137 = vmatpush1.bf16.msra.mxu0 %v4120
    %4138 = vmatprep.subr.bf16.mxu0 0
    %4139 = vmatpush1.bf16.msra.mxu0 %v4121
    %4140 = vmatprep.subr.bf16.mxu0 0
    %4141 = vmatpush1.bf16.msra.mxu0 %v4122
    %4142 = vmatprep.subr.bf16.mxu0 0
    %4143 = vmatpush1.bf16.msra.mxu0 %v4123
    %4144 = vmatprep.subr.bf16.mxu0 0
    %4145 = vmatpush1.bf16.msra.mxu0 %v4124
    %4146 = vmatprep.subr.bf16.mxu0 0
    %4147 = vmatpush1.bf16.msra.mxu0 %v4125
    %4148 = vmatprep.subr.bf16.mxu0 0
    %4149 = vmatpush1.bf16.msra.mxu0 %v4126
    %4150 = vmatprep.subr.bf16.mxu0 0
    %4151 = vmatpush1.bf16.msra.mxu0 %v4127
    %4152 = vmatprep.subr.bf16.mxu0 0
    %4153 = vmatpush1.bf16.msra.mxu0 0
    %4154 = vmatprep.subr.bf16.mxu0 0
    %4155 = vmatpush1.bf16.msra.mxu0 0
    %4156 = vmatprep.subr.bf16.mxu0 0
    %4157 = vmatpush1.bf16.msra.mxu0 0
    %4158 = vmatprep.subr.bf16.mxu0 0
    %4159 = vmatpush1.bf16.msra.mxu0 0
    %4160 = vmatprep.subr.bf16.mxu0 0
    %4161 = vmatpush1.bf16.msra.mxu0 0
    %4162 = vmatprep.subr.bf16.mxu0 0
    %4163 = vmatpush1.bf16.msra.mxu0 0
    %4164 = vmatprep.subr.bf16.mxu0 0
    %4165 = vmatpush1.bf16.msra.mxu0 0
    %4166 = vmatprep.subr.bf16.mxu0 0
    %4167 = vmatpush1.bf16.msra.mxu0 0
    %4168 = vmatprep.mubr.bf16.mxu0 0
    %4169 = vmatmul.mubr.bf16.gmra.mrb[0].mxu0 %v4062
    %v4170 = vpop.f32.mrb[0].mxu0
    %v4171 = vadd.f32 %v4086, %v4170
    %v4172 = vpop.f32.mrb[0].mxu0
    %v4173 = vpop.f32.mrb[0].mxu0
    %v4174 = vadd.f32 %v4086, %v4173
    %v4175 = vpop.f32.mrb[0].mxu0
    %4176 = vdwg.mxu0
    %v4177 = vadd.f32 %v2822, %v4171
    %v4178 = vadd.f32 %v2823, %v4174
    %s4179 = scalar_lea.vmem %s11, 1
    %v4180 = vld [vmem:[%s4179] sm:$0x1]
    %s4181 = scalar_lea.vmem %s12, 1
    %v4182 = vld [vmem:[%s4181] sm:$0x1]
    %4183 = vadd.xlane.f32.xlu0 %v4177
    %v4184 = vpop.xlane.xlu0 %4183
    %4185 = vadd.xlane.f32.xlu0 %v4178
    %v4186 = vpop.xlane.xlu0 %4185
    %v4187 = vmul.f32 %v4184, %v711
    %v4188 = vmul.f32 %v4186, %v711
    %v4189 = vsub.f32 %v4177, %v4187
    %v4190 = vsub.f32 %v4178, %v4188
    %v4191 = vmul.f32 %v4189, %v4189
    %v4192 = vmul.f32 %v4190, %v4190
    %4193 = vadd.xlane.f32.xlu0 %v4191
    %v4194 = vpop.xlane.xlu0 %4193
    %4195 = vadd.xlane.f32.xlu0 %v4192
    %v4196 = vpop.xlane.xlu0 %4195
    %v4197 = vmul.f32 %v4194, %v711
    %v4198 = vmul.f32 %v4196, %v711
    %v4199 = vadd.f32 %v4197, 1e-06
    %v4200 = vadd.f32 %v4198, 1e-06
    %v4201 = vrsqrt.pop %v4199
    %v4202 = vrsqrt.pop %v4200
    %v4203 = vmul.f32 %v4189, %v4201
    %v4204 = vmul.f32 %v4190, %v4202
    %v4206 = vlaneseq
    %v4207 = vshrl.u32 %v4206, 7
    %v4208 = vsub.s32 0, %v4207
    %v4209 = vrot.slane %v4180, %v4208
    %v4211 = vmul.f32 %v4203, %v4209
    %v4212 = vmul.f32 %v4204, %v4209
    %v4214 = vlaneseq
    %v4215 = vshrl.u32 %v4214, 7
    %v4216 = vsub.s32 0, %v4215
    %v4217 = vrot.slane %v4182, %v4216
    %v4219 = vadd.f32 %v4211, %v4217
    %v4220 = vadd.f32 %v4212, %v4217
    %v4221 = vpack.c.bf16 %v4220, %v4219
    %s4222 = scalar_lea.vmem %s13, 256
    %v4223 = vld [vmem:[%s4222] sm:$0xff]
    %v4224 = vld [vmem:[%s4222 + $0x8] sm:$0xff]
    %v4225 = vld [vmem:[%s4222 + $0x10] sm:$0xff]
    %v4226 = vld [vmem:[%s4222 + $0x18] sm:$0xff]
    %v4227 = vld [vmem:[%s4222 + $0x20] sm:$0xff]
    %v4228 = vld [vmem:[%s4222 + $0x28] sm:$0xff]
    %v4229 = vld [vmem:[%s4222 + $0x30] sm:$0xff]
    %v4230 = vld [vmem:[%s4222 + $0x38] sm:$0xff]
    %v4231 = vld [vmem:[%s4222 + $0x40] sm:$0xff]
    %v4232 = vld [vmem:[%s4222 + $0x48] sm:$0xff]
    %v4233 = vld [vmem:[%s4222 + $0x50] sm:$0xff]
    %v4234 = vld [vmem:[%s4222 + $0x58] sm:$0xff]
    %v4235 = vld [vmem:[%s4222 + $0x60] sm:$0xff]
    %v4236 = vld [vmem:[%s4222 + $0x68] sm:$0xff]
    %v4237 = vld [vmem:[%s4222 + $0x70] sm:$0xff]
    %v4238 = vld [vmem:[%s4222 + $0x78] sm:$0xff]
    %v4239 = vld [vmem:[%s4222 + $0x80] sm:$0xff]
    %v4240 = vld [vmem:[%s4222 + $0x88] sm:$0xff]
    %v4241 = vld [vmem:[%s4222 + $0x90] sm:$0xff]
    %v4242 = vld [vmem:[%s4222 + $0x98] sm:$0xff]
    %v4243 = vld [vmem:[%s4222 + $0xa0] sm:$0xff]
    %v4244 = vld [vmem:[%s4222 + $0xa8] sm:$0xff]
    %v4245 = vld [vmem:[%s4222 + $0xb0] sm:$0xff]
    %v4246 = vld [vmem:[%s4222 + $0xb8] sm:$0xff]
    %v4247 = vld [vmem:[%s4222 + $0xc0] sm:$0xff]
    %v4248 = vld [vmem:[%s4222 + $0xc8] sm:$0xff]
    %v4249 = vld [vmem:[%s4222 + $0xd0] sm:$0xff]
    %v4250 = vld [vmem:[%s4222 + $0xd8] sm:$0xff]
    %v4251 = vld [vmem:[%s4222 + $0xe0] sm:$0xff]
    %v4252 = vld [vmem:[%s4222 + $0xe8] sm:$0xff]
    %v4253 = vld [vmem:[%s4222 + $0xf0] sm:$0xff]
    %v4254 = vld [vmem:[%s4222 + $0xf8] sm:$0xff]
    %s4255 = scalar_lea.vmem %s14, 4
    %v4256 = vld [vmem:[%s4255] sm:$0xf]
    %v4258 = vlaneseq
    %v4259 = vshrl.u32 %v4258, 7
    %v4260 = vsub.s32 0, %v4259
    %v4261 = vrot.slane %v4256, %v4260
    %v4262 = vlaneseq
    %v4263 = vshrl.u32 %v4262, 7
    %v4264 = vsub.s32 1, %v4263
    %v4265 = vrot.slane %v4256, %v4264
    %v4266 = vlaneseq
    %v4267 = vshrl.u32 %v4266, 7
    %v4268 = vsub.s32 2, %v4267
    %v4269 = vrot.slane %v4256, %v4268
    %v4270 = vlaneseq
    %v4271 = vshrl.u32 %v4270, 7
    %v4272 = vsub.s32 3, %v4271
    %v4273 = vrot.slane %v4256, %v4272
    %v4310 = vunpack.c.l.b16 %v4223
    %v4311 = vunpack.c.h.b16 %v4223
    %v4312 = vunpack.c.l.b16 %v4224
    %v4313 = vunpack.c.h.b16 %v4224
    %v4314 = vunpack.c.l.b16 %v4225
    %v4315 = vunpack.c.h.b16 %v4225
    %v4316 = vunpack.c.l.b16 %v4226
    %v4317 = vunpack.c.h.b16 %v4226
    %v4318 = vunpack.c.l.b16 %v4227
    %v4319 = vunpack.c.h.b16 %v4227
    %v4320 = vunpack.c.l.b16 %v4228
    %v4321 = vunpack.c.h.b16 %v4228
    %v4322 = vunpack.c.l.b16 %v4229
    %v4323 = vunpack.c.h.b16 %v4229
    %v4324 = vunpack.c.l.b16 %v4230
    %v4325 = vunpack.c.h.b16 %v4230
    %v4326 = vunpack.c.l.b16 %v4231
    %v4327 = vunpack.c.h.b16 %v4231
    %v4328 = vunpack.c.l.b16 %v4232
    %v4329 = vunpack.c.h.b16 %v4232
    %v4330 = vunpack.c.l.b16 %v4233
    %v4331 = vunpack.c.h.b16 %v4233
    %v4332 = vunpack.c.l.b16 %v4234
    %v4333 = vunpack.c.h.b16 %v4234
    %v4334 = vunpack.c.l.b16 %v4235
    %v4335 = vunpack.c.h.b16 %v4235
    %v4336 = vunpack.c.l.b16 %v4236
    %v4337 = vunpack.c.h.b16 %v4236
    %v4338 = vunpack.c.l.b16 %v4237
    %v4339 = vunpack.c.h.b16 %v4237
    %v4340 = vunpack.c.l.b16 %v4238
    %v4341 = vunpack.c.h.b16 %v4238
    %v4342 = vunpack.c.l.b16 %v4239
    %v4343 = vunpack.c.h.b16 %v4239
    %v4344 = vunpack.c.l.b16 %v4240
    %v4345 = vunpack.c.h.b16 %v4240
    %v4346 = vunpack.c.l.b16 %v4241
    %v4347 = vunpack.c.h.b16 %v4241
    %v4348 = vunpack.c.l.b16 %v4242
    %v4349 = vunpack.c.h.b16 %v4242
    %v4350 = vunpack.c.l.b16 %v4243
    %v4351 = vunpack.c.h.b16 %v4243
    %v4352 = vunpack.c.l.b16 %v4244
    %v4353 = vunpack.c.h.b16 %v4244
    %v4354 = vunpack.c.l.b16 %v4245
    %v4355 = vunpack.c.h.b16 %v4245
    %v4356 = vunpack.c.l.b16 %v4246
    %v4357 = vunpack.c.h.b16 %v4246
    %v4358 = vunpack.c.l.b16 %v4247
    %v4359 = vunpack.c.h.b16 %v4247
    %v4360 = vunpack.c.l.b16 %v4248
    %v4361 = vunpack.c.h.b16 %v4248
    %v4362 = vunpack.c.l.b16 %v4249
    %v4363 = vunpack.c.h.b16 %v4249
    %v4364 = vunpack.c.l.b16 %v4250
    %v4365 = vunpack.c.h.b16 %v4250
    %v4366 = vunpack.c.l.b16 %v4251
    %v4367 = vunpack.c.h.b16 %v4251
    %v4368 = vunpack.c.l.b16 %v4252
    %v4369 = vunpack.c.h.b16 %v4252
    %v4370 = vunpack.c.l.b16 %v4253
    %v4371 = vunpack.c.h.b16 %v4253
    %v4372 = vunpack.c.l.b16 %v4254
    %v4373 = vunpack.c.h.b16 %v4254
    %v4374 = vpack.c.b16 %v4314, %v4310
    %v4375 = vpack.c.b16 %v4315, %v4311
    %v4376 = vpack.c.b16 %v4316, %v4312
    %v4377 = vpack.c.b16 %v4317, %v4313
    %v4378 = vpack.c.b16 %v4322, %v4318
    %v4379 = vpack.c.b16 %v4323, %v4319
    %v4380 = vpack.c.b16 %v4324, %v4320
    %v4381 = vpack.c.b16 %v4325, %v4321
    %v4382 = vpack.c.b16 %v4330, %v4326
    %v4383 = vpack.c.b16 %v4331, %v4327
    %v4384 = vpack.c.b16 %v4332, %v4328
    %v4385 = vpack.c.b16 %v4333, %v4329
    %v4386 = vpack.c.b16 %v4338, %v4334
    %v4387 = vpack.c.b16 %v4339, %v4335
    %v4388 = vpack.c.b16 %v4340, %v4336
    %v4389 = vpack.c.b16 %v4341, %v4337
    %v4390 = vpack.c.b16 %v4346, %v4342
    %v4391 = vpack.c.b16 %v4347, %v4343
    %v4392 = vpack.c.b16 %v4348, %v4344
    %v4393 = vpack.c.b16 %v4349, %v4345
    %v4394 = vpack.c.b16 %v4354, %v4350
    %v4395 = vpack.c.b16 %v4355, %v4351
    %v4396 = vpack.c.b16 %v4356, %v4352
    %v4397 = vpack.c.b16 %v4357, %v4353
    %v4398 = vpack.c.b16 %v4362, %v4358
    %v4399 = vpack.c.b16 %v4363, %v4359
    %v4400 = vpack.c.b16 %v4364, %v4360
    %v4401 = vpack.c.b16 %v4365, %v4361
    %v4402 = vpack.c.b16 %v4370, %v4366
    %v4403 = vpack.c.b16 %v4371, %v4367
    %v4404 = vpack.c.b16 %v4372, %v4368
    %v4405 = vpack.c.b16 %v4373, %v4369
    %4438 = vmatprep.subr.bf16.mxu0 %v4375
    %4439 = vmatpush1.bf16.msra.mxu0 %v4374
    %4440 = vmatprep.subr.bf16.mxu0 %v4379
    %4441 = vmatpush1.bf16.msra.mxu0 %v4378
    %4442 = vmatprep.subr.bf16.mxu0 %v4383
    %4443 = vmatpush1.bf16.msra.mxu0 %v4382
    %4444 = vmatprep.subr.bf16.mxu0 %v4387
    %4445 = vmatpush1.bf16.msra.mxu0 %v4386
    %4446 = vmatprep.subr.bf16.mxu0 %v4391
    %4447 = vmatpush1.bf16.msra.mxu0 %v4390
    %4448 = vmatprep.subr.bf16.mxu0 %v4395
    %4449 = vmatpush1.bf16.msra.mxu0 %v4394
    %4450 = vmatprep.subr.bf16.mxu0 %v4399
    %4451 = vmatpush1.bf16.msra.mxu0 %v4398
    %4452 = vmatprep.subr.bf16.mxu0 %v4403
    %4453 = vmatpush1.bf16.msra.mxu0 %v4402
    %4454 = vmatprep.subr.bf16.mxu0 0
    %4455 = vmatpush1.bf16.msra.mxu0 0
    %4456 = vmatprep.subr.bf16.mxu0 0
    %4457 = vmatpush1.bf16.msra.mxu0 0
    %4458 = vmatprep.subr.bf16.mxu0 0
    %4459 = vmatpush1.bf16.msra.mxu0 0
    %4460 = vmatprep.subr.bf16.mxu0 0
    %4461 = vmatpush1.bf16.msra.mxu0 0
    %4462 = vmatprep.subr.bf16.mxu0 0
    %4463 = vmatpush1.bf16.msra.mxu0 0
    %4464 = vmatprep.subr.bf16.mxu0 0
    %4465 = vmatpush1.bf16.msra.mxu0 0
    %4466 = vmatprep.subr.bf16.mxu0 0
    %4467 = vmatpush1.bf16.msra.mxu0 0
    %4468 = vmatprep.subr.bf16.mxu0 0
    %4469 = vmatpush1.bf16.msra.mxu0 0
    %4470 = vmatprep.mubr.bf16.mxu0 0
    %4471 = vmatmul.mubr.bf16.gmra.mrb[0].mxu0 %v4221
    %v4472 = vpop.f32.mrb[0].mxu0
    %v4473 = vadd.f32 %v4261, %v4472
    %v4474 = vpop.f32.mrb[0].mxu0
    %v4475 = vadd.f32 %v4265, %v4474
    %v4476 = vpop.f32.mrb[0].mxu0
    %v4477 = vadd.f32 %v4261, %v4476
    %v4478 = vpop.f32.mrb[0].mxu0
    %v4479 = vadd.f32 %v4265, %v4478
    %4480 = vdwg.mxu0
    %4481 = vmatprep.subr.bf16.mxu0 %v4377
    %4482 = vmatpush1.bf16.msra.mxu0 %v4376
    %4483 = vmatprep.subr.bf16.mxu0 %v4381
    %4484 = vmatpush1.bf16.msra.mxu0 %v4380
    %4485 = vmatprep.subr.bf16.mxu0 %v4385
    %4486 = vmatpush1.bf16.msra.mxu0 %v4384
    %4487 = vmatprep.subr.bf16.mxu0 %v4389
    %4488 = vmatpush1.bf16.msra.mxu0 %v4388
    %4489 = vmatprep.subr.bf16.mxu0 %v4393
    %4490 = vmatpush1.bf16.msra.mxu0 %v4392
    %4491 = vmatprep.subr.bf16.mxu0 %v4397
    %4492 = vmatpush1.bf16.msra.mxu0 %v4396
    %4493 = vmatprep.subr.bf16.mxu0 %v4401
    %4494 = vmatpush1.bf16.msra.mxu0 %v4400
    %4495 = vmatprep.subr.bf16.mxu0 %v4405
    %4496 = vmatpush1.bf16.msra.mxu0 %v4404
    %4497 = vmatprep.subr.bf16.mxu0 0
    %4498 = vmatpush1.bf16.msra.mxu0 0
    %4499 = vmatprep.subr.bf16.mxu0 0
    %4500 = vmatpush1.bf16.msra.mxu0 0
    %4501 = vmatprep.subr.bf16.mxu0 0
    %4502 = vmatpush1.bf16.msra.mxu0 0
    %4503 = vmatprep.subr.bf16.mxu0 0
    %4504 = vmatpush1.bf16.msra.mxu0 0
    %4505 = vmatprep.subr.bf16.mxu0 0
    %4506 = vmatpush1.bf16.msra.mxu0 0
    %4507 = vmatprep.subr.bf16.mxu0 0
    %4508 = vmatpush1.bf16.msra.mxu0 0
    %4509 = vmatprep.subr.bf16.mxu0 0
    %4510 = vmatpush1.bf16.msra.mxu0 0
    %4511 = vmatprep.subr.bf16.mxu0 0
    %4512 = vmatpush1.bf16.msra.mxu0 0
    %4513 = vmatprep.mubr.bf16.mxu0 0
    %4514 = vmatmul.mubr.bf16.gmra.mrb[0].mxu0 %v4221
    %v4515 = vpop.f32.mrb[0].mxu0
    %v4516 = vadd.f32 %v4269, %v4515
    %v4517 = vpop.f32.mrb[0].mxu0
    %v4518 = vadd.f32 %v4273, %v4517
    %v4519 = vpop.f32.mrb[0].mxu0
    %v4520 = vadd.f32 %v4269, %v4519
    %v4521 = vpop.f32.mrb[0].mxu0
    %v4522 = vadd.f32 %v4273, %v4521
    %4523 = vdwg.mxu0
    %v4524 = vmul.f32 %v4473, %v4473
    %v4525 = vmul.f32 %v4475, %v4475
    %v4526 = vmul.f32 %v4516, %v4516
    %v4527 = vmul.f32 %v4518, %v4518
    %v4528 = vmul.f32 %v4477, %v4477
    %v4529 = vmul.f32 %v4479, %v4479
    %v4530 = vmul.f32 %v4520, %v4520
    %v4531 = vmul.f32 %v4522, %v4522
    %v4532 = vmul.f32 %v4473, %v4524
    %v4533 = vmul.f32 %v4475, %v4525
    %v4534 = vmul.f32 %v4516, %v4526
    %v4535 = vmul.f32 %v4518, %v4527
    %v4536 = vmul.f32 %v4477, %v4528
    %v4537 = vmul.f32 %v4479, %v4529
    %v4538 = vmul.f32 %v4520, %v4530
    %v4539 = vmul.f32 %v4522, %v4531
    %v4540 = vmul.f32 %v4532, 0.044715
    %v4541 = vmul.f32 %v4533, 0.044715
    %v4542 = vmul.f32 %v4534, 0.044715
    %v4543 = vmul.f32 %v4535, 0.044715
    %v4544 = vmul.f32 %v4536, 0.044715
    %v4545 = vmul.f32 %v4537, 0.044715
    %v4546 = vmul.f32 %v4538, 0.044715
    %v4547 = vmul.f32 %v4539, 0.044715
    %v4548 = vadd.f32 %v4473, %v4540
    %v4549 = vadd.f32 %v4475, %v4541
    %v4550 = vadd.f32 %v4516, %v4542
    %v4551 = vadd.f32 %v4518, %v4543
    %v4552 = vadd.f32 %v4477, %v4544
    %v4553 = vadd.f32 %v4479, %v4545
    %v4554 = vadd.f32 %v4520, %v4546
    %v4555 = vadd.f32 %v4522, %v4547
    %v4556 = vmul.f32 %v4548, 0.7978846
    %v4557 = vmul.f32 %v4549, 0.7978846
    %v4558 = vmul.f32 %v4550, 0.7978846
    %v4559 = vmul.f32 %v4551, 0.7978846
    %v4560 = vmul.f32 %v4552, 0.7978846
    %v4561 = vmul.f32 %v4553, 0.7978846
    %v4562 = vmul.f32 %v4554, 0.7978846
    %v4563 = vmul.f32 %v4555, 0.7978846
    %v4564 = vtanh.pop %v4556
    %v4565 = vtanh.pop %v4557
    %v4566 = vtanh.pop %v4558
    %v4567 = vtanh.pop %v4559
    %v4568 = vtanh.pop %v4560
    %v4569 = vtanh.pop %v4561
    %v4570 = vtanh.pop %v4562
    %v4571 = vtanh.pop %v4563
    %v4572 = vadd.f32 %v4564, 1.0
    %v4573 = vadd.f32 %v4565, 1.0
    %v4574 = vadd.f32 %v4566, 1.0
    %v4575 = vadd.f32 %v4567, 1.0
    %v4576 = vadd.f32 %v4568, 1.0
    %v4577 = vadd.f32 %v4569, 1.0
    %v4578 = vadd.f32 %v4570, 1.0
    %v4579 = vadd.f32 %v4571, 1.0
    %v4580 = vmul.f32 %v4572, 0.5
    %v4581 = vmul.f32 %v4573, 0.5
    %v4582 = vmul.f32 %v4574, 0.5
    %v4583 = vmul.f32 %v4575, 0.5
    %v4584 = vmul.f32 %v4576, 0.5
    %v4585 = vmul.f32 %v4577, 0.5
    %v4586 = vmul.f32 %v4578, 0.5
    %v4587 = vmul.f32 %v4579, 0.5
    %v4588 = vmul.f32 %v4473, %v4580
    %v4589 = vmul.f32 %v4475, %v4581
    %v4590 = vmul.f32 %v4516, %v4582
    %v4591 = vmul.f32 %v4518, %v4583
    %v4592 = vmul.f32 %v4477, %v4584
    %v4593 = vmul.f32 %v4479, %v4585
    %v4594 = vmul.f32 %v4520, %v4586
    %v4595 = vmul.f32 %v4522, %v4587
    %v4596 = vpack.c.bf16 %v4592, %v4588
    %v4597 = vpack.c.bf16 %v4593, %v4589
    %v4598 = vpack.c.bf16 %v4594, %v4590
    %v4599 = vpack.c.bf16 %v4595, %v4591
    %s4600 = scalar_lea.vmem %s15, 256
    %v4601 = vld [vmem:[%s4600] sm:$0xf]
    %v4602 = vld [vmem:[%s4600 + $0x4] sm:$0xf]
    %v4603 = vld [vmem:[%s4600 + $0x8] sm:$0xf]
    %v4604 = vld [vmem:[%s4600 + $0xc] sm:$0xf]
    %v4605 = vld [vmem:[%s4600 + $0x10] sm:$0xf]
    %v4606 = vld [vmem:[%s4600 + $0x14] sm:$0xf]
    %v4607 = vld [vmem:[%s4600 + $0x18] sm:$0xf]
    %v4608 = vld [vmem:[%s4600 + $0x1c] sm:$0xf]
    %v4609 = vld [vmem:[%s4600 + $0x20] sm:$0xf]
    %v4610 = vld [vmem:[%s4600 + $0x24] sm:$0xf]
    %v4611 = vld [vmem:[%s4600 + $0x28] sm:$0xf]
    %v4612 = vld [vmem:[%s4600 + $0x2c] sm:$0xf]
    %v4613 = vld [vmem:[%s4600 + $0x30] sm:$0xf]
    %v4614 = vld [vmem:[%s4600 + $0x34] sm:$0xf]
    %v4615 = vld [vmem:[%s4600 + $0x38] sm:$0xf]
    %v4616 = vld [vmem:[%s4600 + $0x3c] sm:$0xf]
    %v4617 = vld [vmem:[%s4600 + $0x40] sm:$0xf]
    %v4618 = vld [vmem:[%s4600 + $0x44] sm:$0xf]
    %v4619 = vld [vmem:[%s4600 + $0x48] sm:$0xf]
    %v4620 = vld [vmem:[%s4600 + $0x4c] sm:$0xf]
    %v4621 = vld [vmem:[%s4600 + $0x50] sm:$0xf]
    %v4622 = vld [vmem:[%s4600 + $0x54] sm:$0xf]
    %v4623 = vld [vmem:[%s4600 + $0x58] sm:$0xf]
    %v4624 = vld [vmem:[%s4600 + $0x5c] sm:$0xf]
    %v4625 = vld [vmem:[%s4600 + $0x60] sm:$0xf]
    %v4626 = vld [vmem:[%s4600 + $0x64] sm:$0xf]
    %v4627 = vld [vmem:[%s4600 + $0x68] sm:$0xf]
    %v4628 = vld [vmem:[%s4600 + $0x6c] sm:$0xf]
    %v4629 = vld [vmem:[%s4600 + $0x70] sm:$0xf]
    %v4630 = vld [vmem:[%s4600 + $0x74] sm:$0xf]
    %v4631 = vld [vmem:[%s4600 + $0x78] sm:$0xf]
    %v4632 = vld [vmem:[%s4600 + $0x7c] sm:$0xf]
    %v4633 = vld [vmem:[%s4600 + $0x80] sm:$0xf]
    %v4634 = vld [vmem:[%s4600 + $0x84] sm:$0xf]
    %v4635 = vld [vmem:[%s4600 + $0x88] sm:$0xf]
    %v4636 = vld [vmem:[%s4600 + $0x8c] sm:$0xf]
    %v4637 = vld [vmem:[%s4600 + $0x90] sm:$0xf]
    %v4638 = vld [vmem:[%s4600 + $0x94] sm:$0xf]
    %v4639 = vld [vmem:[%s4600 + $0x98] sm:$0xf]
    %v4640 = vld [vmem:[%s4600 + $0x9c] sm:$0xf]
    %v4641 = vld [vmem:[%s4600 + $0xa0] sm:$0xf]
    %v4642 = vld [vmem:[%s4600 + $0xa4] sm:$0xf]
    %v4643 = vld [vmem:[%s4600 + $0xa8] sm:$0xf]
    %v4644 = vld [vmem:[%s4600 + $0xac] sm:$0xf]
    %v4645 = vld [vmem:[%s4600 + $0xb0] sm:$0xf]
    %v4646 = vld [vmem:[%s4600 + $0xb4] sm:$0xf]
    %v4647 = vld [vmem:[%s4600 + $0xb8] sm:$0xf]
    %v4648 = vld [vmem:[%s4600 + $0xbc] sm:$0xf]
    %v4649 = vld [vmem:[%s4600 + $0xc0] sm:$0xf]
    %v4650 = vld [vmem:[%s4600 + $0xc4] sm:$0xf]
    %v4651 = vld [vmem:[%s4600 + $0xc8] sm:$0xf]
    %v4652 = vld [vmem:[%s4600 + $0xcc] sm:$0xf]
    %v4653 = vld [vmem:[%s4600 + $0xd0] sm:$0xf]
    %v4654 = vld [vmem:[%s4600 + $0xd4] sm:$0xf]
    %v4655 = vld [vmem:[%s4600 + $0xd8] sm:$0xf]
    %v4656 = vld [vmem:[%s4600 + $0xdc] sm:$0xf]
    %v4657 = vld [vmem:[%s4600 + $0xe0] sm:$0xf]
    %v4658 = vld [vmem:[%s4600 + $0xe4] sm:$0xf]
    %v4659 = vld [vmem:[%s4600 + $0xe8] sm:$0xf]
    %v4660 = vld [vmem:[%s4600 + $0xec] sm:$0xf]
    %v4661 = vld [vmem:[%s4600 + $0xf0] sm:$0xf]
    %v4662 = vld [vmem:[%s4600 + $0xf4] sm:$0xf]
    %v4663 = vld [vmem:[%s4600 + $0xf8] sm:$0xf]
    %v4664 = vld [vmem:[%s4600 + $0xfc] sm:$0xf]
    %s4665 = scalar_lea.vmem [#allocation8], 1
    %v4666 = vld [vmem:[%s4665] sm:$0x1]
    %v4668 = vlaneseq
    %v4669 = vshrl.u32 %v4668, 7
    %v4670 = vsub.s32 0, %v4669
    %v4671 = vrot.slane %v4666, %v4670
    %v4737 = vunpack.c.l.b16 %v4601
    %v4738 = vunpack.c.l.b16 %v4602
    %v4739 = vunpack.c.l.b16 %v4603
    %v4740 = vunpack.c.l.b16 %v4604
    %v4741 = vunpack.c.l.b16 %v4605
    %v4742 = vunpack.c.l.b16 %v4606
    %v4743 = vunpack.c.l.b16 %v4607
    %v4744 = vunpack.c.l.b16 %v4608
    %v4745 = vunpack.c.l.b16 %v4609
    %v4746 = vunpack.c.l.b16 %v4610
    %v4747 = vunpack.c.l.b16 %v4611
    %v4748 = vunpack.c.l.b16 %v4612
    %v4749 = vunpack.c.l.b16 %v4613
    %v4750 = vunpack.c.l.b16 %v4614
    %v4751 = vunpack.c.l.b16 %v4615
    %v4752 = vunpack.c.l.b16 %v4616
    %v4753 = vunpack.c.l.b16 %v4617
    %v4754 = vunpack.c.l.b16 %v4618
    %v4755 = vunpack.c.l.b16 %v4619
    %v4756 = vunpack.c.l.b16 %v4620
    %v4757 = vunpack.c.l.b16 %v4621
    %v4758 = vunpack.c.l.b16 %v4622
    %v4759 = vunpack.c.l.b16 %v4623
    %v4760 = vunpack.c.l.b16 %v4624
    %v4761 = vunpack.c.l.b16 %v4625
    %v4762 = vunpack.c.l.b16 %v4626
    %v4763 = vunpack.c.l.b16 %v4627
    %v4764 = vunpack.c.l.b16 %v4628
    %v4765 = vunpack.c.l.b16 %v4629
    %v4766 = vunpack.c.l.b16 %v4630
    %v4767 = vunpack.c.l.b16 %v4631
    %v4768 = vunpack.c.l.b16 %v4632
    %v4769 = vunpack.c.l.b16 %v4633
    %v4770 = vunpack.c.l.b16 %v4634
    %v4771 = vunpack.c.l.b16 %v4635
    %v4772 = vunpack.c.l.b16 %v4636
    %v4773 = vunpack.c.l.b16 %v4637
    %v4774 = vunpack.c.l.b16 %v4638
    %v4775 = vunpack.c.l.b16 %v4639
    %v4776 = vunpack.c.l.b16 %v4640
    %v4777 = vunpack.c.l.b16 %v4641
    %v4778 = vunpack.c.l.b16 %v4642
    %v4779 = vunpack.c.l.b16 %v4643
    %v4780 = vunpack.c.l.b16 %v4644
    %v4781 = vunpack.c.l.b16 %v4645
    %v4782 = vunpack.c.l.b16 %v4646
    %v4783 = vunpack.c.l.b16 %v4647
    %v4784 = vunpack.c.l.b16 %v4648
    %v4785 = vunpack.c.l.b16 %v4649
    %v4786 = vunpack.c.l.b16 %v4650
    %v4787 = vunpack.c.l.b16 %v4651
    %v4788 = vunpack.c.l.b16 %v4652
    %v4789 = vunpack.c.l.b16 %v4653
    %v4790 = vunpack.c.l.b16 %v4654
    %v4791 = vunpack.c.l.b16 %v4655
    %v4792 = vunpack.c.l.b16 %v4656
    %v4793 = vunpack.c.l.b16 %v4657
    %v4794 = vunpack.c.l.b16 %v4658
    %v4795 = vunpack.c.l.b16 %v4659
    %v4796 = vunpack.c.l.b16 %v4660
    %v4797 = vunpack.c.l.b16 %v4661
    %v4798 = vunpack.c.l.b16 %v4662
    %v4799 = vunpack.c.l.b16 %v4663
    %v4800 = vunpack.c.l.b16 %v4664
    %v4801 = vpack.c.b16 %v4738, %v4737
    %v4802 = vpack.c.b16 %v4740, %v4739
    %v4803 = vpack.c.b16 %v4742, %v4741
    %v4804 = vpack.c.b16 %v4744, %v4743
    %v4805 = vpack.c.b16 %v4746, %v4745
    %v4806 = vpack.c.b16 %v4748, %v4747
    %v4807 = vpack.c.b16 %v4750, %v4749
    %v4808 = vpack.c.b16 %v4752, %v4751
    %v4809 = vpack.c.b16 %v4754, %v4753
    %v4810 = vpack.c.b16 %v4756, %v4755
    %v4811 = vpack.c.b16 %v4758, %v4757
    %v4812 = vpack.c.b16 %v4760, %v4759
    %v4813 = vpack.c.b16 %v4762, %v4761
    %v4814 = vpack.c.b16 %v4764, %v4763
    %v4815 = vpack.c.b16 %v4766, %v4765
    %v4816 = vpack.c.b16 %v4768, %v4767
    %v4817 = vpack.c.b16 %v4770, %v4769
    %v4818 = vpack.c.b16 %v4772, %v4771
    %v4819 = vpack.c.b16 %v4774, %v4773
    %v4820 = vpack.c.b16 %v4776, %v4775
    %v4821 = vpack.c.b16 %v4778, %v4777
    %v4822 = vpack.c.b16 %v4780, %v4779
    %v4823 = vpack.c.b16 %v4782, %v4781
    %v4824 = vpack.c.b16 %v4784, %v4783
    %v4825 = vpack.c.b16 %v4786, %v4785
    %v4826 = vpack.c.b16 %v4788, %v4787
    %v4827 = vpack.c.b16 %v4790, %v4789
    %v4828 = vpack.c.b16 %v4792, %v4791
    %v4829 = vpack.c.b16 %v4794, %v4793
    %v4830 = vpack.c.b16 %v4796, %v4795
    %v4831 = vpack.c.b16 %v4798, %v4797
    %v4832 = vpack.c.b16 %v4800, %v4799
    %4865 = vmatprep.subr.bf16.mxu0 0
    %4866 = vmatpush1.bf16.msra.mxu0 %v4801
    %4867 = vmatprep.subr.bf16.mxu0 0
    %4868 = vmatpush1.bf16.msra.mxu0 %v4802
    %4869 = vmatprep.subr.bf16.mxu0 0
    %4870 = vmatpush1.bf16.msra.mxu0 %v4803
    %4871 = vmatprep.subr.bf16.mxu0 0
    %4872 = vmatpush1.bf16.msra.mxu0 %v4804
    %4873 = vmatprep.subr.bf16.mxu0 0
    %4874 = vmatpush1.bf16.msra.mxu0 %v4805
    %4875 = vmatprep.subr.bf16.mxu0 0
    %4876 = vmatpush1.bf16.msra.mxu0 %v4806
    %4877 = vmatprep.subr.bf16.mxu0 0
    %4878 = vmatpush1.bf16.msra.mxu0 %v4807
    %4879 = vmatprep.subr.bf16.mxu0 0
    %4880 = vmatpush1.bf16.msra.mxu0 %v4808
    %4881 = vmatprep.subr.bf16.mxu0 0
    %4882 = vmatpush1.bf16.msra.mxu0 %v4809
    %4883 = vmatprep.subr.bf16.mxu0 0
    %4884 = vmatpush1.bf16.msra.mxu0 %v4810
    %4885 = vmatprep.subr.bf16.mxu0 0
    %4886 = vmatpush1.bf16.msra.mxu0 %v4811
    %4887 = vmatprep.subr.bf16.mxu0 0
    %4888 = vmatpush1.bf16.msra.mxu0 %v4812
    %4889 = vmatprep.subr.bf16.mxu0 0
    %4890 = vmatpush1.bf16.msra.mxu0 %v4813
    %4891 = vmatprep.subr.bf16.mxu0 0
    %4892 = vmatpush1.bf16.msra.mxu0 %v4814
    %4893 = vmatprep.subr.bf16.mxu0 0
    %4894 = vmatpush1.bf16.msra.mxu0 %v4815
    %4895 = vmatprep.subr.bf16.mxu0 0
    %4896 = vmatpush1.bf16.msra.mxu0 %v4816
    %4897 = vmatprep.mubr.bf16.mxu0 %v4597
    %4898 = vmatmul.mubr.bf16.gmra.mrb[0].mxu0 %v4596
    %v4899 = vpop.f32.mrb[0].mxu0
    %v4900 = vadd.f32 %v4671, %v4899
    %v4901 = vpop.f32.mrb[0].mxu0
    %v4902 = vpop.f32.mrb[0].mxu0
    %v4903 = vadd.f32 %v4671, %v4902
    %v4904 = vpop.f32.mrb[0].mxu0
    %4905 = vdwg.mxu0
    %4906 = vmatprep.subr.bf16.mxu0 0
    %4907 = vmatpush1.bf16.msra.mxu0 %v4817
    %4908 = vmatprep.subr.bf16.mxu0 0
    %4909 = vmatpush1.bf16.msra.mxu0 %v4818
    %4910 = vmatprep.subr.bf16.mxu0 0
    %4911 = vmatpush1.bf16.msra.mxu0 %v4819
    %4912 = vmatprep.subr.bf16.mxu0 0
    %4913 = vmatpush1.bf16.msra.mxu0 %v4820
    %4914 = vmatprep.subr.bf16.mxu0 0
    %4915 = vmatpush1.bf16.msra.mxu0 %v4821
    %4916 = vmatprep.subr.bf16.mxu0 0
    %4917 = vmatpush1.bf16.msra.mxu0 %v4822
    %4918 = vmatprep.subr.bf16.mxu0 0
    %4919 = vmatpush1.bf16.msra.mxu0 %v4823
    %4920 = vmatprep.subr.bf16.mxu0 0
    %4921 = vmatpush1.bf16.msra.mxu0 %v4824
    %4922 = vmatprep.subr.bf16.mxu0 0
    %4923 = vmatpush1.bf16.msra.mxu0 %v4825
    %4924 = vmatprep.subr.bf16.mxu0 0
    %4925 = vmatpush1.bf16.msra.mxu0 %v4826
    %4926 = vmatprep.subr.bf16.mxu0 0
    %4927 = vmatpush1.bf16.msra.mxu0 %v4827
    %4928 = vmatprep.subr.bf16.mxu0 0
    %4929 = vmatpush1.bf16.msra.mxu0 %v4828
    %4930 = vmatprep.subr.bf16.mxu0 0
    %4931 = vmatpush1.bf16.msra.mxu0 %v4829
    %4932 = vmatprep.subr.bf16.mxu0 0
    %4933 = vmatpush1.bf16.msra.mxu0 %v4830
    %4934 = vmatprep.subr.bf16.mxu0 0
    %4935 = vmatpush1.bf16.msra.mxu0 %v4831
    %4936 = vmatprep.subr.bf16.mxu0 0
    %4937 = vmatpush1.bf16.msra.mxu0 %v4832
    %4938 = vmatprep.mubr.bf16.mxu0 %v4599
    %4939 = vmatmul.mubr.bf16.gmra.mrb[0].mxu0 %v4598
    %v4940 = vpop.f32.mrb[0].mxu0
    %v4941 = vadd.f32 %v4900, %v4940
    %v4942 = vpop.f32.mrb[0].mxu0
    %v4943 = vpop.f32.mrb[0].mxu0
    %v4944 = vadd.f32 %v4903, %v4943
    %v4945 = vpop.f32.mrb[0].mxu0
    %4946 = vdwg.mxu0
    %v4947 = vadd.f32 %v4177, %v4941
    %v4948 = vadd.f32 %v4178, %v4944
    %v4949 = vld [vmem:[%s17] sm:$0x1]
    %v4950 = vld [vmem:[%s18] sm:$0x1]
    %v4953 = vrot.slane %v4948, 7
    %vm4954 = vcmask 1041409
    %v4955 = vsel %vm4954, %v4953, %v4947
    %vm4957 = vcmask 1041408
    %v4958 = vsel %vm4957, %v4955, 0.0
    %4959 = vadd.xlane.f32.xlu0 %v4958
    %v4960 = vpop.xlane.xlu0 %4959
    %v4961 = vmul.f32 %v4960, %v711
    %v4963 = vrot.slane %v4961, 1
    %v4966 = vsub.f32 %v4947, %v4961
    %v4967 = vsub.f32 %v4948, %v4963
    %v4968 = vmul.f32 %v4966, %v4966
    %v4969 = vmul.f32 %v4967, %v4967
    %v4972 = vrot.slane %v4969, 7
    %v4973 = vsel %vm4954, %v4972, %v4968
    %v4975 = vsel %vm4957, %v4973, 0.0
    %4976 = vadd.xlane.f32.xlu0 %v4975
    %v4977 = vpop.xlane.xlu0 %4976
    %v4978 = vmul.f32 %v4977, %v711
    %v4979 = vadd.f32 %v4978, 1e-06
    %v4980 = vrsqrt.pop %v4979
    %v4982 = vrot.slane %v4980, 1
    %v4985 = vmul.f32 %v4966, %v4980
    %v4986 = vmul.f32 %v4967, %v4982
    %v4988 = vlaneseq
    %v4989 = vshrl.u32 %v4988, 7
    %v4990 = vsub.s32 0, %v4989
    %v4991 = vrot.slane %v4949, %v4990
    %v4993 = vmul.f32 %v4985, %v4991
    %v4994 = vmul.f32 %v4986, %v4991
    %v4996 = vlaneseq
    %v4997 = vshrl.u32 %v4996, 7
    %v4998 = vsub.s32 0, %v4997
    %v4999 = vrot.slane %v4950, %v4998
    %v5001 = vadd.f32 %v4993, %v4999
    %v5002 = vadd.f32 %v4994, %v4999
    %v5003 = vmul.f32 %v5001, %v5001
    %v5004 = vmul.f32 %v5002, %v5002
    %v5007 = vrot.slane %v5004, 7
    %v5008 = vsel %vm4954, %v5007, %v5003
    %v5010 = vsel %vm4957, %v5008, 0.0
    %5011 = vadd.xlane.f32.xlu0 %v5010
    %v5012 = vpop.xlane.xlu0 %5011
    %v5013 = vrsqrt.pop %v5012
    %v5014 = vmul.f32 %v5012, %v5013
    %vm5015 = vcmp.eq.f32.partialorder %v5012, inf
    %v5016 = vsel %vm5015, %v5012, %v5014
    %vm5017 = vcmp.eq.f32.partialorder %v5012, 0.0
    %v5018 = vand.u32 %v5012, 2147483648
    %v5019 = vsel %vm5017, %v5018, %v5016
    %v5020 = vmax.f32 %v5019, 1e-12
    %v5022 = vrot.slane %v5020, 1
    %v5025 = vrcp.pop %v5020
    %v5026 = vmul.f32 %v5001, %v5025
    %v5027 = vrcp.pop %v5022
    %v5028 = vmul.f32 %v5002, %v5027
    %v5029 = vld [vmem:[#allocation10] sm:$0xff]
    %v5030 = vld [vmem:[#allocation10 + $0x8] sm:$0xff]
    %v5031 = vld [vmem:[#allocation10 + $0x10] sm:$0xff]
    %v5032 = vld [vmem:[#allocation10 + $0x18] sm:$0xff]
    %v5033 = vld [vmem:[#allocation10 + $0x20] sm:$0xff]
    %v5034 = vld [vmem:[#allocation10 + $0x28] sm:$0xff]
    %v5035 = vld [vmem:[#allocation10 + $0x30] sm:$0xff]
    %v5036 = vld [vmem:[#allocation10 + $0x38] sm:$0xff]
    %v5037 = vld [vmem:[#allocation10 + $0x40] sm:$0xff]
    %v5038 = vld [vmem:[#allocation10 + $0x48] sm:$0xff]
    %v5039 = vld [vmem:[#allocation10 + $0x50] sm:$0xff]
    %v5040 = vld [vmem:[#allocation10 + $0x58] sm:$0xff]
    %v5041 = vld [vmem:[#allocation10 + $0x60] sm:$0xff]
    %v5042 = vld [vmem:[#allocation10 + $0x68] sm:$0xff]
    %v5043 = vld [vmem:[#allocation10 + $0x70] sm:$0xff]
    %v5044 = vld [vmem:[#allocation10 + $0x78] sm:$0xff]
    %v5047 = vrot.slane %v5028, 7
    %v5048 = vsel %vm4954, %v5047, %v5026
    %5050 = vmatprep.subr.mxu0 0.0
    %5051 = vmatpush1.msra.mxu0 %v5029
    %5052 = vmatprep.subr.mxu0 0.0
    %5053 = vmatpush1.msra.mxu0 %v5030
    %5054 = vmatprep.subr.mxu0 0.0
    %5055 = vmatpush1.msra.mxu0 %v5031
    %5056 = vmatprep.subr.mxu0 0.0
    %5057 = vmatpush1.msra.mxu0 %v5032
    %5058 = vmatprep.subr.mxu0 0.0
    %5059 = vmatpush1.msra.mxu0 %v5033
    %5060 = vmatprep.subr.mxu0 0.0
    %5061 = vmatpush1.msra.mxu0 %v5034
    %5062 = vmatprep.subr.mxu0 0.0
    %5063 = vmatpush1.msra.mxu0 %v5035
    %5064 = vmatprep.subr.mxu0 0.0
    %5065 = vmatpush1.msra.mxu0 %v5036
    %5066 = vmatprep.subr.mxu0 0.0
    %5067 = vmatpush1.msra.mxu0 %v5037
    %5068 = vmatprep.subr.mxu0 0.0
    %5069 = vmatpush1.msra.mxu0 %v5038
    %5070 = vmatprep.subr.mxu0 0.0
    %5071 = vmatpush1.msra.mxu0 %v5039
    %5072 = vmatprep.subr.mxu0 0.0
    %5073 = vmatpush1.msra.mxu0 %v5040
    %5074 = vmatprep.subr.mxu0 0.0
    %5075 = vmatpush1.msra.mxu0 %v5041
    %5076 = vmatprep.subr.mxu0 0.0
    %5077 = vmatpush1.msra.mxu0 %v5042
    %5078 = vmatprep.subr.mxu0 0.0
    %5079 = vmatpush1.msra.mxu0 %v5043
    %5080 = vmatprep.subr.mxu0 0.0
    %5081 = vmatpush1.msra.mxu0 %v5044
    %5082 = vmatprep.subr.mxu0 0.0
    %5083 = vmatpush1.msra.mxu0 0.0
    %5084 = vmatprep.subr.mxu0 0.0
    %5085 = vmatpush1.msra.mxu0 0.0
    %5086 = vmatprep.subr.mxu0 0.0
    %5087 = vmatpush1.msra.mxu0 0.0
    %5088 = vmatprep.subr.mxu0 0.0
    %5089 = vmatpush1.msra.mxu0 0.0
    %5090 = vmatprep.subr.mxu0 0.0
    %5091 = vmatpush1.msra.mxu0 0.0
    %5092 = vmatprep.subr.mxu0 0.0
    %5093 = vmatpush1.msra.mxu0 0.0
    %5094 = vmatprep.subr.mxu0 0.0
    %5095 = vmatpush1.msra.mxu0 0.0
    %5096 = vmatprep.subr.mxu0 0.0
    %5097 = vmatpush1.msra.mxu0 0.0
    %5098 = vmatprep.subr.mxu0 0.0
    %5099 = vmatpush1.msra.mxu0 0.0
    %5100 = vmatprep.subr.mxu0 0.0
    %5101 = vmatpush1.msra.mxu0 0.0
    %5102 = vmatprep.subr.mxu0 0.0
    %5103 = vmatpush1.msra.mxu0 0.0
    %5104 = vmatprep.subr.mxu0 0.0
    %5105 = vmatpush1.msra.mxu0 0.0
    %5106 = vmatprep.subr.mxu0 0.0
    %5107 = vmatpush1.msra.mxu0 0.0
    %5108 = vmatprep.subr.mxu0 0.0
    %5109 = vmatpush1.msra.mxu0 0.0
    %5110 = vmatprep.subr.mxu0 0.0
    %5111 = vmatpush1.msra.mxu0 0.0
    %5112 = vmatprep.subr.mxu0 0.0
    %5113 = vmatpush1.msra.mxu0 0.0
    %5114 = vmatprep.mubr.f32.mxu0 0.0
    %5115 = vmatmul.mubr.f32.gmra.mrb[0].mxu0 %v5048
    %v5116 = vpop.f32.mrb[0].mxu0
    %v5117 = vadd.f32 0.0, %v5116
    %v5118 = vpop.f32.mrb[0].mxu0
    %5119 = vdwg.mxu0
    %5120 = vst [vmem:[#allocation11] sm:$0x3] %v5117
    // Predicated region
    $region102: #{simple_vit_net_forward.1} parent=1 // pred_check
      _
    $region103: #{simple_vit_net_forward.1} parent=1 // pred_check_branch
      %5122 = sbr.rel (0) target = $region105
    $region104: #{simple_vit_net_forward.1} parent=1 // pred_region
      %s5124 = ssub.s32 32, 32
      %5125 = vsyncadd [#allocation4], %s5124
      %s5127 = sshll.u32 [#allocation11], 4
      %s5128 = int_to_ptr.vmem [resolvable:$true] %s5127
      %5130 = dma.vmem_to_hbm [thread:$0]  %s5128, 32, %s20, [#allocation4]
    $region105: #{simple_vit_net_forward.1} parent=1 // pred_fallthru
      _
    // Predicated region
    $region106: #{simple_vit_net_forward.1} parent=1 // pred_check
      _
    $region107: #{simple_vit_net_forward.1} parent=1 // pred_check_branch
      %5132 = sbr.rel (0) target = $region109
    $region108: #{simple_vit_net_forward.1} parent=1 // pred_region
      %5133 = dma.done [#allocation4], 32
    $region109: #{simple_vit_net_forward.1} parent=1 // pred_fallthru
      _
    %5134 = vsyncpa [#allocation3], 1
    %5135 = vsyncpa [#allocation6], 1
    %5136 = vsyncpa [#allocation9], 1
    %5137 = vsyncpa [#allocation4], 1

</llo_original>
